<compile_context>
chip_gen: v7x
topology: tpu7x:2x2x1
jax: 0.10.0
libtpu: 0.0.40
codegen_flags: <defaults>
</compile_context>

<pallas_src>
import numpy as np
import jax
import jax.numpy as jnp
from jax.experimental import pallas as pl
from jax.experimental.pallas import tpu as pltpu


# ----------------------------------------------------------------------------
# Kernel 1: batched dynamic mask head (per-instance tiny MLP over pixels)
# ----------------------------------------------------------------------------
def _make_mask_head_kernel(num_convs, ti):
    def kernel(im_ref,            # scalar prefetch: (n_pad,) int32 image index per instance
               feats_ref,         # (B, 2+Cf, HWT) resident augmented mask_feats chunk
               *wb_and_out):      # w0_aug, bias0, w1, b1, ..., out_ref
        out_ref = wb_and_out[-1]  # (ti, HWT)
        wb = wb_and_out[:-1]
        it = pl.program_id(1)     # instance-tile index (inner grid axis)

        for t in range(ti):                       # unrolled: ti independent instances
            b = im_ref[it * ti + t]               # image index (SMEM scalar)
            f = feats_ref[b]                      # (2+Cf, HWT) gather from resident VMEM block
            # layer 0, concat-free, single matmul:
            #   w0 @ cat([(inst_loc - loc)/soi, feats]) + b0
            # == [w0_rel/soi | w0_feat] @ [-loc ; feats] + (w0_rel/soi @ inst_loc + b0)
            x = jnp.dot(wb[0][t], f, preferred_element_type=jnp.float32) + wb[1][t]
            x = jnp.maximum(x, 0.0)
            idx = 2
            for l in range(1, num_convs):
                w = wb[idx][t]
                bia = wb[idx + 1][t]
                idx += 2
                x = jnp.dot(w, x, preferred_element_type=jnp.float32) + bia
                if l < num_convs - 1:
                    x = jnp.maximum(x, 0.0)
            out_ref[pl.ds(t, 1), :] = x           # (1, HWT) lane-dense row store
    return kernel


def _pick_hw_tile(hw, max_tile=2048):
    if hw <= max_tile or hw % 128 != 0:
        return hw
    for cand in range(max_tile - max_tile % 128, 127, -128):
        if hw % cand == 0:
            return cand
    return hw


def dynamic_mask_head_pallas(mask_feats, locations, mask_head_params,
                             fpn_levels, instance_locations, im_inds,
                             soi_table, *, in_channels, channels, num_convs,
                             ti=8, max_hw_tile=2048):
    """Returns flattened mask logits of shape (n_inst, H*W), float32."""
    B, Cf, H, W = mask_feats.shape
    HW = H * W
    n_inst = mask_head_params.shape[0]
    cin0 = in_channels + 2   # rel coords enabled
    f32 = jnp.float32

    # ---- parse_dynamic_params (glue) ----
    weight_nums, bias_nums = [], []
    for l in range(num_convs):
        if l == 0:
            weight_nums.append(cin0 * channels); bias_nums.append(channels)
        elif l == num_convs - 1:
            weight_nums.append(channels); bias_nums.append(1)
        else:
            weight_nums.append(channels * channels); bias_nums.append(channels)

    offset = 0
    w_splits, b_splits = [], []
    for nw in weight_nums:
        w_splits.append(mask_head_params[:, offset:offset + nw]); offset += nw
    for nb in bias_nums:
        b_splits.append(mask_head_params[:, offset:offset + nb]); offset += nb

    # layer-0: fold 1/soi scaling and the instance-location term into weights /
    # bias, and merge the rel-coord and feats matmuls into one.
    w0 = w_splits[0].reshape(n_inst, channels, cin0).astype(f32)
    b0 = b_splits[0].reshape(n_inst, channels, 1).astype(f32)
    inv_soi = (1.0 / soi_table[fpn_levels]).astype(f32)                       # (n,)
    w0_rel_s = w0[:, :, :2] * inv_soi[:, None, None]                          # (n, C, 2)
    w0_aug = jnp.concatenate([w0_rel_s, w0[:, :, 2:]], axis=2)                # (n, C, 2+Cf)
    bias0 = (jnp.einsum('ncd,nd->nc', w0_rel_s,
                        instance_locations.astype(f32))[:, :, None] + b0)     # (n, C, 1)

    wb_args = [w0_aug, bias0]
    for l in range(1, num_convs):
        if l == num_convs - 1:
            w = w_splits[l].reshape(n_inst, 1, channels).astype(f32)
            b = b_splits[l].reshape(n_inst, 1, 1).astype(f32)
        else:
            w = w_splits[l].reshape(n_inst, channels, channels).astype(f32)
            b = b_splits[l].reshape(n_inst, channels, 1).astype(f32)
        wb_args += [w, b]

    # pad instance axis to a multiple of ti (padded instances produce garbage-free
    # zeros and are sliced off)
    n_pad = ((n_inst + ti - 1) // ti) * ti
    pad = n_pad - n_inst
    if pad:
        wb_args = [jnp.pad(a, ((0, pad),) + ((0, 0),) * (a.ndim - 1)) for a in wb_args]
    im_pad = jnp.pad(im_inds.astype(jnp.int32), (0, pad))

    hw_tile = _pick_hw_tile(HW, max_hw_tile)
    n_hw = HW // hw_tile

    # augmented feats: prepend the shared, negated location channels so layer 0
    # is a single matmul against a single resident VMEM block.
    neg_loc = -jnp.transpose(locations, (1, 0)).astype(f32)                   # (2, HW) [x; y]
    feats_aug = jnp.concatenate(
        [jnp.broadcast_to(neg_loc[None], (B, 2, HW)),
         mask_feats.reshape(B, Cf, HW).astype(f32)], axis=1)                  # (B, 2+Cf, HW)

    wb_specs = [pl.BlockSpec((ti,) + a.shape[1:], lambda hw, it, im: (it, 0, 0))
                for a in wb_args]

    grid_spec = pltpu.PrefetchScalarGridSpec(
        num_scalar_prefetch=1,
        # hw outer / instance-tile inner => the feats block stays resident
        # across all instance tiles of one hw chunk (one HBM fetch per chunk).
        grid=(n_hw, n_pad // ti),
        in_specs=[pl.BlockSpec((B, cin0, hw_tile), lambda hw, it, im: (0, 0, hw))]
                 + wb_specs,
        out_specs=pl.BlockSpec((ti, hw_tile), lambda hw, it, im: (it, hw)),
    )

    logits = pl.pallas_call(
        _make_mask_head_kernel(num_convs, ti),
        out_shape=jax.ShapeDtypeStruct((n_pad, HW), f32),
        grid_spec=grid_spec,
        compiler_params=pltpu.CompilerParams(
            dimension_semantics=("parallel", "parallel"),
            vmem_limit_bytes=48 * 1024 * 1024),
    )(im_pad, feats_aug, *wb_args)

    return logits[:n_inst]                                                     # (n_inst, HW)


# ----------------------------------------------------------------------------
# Kernel 2: fused aligned-bilinear upsample (matmul form) + sigmoid + dice loss
# ----------------------------------------------------------------------------
def _make_dice_kernel(ti):
    def kernel(logits_ref,       # (ti, H, W)   f32 mask logits at feature stride
               gt_ref,           # (ti, Hm, Wm) bf16 gt bitmasks at mask_out_stride
               ry_ref,           # (Hm, H)      row interpolation matrix (resident)
               rxt_ref,          # (W, Wm)      col interpolation matrix^T (resident)
               out_ref):         # (ti, 1)      dice loss per instance
        ry = ry_ref[...]
        rxt = rxt_ref[...]
        for t in range(ti):
            x = logits_ref[t]                                                # (H, W)
            up = jnp.dot(jnp.dot(ry, x, preferred_element_type=jnp.float32),
                         rxt, preferred_element_type=jnp.float32)            # (Hm, Wm)
            s = pl.reciprocal(1.0 + jnp.exp(-up), approx=True)               # sigmoid (EUP)
            g = gt_ref[t].astype(jnp.float32)
            inter = jnp.sum(s * g, keepdims=True)                            # (1, 1)
            union = (jnp.sum(s * s, keepdims=True)
                     + jnp.sum(g * g, keepdims=True) + 1e-5)
            loss = 1.0 - 2.0 * inter * pl.reciprocal(union, approx=True)
            out_ref[pl.ds(t, 1), :] = loss
    return kernel


def dice_loss_fused_pallas(logits_hw, gt_masks, ry, rxt, *, tile_i=None):
    """logits_hw: (n, H, W) f32; gt_masks: (n, Hm, Wm) bf16. Returns (n,) dice losses."""
    n, H, W = logits_hw.shape
    Hm, Wm = gt_masks.shape[1], gt_masks.shape[2]
    if tile_i is None:
        # VMEM-aware: double-buffered (logits f32 + gt bf16) per instance must
        # stay well inside the 48 MB scoped-VMEM budget.
        bytes_per_inst = H * W * 4 + Hm * Wm * 2
        budget = 24 * 1024 * 1024
        tile_i = max(8, min(64, (budget // (2 * bytes_per_inst)) // 8 * 8))
        tile_i = min(tile_i, ((n + 7) // 8) * 8)
    n_pad = ((n + tile_i - 1) // tile_i) * tile_i
    pad = n_pad - n
    if pad:
        logits_hw = jnp.pad(logits_hw, ((0, pad), (0, 0), (0, 0)))
        gt_masks = jnp.pad(gt_masks, ((0, pad), (0, 0), (0, 0)))

    losses = pl.pallas_call(
        _make_dice_kernel(tile_i),
        out_shape=jax.ShapeDtypeStruct((n_pad, 1), jnp.float32),
        grid=(n_pad // tile_i,),
        in_specs=[pl.BlockSpec((tile_i, H, W), lambda i: (i, 0, 0)),
                  pl.BlockSpec((tile_i, Hm, Wm), lambda i: (i, 0, 0)),
                  pl.BlockSpec((Hm, H), lambda i: (0, 0)),
                  pl.BlockSpec((W, Wm), lambda i: (0, 0))],
        out_specs=pl.BlockSpec((tile_i, 1), lambda i: (i, 0)),
        compiler_params=pltpu.CompilerParams(
            dimension_semantics=("parallel",),
            vmem_limit_bytes=48 * 1024 * 1024),
    )(logits_hw.astype(jnp.float32), gt_masks, ry, rxt)
    return losses[:n, 0]


# ----------------------------------------------------------------------------
# Glue: aligned_bilinear as interpolation matrices, locations, controller permute
# ----------------------------------------------------------------------------
def _aligned_bilinear_matrix(size_in, factor):
    """1-D interpolation matrix (factor*size_in, size_in) replicating AdelaiDet
    aligned_bilinear along one axis: replicate-pad by 1, align_corners interp
    to factor*size+1, replicate-pad by factor//2 at the start, crop — with the
    padded column folded back into the last input column."""
    n_out = factor * size_in
    p = factor // 2
    i = np.arange(n_out)
    ti = np.maximum(i - p, 0)
    src = ti.astype(np.float64) / factor
    y0 = np.floor(src).astype(np.int64)
    frac = (src - y0).astype(np.float32)
    y1 = np.minimum(y0 + 1, size_in)
    M = np.zeros((n_out, size_in + 1), np.float32)
    M[np.arange(n_out), y0] += 1.0 - frac
    M[np.arange(n_out), y1] += frac
    Mu = M[:, :size_in].copy()
    Mu[:, size_in - 1] += M[:, size_in]          # fold replicate-padded column
    return jnp.asarray(Mu)


def compute_locations(h, w, stride):
    shifts_x = jnp.arange(w, dtype=jnp.float32) * stride
    shifts_y = jnp.arange(h, dtype=jnp.float32) * stride
    sy, sx = jnp.meshgrid(shifts_y, shifts_x, indexing="ij")
    return jnp.stack([sx.reshape(-1), sy.reshape(-1)], axis=1) + stride // 2  # (HW, 2) [x,y]


def get_controller(mlvl_controller, dense_points):
    """Permute preds from [B, A*C, H, W] to [B, H*W*A, C]."""
    out = []
    for preds in mlvl_controller:
        b, _, h, w = preds.shape
        k = dense_points * h * w
        out.append(jnp.transpose(preds, (0, 2, 3, 1)).reshape(b, k, -1))
    return out


# ----------------------------------------------------------------------------
# CondinstPostProcess (training path)
# ----------------------------------------------------------------------------
class CondinstPostProcessPallas:
    def __init__(self, dense_points, mask_gen_params, branch_num_outputs,
                 head_channels, head_num_convs, mask_out_stride,
                 mask_feat_stride, disable_rel_coords, sizes_of_interest):
        # TODO(synk): disable_rel_coords=True path not implemented (default config is False).
        assert not disable_rel_coords
        self.dense_points = dense_points
        self.in_channels = branch_num_outputs
        self.channels = head_channels
        self.num_convs = head_num_convs
        self.mask_out_stride = mask_out_stride
        self.mask_feat_stride = mask_feat_stride
        self.soi_table = jnp.asarray(
            list(sizes_of_interest) + [sizes_of_interest[-1] * 2], jnp.float32)

        num_gen = ((self.in_channels + 2) * self.channels + self.channels      # first conv
                   + (self.num_convs - 2) * (self.channels * self.channels + self.channels)
                   + self.channels * 1 + 1)
        assert num_gen == mask_gen_params
        self.num_gen_params = num_gen
        self.prefix = "CondinstMask"

    def forward_train(self, inputs, targets):
        """targets = (gt_inds, mask_head_params, fpn_levels, instance_locations, im_inds)
        i.e. what supervisor.get_targets would produce (external data pipeline)."""
        mask_feats = inputs["mask_feats"]
        _ = get_controller(inputs["mlvl_controller"], self.dense_points)  # permute (parity; unused here)
        H, W = mask_feats.shape[2], mask_feats.shape[3]
        locations = compute_locations(H, W, self.mask_feat_stride)
        gt_inds, mask_head_params, fpn_levels, instance_locations, im_inds = targets
        gt_bitmasks = inputs["gt_bitmasks"]          # (total_gt, Hm, Wm)

        if im_inds.shape[0] == 0:
            mask_loss = mask_feats.sum() * 0 + mask_head_params.sum() * 0
            return {self.prefix + ".mask_loss": mask_loss}

        # Kernel 1: mask logits at the mask-feature stride, (n_inst, H*W)
        logits = dynamic_mask_head_pallas(
            mask_feats, locations, mask_head_params, fpn_levels,
            instance_locations, im_inds, self.soi_table,
            in_channels=self.in_channels, channels=self.channels,
            num_convs=self.num_convs)

        assert self.mask_feat_stride >= self.mask_out_stride
        assert self.mask_feat_stride % self.mask_out_stride == 0
        factor = self.mask_feat_stride // self.mask_out_stride
        ry = _aligned_bilinear_matrix(H, factor)                 # (Hm, H)
        rxt = jnp.transpose(_aligned_bilinear_matrix(W, factor)) # (W, Wm)

        # gt bitmasks: gather + bf16 (exact for 0/1 masks; halves the dominant HBM read)
        gt = gt_bitmasks[gt_inds].astype(jnp.bfloat16)           # (n_inst, Hm, Wm)

        # Kernel 2: fused upsample + sigmoid + dice
        losses = dice_loss_fused_pallas(
            logits.reshape(-1, H, W), gt, ry, rxt)
        return {self.prefix + ".mask_loss": losses.mean()}


# ----------------------------------------------------------------------------
# Pure-JAX reference (mirrors the PyTorch module) for a correctness check
# ----------------------------------------------------------------------------
def _reference_loss(mask_feats, locations, mask_head_params, fpn_levels,
                    instance_locations, im_inds, gt_bitmasks, gt_inds,
                    soi_table, in_channels, channels, num_convs, ry, rxt):
    B, Cf, H, W = mask_feats.shape
    HW = H * W
    n = mask_head_params.shape[0]
    cin0 = in_channels + 2
    rel = instance_locations[:, None, :] - locations[None, :, :]        # (n, HW, 2)
    rel = jnp.transpose(rel, (0, 2, 1)) / soi_table[fpn_levels][:, None, None]
    feats = mask_feats.reshape(B, Cf, HW)[im_inds]                      # (n, Cf, HW)
    x = jnp.concatenate([rel, feats], axis=1)                           # (n, cin0, HW)

    weight_nums, bias_nums = [], []
    for l in range(num_convs):
        if l == 0:
            weight_nums.append(cin0 * channels); bias_nums.append(channels)
        elif l == num_convs - 1:
            weight_nums.append(channels); bias_nums.append(1)
        else:
            weight_nums.append(channels * channels); bias_nums.append(channels)
    off = 0
    ws, bs = [], []
    for nw in weight_nums:
        ws.append(mask_head_params[:, off:off + nw]); off += nw
    for nb in bias_nums:
        bs.append(mask_head_params[:, off:off + nb]); off += nb
    for l in range(num_convs):
        cout = 1 if l == num_convs - 1 else channels
        w = ws[l].reshape(n, cout, -1)
        b = bs[l].reshape(n, cout, 1)
        x = jnp.einsum('noc,nch->noh', w, x) + b
        if l < num_convs - 1:
            x = jnp.maximum(x, 0.0)
    logits = x.reshape(n, H, W)
    up = jnp.einsum('mh,nhw->nmw', ry, logits)
    up = jnp.einsum('nmw,wk->nmk', up, rxt)
    scores = jax.nn.sigmoid(up)
    gt = gt_bitmasks[gt_inds].astype(jnp.float32)
    xf = scores.reshape(n, -1)
    tf = gt.reshape(n, -1)
    inter = (xf * tf).sum(axis=1)
    union = (xf ** 2).sum(axis=1) + (tf ** 2).sum(axis=1) + 1e-5
    return (1.0 - 2.0 * inter / union).mean()


# ----------------------------------------------------------------------------
# Example
# ----------------------------------------------------------------------------
if __name__ == "__main__":
    key = jax.random.PRNGKey(0)
    B, Cf, H, W = 2, 8, 16, 16
    channels, num_convs = 8, 3
    mask_feat_stride, mask_out_stride = 8, 4
    dense_points = 1
    sizes_of_interest = [64, 128, 256, 512]
    n_inst, total_gt = 8, 6
    mask_gen_params = ((Cf + 2) * channels + channels
                       + channels * channels + channels + channels + 1)

    k = jax.random.split(key, 10)
    mask_feats = jax.random.normal(k[0], (B, Cf, H, W), jnp.float32)
    mlvl_controller = [
        jax.random.normal(k[1], (B, dense_points * mask_gen_params, H, W), jnp.float32),
        jax.random.normal(k[2], (B, dense_points * mask_gen_params, H // 2, W // 2), jnp.float32)]
    mask_head_params = jax.random.normal(k[3], (n_inst, mask_gen_params), jnp.float32) * 0.1
    instance_locations = jax.random.uniform(k[4], (n_inst, 2), jnp.float32,
                                            minval=0.0, maxval=H * mask_feat_stride)
    fpn_levels = jax.random.randint(k[5], (n_inst,), 0, len(sizes_of_interest) + 1)
    im_inds = jax.random.randint(k[6], (n_inst,), 0, B)
    gt_inds = jax.random.randint(k[7], (n_inst,), 0, total_gt)
    factor = mask_feat_stride // mask_out_stride
    Hm, Wm = H * factor, W * factor
    gt_bitmasks = (jax.random.uniform(k[8], (total_gt, Hm, Wm)) > 0.5).astype(jnp.float32)

    module = CondinstPostProcessPallas(
        dense_points=dense_points, mask_gen_params=mask_gen_params,
        branch_num_outputs=Cf, head_channels=channels, head_num_convs=num_convs,
        mask_out_stride=mask_out_stride, mask_feat_stride=mask_feat_stride,
        disable_rel_coords=False, sizes_of_interest=sizes_of_interest)

    inputs = {"mask_feats": mask_feats, "mlvl_controller": mlvl_controller,
              "gt_bitmasks": gt_bitmasks}
    targets = (gt_inds, mask_head_params, fpn_levels, instance_locations, im_inds)

    out = module.forward_train(inputs, targets)
    loss = jax.block_until_ready(out["CondinstMask.mask_loss"])
    assert loss.shape == () and jnp.isfinite(loss)

    # correctness check vs. pure-JAX reference (generous tol for approx reciprocal)
    locations = compute_locations(H, W, mask_feat_stride)
    ry = _aligned_bilinear_matrix(H, factor)
    rxt = jnp.transpose(_aligned_bilinear_matrix(W, factor))
    ref = _reference_loss(mask_feats, locations, mask_head_params, fpn_levels,
                          instance_locations, im_inds, gt_bitmasks, gt_inds,
                          module.soi_table, Cf, channels, num_convs, ry, rxt)
    ref = jax.block_until_ready(ref)
    assert abs(float(loss) - float(ref)) < 3e-2, (float(loss), float(ref))

    print("KERNEL_OK")
</pallas_src>

<mosaic_0001>
module attributes {stable_mosaic.version = 11 : i64} {
  func.func @kernel(%arg0: i32, %arg1: i32, %arg2: memref<8xi32, #tpu.memory_space<smem>>, %arg3: memref<2x10x256xf32, #tpu.memory_space<vmem>>, %arg4: memref<8x8x10xf32, #tpu.memory_space<vmem>>, %arg5: memref<8x8x1xf32, #tpu.memory_space<vmem>>, %arg6: memref<8x8x8xf32, #tpu.memory_space<vmem>>, %arg7: memref<8x8x1xf32, #tpu.memory_space<vmem>>, %arg8: memref<8x1x8xf32, #tpu.memory_space<vmem>>, %arg9: memref<8x1x1xf32, #tpu.memory_space<vmem>>, %arg10: memref<8x256xf32, #tpu.memory_space<vmem>>) attributes {dimension_semantics = [#tpu.dimension_semantics<parallel>, #tpu.dimension_semantics<parallel>], iteration_bounds = array<i64: 1, 1>, scalar_prefetch = 1 : i64, scratch_operands = 0 : i64, tpu.core_type = #tpu.core_type<tc>, window_params = [{transform_indices = @transform_0, window_bounds = array<i64: 2, 10, 256>}, {transform_indices = @transform_1, window_bounds = array<i64: 8, 8, 10>}, {transform_indices = @transform_2, window_bounds = array<i64: 8, 8, 1>}, {transform_indices = @transform_3, window_bounds = array<i64: 8, 8, 8>}, {transform_indices = @transform_4, window_bounds = array<i64: 8, 8, 1>}, {transform_indices = @transform_5, window_bounds = array<i64: 8, 1, 8>}, {transform_indices = @transform_6, window_bounds = array<i64: 8, 1, 1>}, {transform_indices = @transform_7, window_bounds = array<i64: 8, 256>}]} {
    %c8_i32 = arith.constant 8 : i32
    %0 = arith.muli %arg1, %c8_i32 : i32
    %c0_i32 = arith.constant 0 : i32
    %1 = arith.addi %0, %c0_i32 : i32
    %2 = arith.index_cast %1 : i32 to index
    %3 = memref.load %arg2[%2] : memref<8xi32, #tpu.memory_space<smem>>
    %4 = arith.index_cast %3 : i32 to index
    %c0 = arith.constant 0 : index
    %c0_0 = arith.constant 0 : index
    %5 = vector.load %arg3[%4, %c0, %c0_0] : memref<2x10x256xf32, #tpu.memory_space<vmem>>, vector<1x10x256xf32>
    %6 = vector.shape_cast %5 : vector<1x10x256xf32> to vector<10x256xf32>
    %c0_1 = arith.constant 0 : index
    %c0_2 = arith.constant 0 : index
    %c0_3 = arith.constant 0 : index
    %7 = vector.load %arg4[%c0_1, %c0_2, %c0_3] : memref<8x8x10xf32, #tpu.memory_space<vmem>>, vector<1x8x10xf32>
    %8 = vector.shape_cast %7 : vector<1x8x10xf32> to vector<8x10xf32>
    %cst = arith.constant dense<0.000000e+00> : vector<8x256xf32>
    %9 = tpu.matmul %8, %6, %cst {dimension_numbers = #tpu.dot_dimension_numbers<[1], [0], [0], [1], [0, 0, 1, 1], [], []>} : vector<8x10xf32>, vector<10x256xf32>, vector<8x256xf32> -> vector<8x256xf32>
    %c0_4 = arith.constant 0 : index
    %c0_5 = arith.constant 0 : index
    %c0_6 = arith.constant 0 : index
    %10 = vector.load %arg5[%c0_4, %c0_5, %c0_6] : memref<8x8x1xf32, #tpu.memory_space<vmem>>, vector<1x8x1xf32>
    %11 = vector.shape_cast %10 : vector<1x8x1xf32> to vector<8x1xf32>
    %12 = vector.broadcast %11 : vector<8x1xf32> to vector<8x256xf32>
    %13 = arith.addf %9, %12 : vector<8x256xf32>
    %cst_7 = arith.constant 0.000000e+00 : f32
    %14 = vector.broadcast %cst_7 : f32 to vector<8x256xf32>
    %15 = arith.maximumf %13, %14 : vector<8x256xf32>
    %c0_8 = arith.constant 0 : index
    %c0_9 = arith.constant 0 : index
    %c0_10 = arith.constant 0 : index
    %16 = vector.load %arg6[%c0_8, %c0_9, %c0_10] : memref<8x8x8xf32, #tpu.memory_space<vmem>>, vector<1x8x8xf32>
    %17 = vector.shape_cast %16 : vector<1x8x8xf32> to vector<8x8xf32>
    %c0_11 = arith.constant 0 : index
    %c0_12 = arith.constant 0 : index
    %c0_13 = arith.constant 0 : index
    %18 = vector.load %arg7[%c0_11, %c0_12, %c0_13] : memref<8x8x1xf32, #tpu.memory_space<vmem>>, vector<1x8x1xf32>
    %19 = vector.shape_cast %18 : vector<1x8x1xf32> to vector<8x1xf32>
    %cst_14 = arith.constant dense<0.000000e+00> : vector<8x256xf32>
    %20 = tpu.matmul %17, %15, %cst_14 {dimension_numbers = #tpu.dot_dimension_numbers<[1], [0], [0], [1], [0, 0, 1, 1], [], []>} : vector<8x8xf32>, vector<8x256xf32>, vector<8x256xf32> -> vector<8x256xf32>
    %21 = vector.broadcast %19 : vector<8x1xf32> to vector<8x256xf32>
    %22 = arith.addf %20, %21 : vector<8x256xf32>
    %cst_15 = arith.constant 0.000000e+00 : f32
    %23 = vector.broadcast %cst_15 : f32 to vector<8x256xf32>
    %24 = arith.maximumf %22, %23 : vector<8x256xf32>
    %c0_16 = arith.constant 0 : index
    %c0_17 = arith.constant 0 : index
    %c0_18 = arith.constant 0 : index
    %25 = vector.load %arg8[%c0_16, %c0_17, %c0_18] : memref<8x1x8xf32, #tpu.memory_space<vmem>>, vector<1x1x8xf32>
    %26 = vector.shape_cast %25 : vector<1x1x8xf32> to vector<1x8xf32>
    %c0_19 = arith.constant 0 : index
    %c0_20 = arith.constant 0 : index
    %c0_21 = arith.constant 0 : index
    %27 = vector.load %arg9[%c0_19, %c0_20, %c0_21] : memref<8x1x1xf32, #tpu.memory_space<vmem>>, vector<1x1x1xf32>
    %28 = vector.shape_cast %27 : vector<1x1x1xf32> to vector<1x1xf32>
    %cst_22 = arith.constant dense<0.000000e+00> : vector<1x256xf32>
    %29 = tpu.matmul %26, %24, %cst_22 {dimension_numbers = #tpu.dot_dimension_numbers<[1], [0], [0], [1], [0, 0, 1, 1], [], []>} : vector<1x8xf32>, vector<8x256xf32>, vector<1x256xf32> -> vector<1x256xf32>
    %30 = vector.broadcast %28 : vector<1x1xf32> to vector<1x256xf32>
    %31 = arith.addf %29, %30 : vector<1x256xf32>
    %c0_23 = arith.constant 0 : index
    %c0_24 = arith.constant 0 : index
    %32 = vector.load %arg10[%c0_23, %c0_24] : memref<8x256xf32, #tpu.memory_space<vmem>>, vector<1x256xf32>
    tpu.vector_store %arg10[%c0_23, %c0_24], %31 {strides = array<i32>} : memref<8x256xf32, #tpu.memory_space<vmem>>, vector<1x256xf32>,
    %c8_i32_25 = arith.constant 8 : i32
    %33 = arith.muli %arg1, %c8_i32_25 : i32
    %c1_i32 = arith.constant 1 : i32
    %34 = arith.addi %33, %c1_i32 : i32
    %35 = arith.index_cast %34 : i32 to index
    %36 = memref.load %arg2[%35] : memref<8xi32, #tpu.memory_space<smem>>
    %37 = arith.index_cast %36 : i32 to index
    %c0_26 = arith.constant 0 : index
    %c0_27 = arith.constant 0 : index
    %38 = vector.load %arg3[%37, %c0_26, %c0_27] : memref<2x10x256xf32, #tpu.memory_space<vmem>>, vector<1x10x256xf32>
    %39 = vector.shape_cast %38 : vector<1x10x256xf32> to vector<10x256xf32>
    %c1 = arith.constant 1 : index
    %c0_28 = arith.constant 0 : index
    %c0_29 = arith.constant 0 : index
    %40 = vector.load %arg4[%c1, %c0_28, %c0_29] : memref<8x8x10xf32, #tpu.memory_space<vmem>>, vector<1x8x10xf32>
    %41 = vector.shape_cast %40 : vector<1x8x10xf32> to vector<8x10xf32>
    %cst_30 = arith.constant dense<0.000000e+00> : vector<8x256xf32>
    %42 = tpu.matmul %41, %39, %cst_30 {dimension_numbers = #tpu.dot_dimension_numbers<[1], [0], [0], [1], [0, 0, 1, 1], [], []>} : vector<8x10xf32>, vector<10x256xf32>, vector<8x256xf32> -> vector<8x256xf32>
    %c1_31 = arith.constant 1 : index
    %c0_32 = arith.constant 0 : index
    %c0_33 = arith.constant 0 : index
    %43 = vector.load %arg5[%c1_31, %c0_32, %c0_33] : memref<8x8x1xf32, #tpu.memory_space<vmem>>, vector<1x8x1xf32>
    %44 = vector.shape_cast %43 : vector<1x8x1xf32> to vector<8x1xf32>
    %45 = vector.broadcast %44 : vector<8x1xf32> to vector<8x256xf32>
    %46 = arith.addf %42, %45 : vector<8x256xf32>
    %cst_34 = arith.constant 0.000000e+00 : f32
    %47 = vector.broadcast %cst_34 : f32 to vector<8x256xf32>
    %48 = arith.maximumf %46, %47 : vector<8x256xf32>
    %c1_35 = arith.constant 1 : index
    %c0_36 = arith.constant 0 : index
    %c0_37 = arith.constant 0 : index
    %49 = vector.load %arg6[%c1_35, %c0_36, %c0_37] : memref<8x8x8xf32, #tpu.memory_space<vmem>>, vector<1x8x8xf32>
    %50 = vector.shape_cast %49 : vector<1x8x8xf32> to vector<8x8xf32>
    %c1_38 = arith.constant 1 : index
    %c0_39 = arith.constant 0 : index
    %c0_40 = arith.constant 0 : index
    %51 = vector.load %arg7[%c1_38, %c0_39, %c0_40] : memref<8x8x1xf32, #tpu.memory_space<vmem>>, vector<1x8x1xf32>
    %52 = vector.shape_cast %51 : vector<1x8x1xf32> to vector<8x1xf32>
    %cst_41 = arith.constant dense<0.000000e+00> : vector<8x256xf32>
    %53 = tpu.matmul %50, %48, %cst_41 {dimension_numbers = #tpu.dot_dimension_numbers<[1], [0], [0], [1], [0, 0, 1, 1], [], []>} : vector<8x8xf32>, vector<8x256xf32>, vector<8x256xf32> -> vector<8x256xf32>
    %54 = vector.broadcast %52 : vector<8x1xf32> to vector<8x256xf32>
    %55 = arith.addf %53, %54 : vector<8x256xf32>
    %cst_42 = arith.constant 0.000000e+00 : f32
    %56 = vector.broadcast %cst_42 : f32 to vector<8x256xf32>
    %57 = arith.maximumf %55, %56 : vector<8x256xf32>
    %c1_43 = arith.constant 1 : index
    %c0_44 = arith.constant 0 : index
    %c0_45 = arith.constant 0 : index
    %58 = vector.load %arg8[%c1_43, %c0_44, %c0_45] : memref<8x1x8xf32, #tpu.memory_space<vmem>>, vector<1x1x8xf32>
    %59 = vector.shape_cast %58 : vector<1x1x8xf32> to vector<1x8xf32>
    %c1_46 = arith.constant 1 : index
    %c0_47 = arith.constant 0 : index
    %c0_48 = arith.constant 0 : index
    %60 = vector.load %arg9[%c1_46, %c0_47, %c0_48] : memref<8x1x1xf32, #tpu.memory_space<vmem>>, vector<1x1x1xf32>
    %61 = vector.shape_cast %60 : vector<1x1x1xf32> to vector<1x1xf32>
    %cst_49 = arith.constant dense<0.000000e+00> : vector<1x256xf32>
    %62 = tpu.matmul %59, %57, %cst_49 {dimension_numbers = #tpu.dot_dimension_numbers<[1], [0], [0], [1], [0, 0, 1, 1], [], []>} : vector<1x8xf32>, vector<8x256xf32>, vector<1x256xf32> -> vector<1x256xf32>
    %63 = vector.broadcast %61 : vector<1x1xf32> to vector<1x256xf32>
    %64 = arith.addf %62, %63 : vector<1x256xf32>
    %c1_50 = arith.constant 1 : index
    %c0_51 = arith.constant 0 : index
    %65 = vector.load %arg10[%c1_50, %c0_51] : memref<8x256xf32, #tpu.memory_space<vmem>>, vector<1x256xf32>
    tpu.vector_store %arg10[%c1_50, %c0_51], %64 {strides = array<i32>} : memref<8x256xf32, #tpu.memory_space<vmem>>, vector<1x256xf32>,
    %c8_i32_52 = arith.constant 8 : i32
    %66 = arith.muli %arg1, %c8_i32_52 : i32
    %c2_i32 = arith.constant 2 : i32
    %67 = arith.addi %66, %c2_i32 : i32
    %68 = arith.index_cast %67 : i32 to index
    %69 = memref.load %arg2[%68] : memref<8xi32, #tpu.memory_space<smem>>
    %70 = arith.index_cast %69 : i32 to index
    %c0_53 = arith.constant 0 : index
    %c0_54 = arith.constant 0 : index
    %71 = vector.load %arg3[%70, %c0_53, %c0_54] : memref<2x10x256xf32, #tpu.memory_space<vmem>>, vector<1x10x256xf32>
    %72 = vector.shape_cast %71 : vector<1x10x256xf32> to vector<10x256xf32>
    %c2 = arith.constant 2 : index
    %c0_55 = arith.constant 0 : index
    %c0_56 = arith.constant 0 : index
    %73 = vector.load %arg4[%c2, %c0_55, %c0_56] : memref<8x8x10xf32, #tpu.memory_space<vmem>>, vector<1x8x10xf32>
    %74 = vector.shape_cast %73 : vector<1x8x10xf32> to vector<8x10xf32>
    %cst_57 = arith.constant dense<0.000000e+00> : vector<8x256xf32>
    %75 = tpu.matmul %74, %72, %cst_57 {dimension_numbers = #tpu.dot_dimension_numbers<[1], [0], [0], [1], [0, 0, 1, 1], [], []>} : vector<8x10xf32>, vector<10x256xf32>, vector<8x256xf32> -> vector<8x256xf32>
    %c2_58 = arith.constant 2 : index
    %c0_59 = arith.constant 0 : index
    %c0_60 = arith.constant 0 : index
    %76 = vector.load %arg5[%c2_58, %c0_59, %c0_60] : memref<8x8x1xf32, #tpu.memory_space<vmem>>, vector<1x8x1xf32>
    %77 = vector.shape_cast %76 : vector<1x8x1xf32> to vector<8x1xf32>
    %78 = vector.broadcast %77 : vector<8x1xf32> to vector<8x256xf32>
    %79 = arith.addf %75, %78 : vector<8x256xf32>
    %cst_61 = arith.constant 0.000000e+00 : f32
    %80 = vector.broadcast %cst_61 : f32 to vector<8x256xf32>
    %81 = arith.maximumf %79, %80 : vector<8x256xf32>
    %c2_62 = arith.constant 2 : index
    %c0_63 = arith.constant 0 : index
    %c0_64 = arith.constant 0 : index
    %82 = vector.load %arg6[%c2_62, %c0_63, %c0_64] : memref<8x8x8xf32, #tpu.memory_space<vmem>>, vector<1x8x8xf32>
    %83 = vector.shape_cast %82 : vector<1x8x8xf32> to vector<8x8xf32>
    %c2_65 = arith.constant 2 : index
    %c0_66 = arith.constant 0 : index
    %c0_67 = arith.constant 0 : index
    %84 = vector.load %arg7[%c2_65, %c0_66, %c0_67] : memref<8x8x1xf32, #tpu.memory_space<vmem>>, vector<1x8x1xf32>
    %85 = vector.shape_cast %84 : vector<1x8x1xf32> to vector<8x1xf32>
    %cst_68 = arith.constant dense<0.000000e+00> : vector<8x256xf32>
    %86 = tpu.matmul %83, %81, %cst_68 {dimension_numbers = #tpu.dot_dimension_numbers<[1], [0], [0], [1], [0, 0, 1, 1], [], []>} : vector<8x8xf32>, vector<8x256xf32>, vector<8x256xf32> -> vector<8x256xf32>
    %87 = vector.broadcast %85 : vector<8x1xf32> to vector<8x256xf32>
    %88 = arith.addf %86, %87 : vector<8x256xf32>
    %cst_69 = arith.constant 0.000000e+00 : f32
    %89 = vector.broadcast %cst_69 : f32 to vector<8x256xf32>
    %90 = arith.maximumf %88, %89 : vector<8x256xf32>
    %c2_70 = arith.constant 2 : index
    %c0_71 = arith.constant 0 : index
    %c0_72 = arith.constant 0 : index
    %91 = vector.load %arg8[%c2_70, %c0_71, %c0_72] : memref<8x1x8xf32, #tpu.memory_space<vmem>>, vector<1x1x8xf32>
    %92 = vector.shape_cast %91 : vector<1x1x8xf32> to vector<1x8xf32>
    %c2_73 = arith.constant 2 : index
    %c0_74 = arith.constant 0 : index
    %c0_75 = arith.constant 0 : index
    %93 = vector.load %arg9[%c2_73, %c0_74, %c0_75] : memref<8x1x1xf32, #tpu.memory_space<vmem>>, vector<1x1x1xf32>
    %94 = vector.shape_cast %93 : vector<1x1x1xf32> to vector<1x1xf32>
    %cst_76 = arith.constant dense<0.000000e+00> : vector<1x256xf32>
    %95 = tpu.matmul %92, %90, %cst_76 {dimension_numbers = #tpu.dot_dimension_numbers<[1], [0], [0], [1], [0, 0, 1, 1], [], []>} : vector<1x8xf32>, vector<8x256xf32>, vector<1x256xf32> -> vector<1x256xf32>
    %96 = vector.broadcast %94 : vector<1x1xf32> to vector<1x256xf32>
    %97 = arith.addf %95, %96 : vector<1x256xf32>
    %c2_77 = arith.constant 2 : index
    %c0_78 = arith.constant 0 : index
    %98 = vector.load %arg10[%c2_77, %c0_78] : memref<8x256xf32, #tpu.memory_space<vmem>>, vector<1x256xf32>
    tpu.vector_store %arg10[%c2_77, %c0_78], %97 {strides = array<i32>} : memref<8x256xf32, #tpu.memory_space<vmem>>, vector<1x256xf32>,
    %c8_i32_79 = arith.constant 8 : i32
    %99 = arith.muli %arg1, %c8_i32_79 : i32
    %c3_i32 = arith.constant 3 : i32
    %100 = arith.addi %99, %c3_i32 : i32
    %101 = arith.index_cast %100 : i32 to index
    %102 = memref.load %arg2[%101] : memref<8xi32, #tpu.memory_space<smem>>
    %103 = arith.index_cast %102 : i32 to index
    %c0_80 = arith.constant 0 : index
    %c0_81 = arith.constant 0 : index
    %104 = vector.load %arg3[%103, %c0_80, %c0_81] : memref<2x10x256xf32, #tpu.memory_space<vmem>>, vector<1x10x256xf32>
    %105 = vector.shape_cast %104 : vector<1x10x256xf32> to vector<10x256xf32>
    %c3 = arith.constant 3 : index
    %c0_82 = arith.constant 0 : index
    %c0_83 = arith.constant 0 : index
    %106 = vector.load %arg4[%c3, %c0_82, %c0_83] : memref<8x8x10xf32, #tpu.memory_space<vmem>>, vector<1x8x10xf32>
    %107 = vector.shape_cast %106 : vector<1x8x10xf32> to vector<8x10xf32>
    %cst_84 = arith.constant dense<0.000000e+00> : vector<8x256xf32>
    %108 = tpu.matmul %107, %105, %cst_84 {dimension_numbers = #tpu.dot_dimension_numbers<[1], [0], [0], [1], [0, 0, 1, 1], [], []>} : vector<8x10xf32>, vector<10x256xf32>, vector<8x256xf32> -> vector<8x256xf32>
    %c3_85 = arith.constant 3 : index
    %c0_86 = arith.constant 0 : index
    %c0_87 = arith.constant 0 : index
    %109 = vector.load %arg5[%c3_85, %c0_86, %c0_87] : memref<8x8x1xf32, #tpu.memory_space<vmem>>, vector<1x8x1xf32>
    %110 = vector.shape_cast %109 : vector<1x8x1xf32> to vector<8x1xf32>
    %111 = vector.broadcast %110 : vector<8x1xf32> to vector<8x256xf32>
    %112 = arith.addf %108, %111 : vector<8x256xf32>
    %cst_88 = arith.constant 0.000000e+00 : f32
    %113 = vector.broadcast %cst_88 : f32 to vector<8x256xf32>
    %114 = arith.maximumf %112, %113 : vector<8x256xf32>
    %c3_89 = arith.constant 3 : index
    %c0_90 = arith.constant 0 : index
    %c0_91 = arith.constant 0 : index
    %115 = vector.load %arg6[%c3_89, %c0_90, %c0_91] : memref<8x8x8xf32, #tpu.memory_space<vmem>>, vector<1x8x8xf32>
    %116 = vector.shape_cast %115 : vector<1x8x8xf32> to vector<8x8xf32>
    %c3_92 = arith.constant 3 : index
    %c0_93 = arith.constant 0 : index
    %c0_94 = arith.constant 0 : index
    %117 = vector.load %arg7[%c3_92, %c0_93, %c0_94] : memref<8x8x1xf32, #tpu.memory_space<vmem>>, vector<1x8x1xf32>
    %118 = vector.shape_cast %117 : vector<1x8x1xf32> to vector<8x1xf32>
    %cst_95 = arith.constant dense<0.000000e+00> : vector<8x256xf32>
    %119 = tpu.matmul %116, %114, %cst_95 {dimension_numbers = #tpu.dot_dimension_numbers<[1], [0], [0], [1], [0, 0, 1, 1], [], []>} : vector<8x8xf32>, vector<8x256xf32>, vector<8x256xf32> -> vector<8x256xf32>
    %120 = vector.broadcast %118 : vector<8x1xf32> to vector<8x256xf32>
    %121 = arith.addf %119, %120 : vector<8x256xf32>
    %cst_96 = arith.constant 0.000000e+00 : f32
    %122 = vector.broadcast %cst_96 : f32 to vector<8x256xf32>
    %123 = arith.maximumf %121, %122 : vector<8x256xf32>
    %c3_97 = arith.constant 3 : index
    %c0_98 = arith.constant 0 : index
    %c0_99 = arith.constant 0 : index
    %124 = vector.load %arg8[%c3_97, %c0_98, %c0_99] : memref<8x1x8xf32, #tpu.memory_space<vmem>>, vector<1x1x8xf32>
    %125 = vector.shape_cast %124 : vector<1x1x8xf32> to vector<1x8xf32>
    %c3_100 = arith.constant 3 : index
    %c0_101 = arith.constant 0 : index
    %c0_102 = arith.constant 0 : index
    %126 = vector.load %arg9[%c3_100, %c0_101, %c0_102] : memref<8x1x1xf32, #tpu.memory_space<vmem>>, vector<1x1x1xf32>
    %127 = vector.shape_cast %126 : vector<1x1x1xf32> to vector<1x1xf32>
    %cst_103 = arith.constant dense<0.000000e+00> : vector<1x256xf32>
    %128 = tpu.matmul %125, %123, %cst_103 {dimension_numbers = #tpu.dot_dimension_numbers<[1], [0], [0], [1], [0, 0, 1, 1], [], []>} : vector<1x8xf32>, vector<8x256xf32>, vector<1x256xf32> -> vector<1x256xf32>
    %129 = vector.broadcast %127 : vector<1x1xf32> to vector<1x256xf32>
    %130 = arith.addf %128, %129 : vector<1x256xf32>
    %c3_104 = arith.constant 3 : index
    %c0_105 = arith.constant 0 : index
    %131 = vector.load %arg10[%c3_104, %c0_105] : memref<8x256xf32, #tpu.memory_space<vmem>>, vector<1x256xf32>
    tpu.vector_store %arg10[%c3_104, %c0_105], %130 {strides = array<i32>} : memref<8x256xf32, #tpu.memory_space<vmem>>, vector<1x256xf32>,
    %c8_i32_106 = arith.constant 8 : i32
    %132 = arith.muli %arg1, %c8_i32_106 : i32
    %c4_i32 = arith.constant 4 : i32
    %133 = arith.addi %132, %c4_i32 : i32
    %134 = arith.index_cast %133 : i32 to index
    %135 = memref.load %arg2[%134] : memref<8xi32, #tpu.memory_space<smem>>
    %136 = arith.index_cast %135 : i32 to index
    %c0_107 = arith.constant 0 : index
    %c0_108 = arith.constant 0 : index
    %137 = vector.load %arg3[%136, %c0_107, %c0_108] : memref<2x10x256xf32, #tpu.memory_space<vmem>>, vector<1x10x256xf32>
    %138 = vector.shape_cast %137 : vector<1x10x256xf32> to vector<10x256xf32>
    %c4 = arith.constant 4 : index
    %c0_109 = arith.constant 0 : index
    %c0_110 = arith.constant 0 : index
    %139 = vector.load %arg4[%c4, %c0_109, %c0_110] : memref<8x8x10xf32, #tpu.memory_space<vmem>>, vector<1x8x10xf32>
    %140 = vector.shape_cast %139 : vector<1x8x10xf32> to vector<8x10xf32>
    %cst_111 = arith.constant dense<0.000000e+00> : vector<8x256xf32>
    %141 = tpu.matmul %140, %138, %cst_111 {dimension_numbers = #tpu.dot_dimension_numbers<[1], [0], [0], [1], [0, 0, 1, 1], [], []>} : vector<8x10xf32>, vector<10x256xf32>, vector<8x256xf32> -> vector<8x256xf32>
    %c4_112 = arith.constant 4 : index
    %c0_113 = arith.constant 0 : index
    %c0_114 = arith.constant 0 : index
    %142 = vector.load %arg5[%c4_112, %c0_113, %c0_114] : memref<8x8x1xf32, #tpu.memory_space<vmem>>, vector<1x8x1xf32>
    %143 = vector.shape_cast %142 : vector<1x8x1xf32> to vector<8x1xf32>
    %144 = vector.broadcast %143 : vector<8x1xf32> to vector<8x256xf32>
    %145 = arith.addf %141, %144 : vector<8x256xf32>
    %cst_115 = arith.constant 0.000000e+00 : f32
    %146 = vector.broadcast %cst_115 : f32 to vector<8x256xf32>
    %147 = arith.maximumf %145, %146 : vector<8x256xf32>
    %c4_116 = arith.constant 4 : index
    %c0_117 = arith.constant 0 : index
    %c0_118 = arith.constant 0 : index
    %148 = vector.load %arg6[%c4_116, %c0_117, %c0_118] : memref<8x8x8xf32, #tpu.memory_space<vmem>>, vector<1x8x8xf32>
    %149 = vector.shape_cast %148 : vector<1x8x8xf32> to vector<8x8xf32>
    %c4_119 = arith.constant 4 : index
    %c0_120 = arith.constant 0 : index
    %c0_121 = arith.constant 0 : index
    %150 = vector.load %arg7[%c4_119, %c0_120, %c0_121] : memref<8x8x1xf32, #tpu.memory_space<vmem>>, vector<1x8x1xf32>
    %151 = vector.shape_cast %150 : vector<1x8x1xf32> to vector<8x1xf32>
    %cst_122 = arith.constant dense<0.000000e+00> : vector<8x256xf32>
    %152 = tpu.matmul %149, %147, %cst_122 {dimension_numbers = #tpu.dot_dimension_numbers<[1], [0], [0], [1], [0, 0, 1, 1], [], []>} : vector<8x8xf32>, vector<8x256xf32>, vector<8x256xf32> -> vector<8x256xf32>
    %153 = vector.broadcast %151 : vector<8x1xf32> to vector<8x256xf32>
    %154 = arith.addf %152, %153 : vector<8x256xf32>
    %cst_123 = arith.constant 0.000000e+00 : f32
    %155 = vector.broadcast %cst_123 : f32 to vector<8x256xf32>
    %156 = arith.maximumf %154, %155 : vector<8x256xf32>
    %c4_124 = arith.constant 4 : index
    %c0_125 = arith.constant 0 : index
    %c0_126 = arith.constant 0 : index
    %157 = vector.load %arg8[%c4_124, %c0_125, %c0_126] : memref<8x1x8xf32, #tpu.memory_space<vmem>>, vector<1x1x8xf32>
    %158 = vector.shape_cast %157 : vector<1x1x8xf32> to vector<1x8xf32>
    %c4_127 = arith.constant 4 : index
    %c0_128 = arith.constant 0 : index
    %c0_129 = arith.constant 0 : index
    %159 = vector.load %arg9[%c4_127, %c0_128, %c0_129] : memref<8x1x1xf32, #tpu.memory_space<vmem>>, vector<1x1x1xf32>
    %160 = vector.shape_cast %159 : vector<1x1x1xf32> to vector<1x1xf32>
    %cst_130 = arith.constant dense<0.000000e+00> : vector<1x256xf32>
    %161 = tpu.matmul %158, %156, %cst_130 {dimension_numbers = #tpu.dot_dimension_numbers<[1], [0], [0], [1], [0, 0, 1, 1], [], []>} : vector<1x8xf32>, vector<8x256xf32>, vector<1x256xf32> -> vector<1x256xf32>
    %162 = vector.broadcast %160 : vector<1x1xf32> to vector<1x256xf32>
    %163 = arith.addf %161, %162 : vector<1x256xf32>
    %c4_131 = arith.constant 4 : index
    %c0_132 = arith.constant 0 : index
    %164 = vector.load %arg10[%c4_131, %c0_132] : memref<8x256xf32, #tpu.memory_space<vmem>>, vector<1x256xf32>
    tpu.vector_store %arg10[%c4_131, %c0_132], %163 {strides = array<i32>} : memref<8x256xf32, #tpu.memory_space<vmem>>, vector<1x256xf32>,
    %c8_i32_133 = arith.constant 8 : i32
    %165 = arith.muli %arg1, %c8_i32_133 : i32
    %c5_i32 = arith.constant 5 : i32
    %166 = arith.addi %165, %c5_i32 : i32
    %167 = arith.index_cast %166 : i32 to index
    %168 = memref.load %arg2[%167] : memref<8xi32, #tpu.memory_space<smem>>
    %169 = arith.index_cast %168 : i32 to index
    %c0_134 = arith.constant 0 : index
    %c0_135 = arith.constant 0 : index
    %170 = vector.load %arg3[%169, %c0_134, %c0_135] : memref<2x10x256xf32, #tpu.memory_space<vmem>>, vector<1x10x256xf32>
    %171 = vector.shape_cast %170 : vector<1x10x256xf32> to vector<10x256xf32>
    %c5 = arith.constant 5 : index
    %c0_136 = arith.constant 0 : index
    %c0_137 = arith.constant 0 : index
    %172 = vector.load %arg4[%c5, %c0_136, %c0_137] : memref<8x8x10xf32, #tpu.memory_space<vmem>>, vector<1x8x10xf32>
    %173 = vector.shape_cast %172 : vector<1x8x10xf32> to vector<8x10xf32>
    %cst_138 = arith.constant dense<0.000000e+00> : vector<8x256xf32>
    %174 = tpu.matmul %173, %171, %cst_138 {dimension_numbers = #tpu.dot_dimension_numbers<[1], [0], [0], [1], [0, 0, 1, 1], [], []>} : vector<8x10xf32>, vector<10x256xf32>, vector<8x256xf32> -> vector<8x256xf32>
    %c5_139 = arith.constant 5 : index
    %c0_140 = arith.constant 0 : index
    %c0_141 = arith.constant 0 : index
    %175 = vector.load %arg5[%c5_139, %c0_140, %c0_141] : memref<8x8x1xf32, #tpu.memory_space<vmem>>, vector<1x8x1xf32>
    %176 = vector.shape_cast %175 : vector<1x8x1xf32> to vector<8x1xf32>
    %177 = vector.broadcast %176 : vector<8x1xf32> to vector<8x256xf32>
    %178 = arith.addf %174, %177 : vector<8x256xf32>
    %cst_142 = arith.constant 0.000000e+00 : f32
    %179 = vector.broadcast %cst_142 : f32 to vector<8x256xf32>
    %180 = arith.maximumf %178, %179 : vector<8x256xf32>
    %c5_143 = arith.constant 5 : index
    %c0_144 = arith.constant 0 : index
    %c0_145 = arith.constant 0 : index
    %181 = vector.load %arg6[%c5_143, %c0_144, %c0_145] : memref<8x8x8xf32, #tpu.memory_space<vmem>>, vector<1x8x8xf32>
    %182 = vector.shape_cast %181 : vector<1x8x8xf32> to vector<8x8xf32>
    %c5_146 = arith.constant 5 : index
    %c0_147 = arith.constant 0 : index
    %c0_148 = arith.constant 0 : index
    %183 = vector.load %arg7[%c5_146, %c0_147, %c0_148] : memref<8x8x1xf32, #tpu.memory_space<vmem>>, vector<1x8x1xf32>
    %184 = vector.shape_cast %183 : vector<1x8x1xf32> to vector<8x1xf32>
    %cst_149 = arith.constant dense<0.000000e+00> : vector<8x256xf32>
    %185 = tpu.matmul %182, %180, %cst_149 {dimension_numbers = #tpu.dot_dimension_numbers<[1], [0], [0], [1], [0, 0, 1, 1], [], []>} : vector<8x8xf32>, vector<8x256xf32>, vector<8x256xf32> -> vector<8x256xf32>
    %186 = vector.broadcast %184 : vector<8x1xf32> to vector<8x256xf32>
    %187 = arith.addf %185, %186 : vector<8x256xf32>
    %cst_150 = arith.constant 0.000000e+00 : f32
    %188 = vector.broadcast %cst_150 : f32 to vector<8x256xf32>
    %189 = arith.maximumf %187, %188 : vector<8x256xf32>
    %c5_151 = arith.constant 5 : index
    %c0_152 = arith.constant 0 : index
    %c0_153 = arith.constant 0 : index
    %190 = vector.load %arg8[%c5_151, %c0_152, %c0_153] : memref<8x1x8xf32, #tpu.memory_space<vmem>>, vector<1x1x8xf32>
    %191 = vector.shape_cast %190 : vector<1x1x8xf32> to vector<1x8xf32>
    %c5_154 = arith.constant 5 : index
    %c0_155 = arith.constant 0 : index
    %c0_156 = arith.constant 0 : index
    %192 = vector.load %arg9[%c5_154, %c0_155, %c0_156] : memref<8x1x1xf32, #tpu.memory_space<vmem>>, vector<1x1x1xf32>
    %193 = vector.shape_cast %192 : vector<1x1x1xf32> to vector<1x1xf32>
    %cst_157 = arith.constant dense<0.000000e+00> : vector<1x256xf32>
    %194 = tpu.matmul %191, %189, %cst_157 {dimension_numbers = #tpu.dot_dimension_numbers<[1], [0], [0], [1], [0, 0, 1, 1], [], []>} : vector<1x8xf32>, vector<8x256xf32>, vector<1x256xf32> -> vector<1x256xf32>
    %195 = vector.broadcast %193 : vector<1x1xf32> to vector<1x256xf32>
    %196 = arith.addf %194, %195 : vector<1x256xf32>
    %c5_158 = arith.constant 5 : index
    %c0_159 = arith.constant 0 : index
    %197 = vector.load %arg10[%c5_158, %c0_159] : memref<8x256xf32, #tpu.memory_space<vmem>>, vector<1x256xf32>
    tpu.vector_store %arg10[%c5_158, %c0_159], %196 {strides = array<i32>} : memref<8x256xf32, #tpu.memory_space<vmem>>, vector<1x256xf32>,
    %c8_i32_160 = arith.constant 8 : i32
    %198 = arith.muli %arg1, %c8_i32_160 : i32
    %c6_i32 = arith.constant 6 : i32
    %199 = arith.addi %198, %c6_i32 : i32
    %200 = arith.index_cast %199 : i32 to index
    %201 = memref.load %arg2[%200] : memref<8xi32, #tpu.memory_space<smem>>
    %202 = arith.index_cast %201 : i32 to index
    %c0_161 = arith.constant 0 : index
    %c0_162 = arith.constant 0 : index
    %203 = vector.load %arg3[%202, %c0_161, %c0_162] : memref<2x10x256xf32, #tpu.memory_space<vmem>>, vector<1x10x256xf32>
    %204 = vector.shape_cast %203 : vector<1x10x256xf32> to vector<10x256xf32>
    %c6 = arith.constant 6 : index
    %c0_163 = arith.constant 0 : index
    %c0_164 = arith.constant 0 : index
    %205 = vector.load %arg4[%c6, %c0_163, %c0_164] : memref<8x8x10xf32, #tpu.memory_space<vmem>>, vector<1x8x10xf32>
    %206 = vector.shape_cast %205 : vector<1x8x10xf32> to vector<8x10xf32>
    %cst_165 = arith.constant dense<0.000000e+00> : vector<8x256xf32>
    %207 = tpu.matmul %206, %204, %cst_165 {dimension_numbers = #tpu.dot_dimension_numbers<[1], [0], [0], [1], [0, 0, 1, 1], [], []>} : vector<8x10xf32>, vector<10x256xf32>, vector<8x256xf32> -> vector<8x256xf32>
    %c6_166 = arith.constant 6 : index
    %c0_167 = arith.constant 0 : index
    %c0_168 = arith.constant 0 : index
    %208 = vector.load %arg5[%c6_166, %c0_167, %c0_168] : memref<8x8x1xf32, #tpu.memory_space<vmem>>, vector<1x8x1xf32>
    %209 = vector.shape_cast %208 : vector<1x8x1xf32> to vector<8x1xf32>
    %210 = vector.broadcast %209 : vector<8x1xf32> to vector<8x256xf32>
    %211 = arith.addf %207, %210 : vector<8x256xf32>
    %cst_169 = arith.constant 0.000000e+00 : f32
    %212 = vector.broadcast %cst_169 : f32 to vector<8x256xf32>
    %213 = arith.maximumf %211, %212 : vector<8x256xf32>
    %c6_170 = arith.constant 6 : index
    %c0_171 = arith.constant 0 : index
    %c0_172 = arith.constant 0 : index
    %214 = vector.load %arg6[%c6_170, %c0_171, %c0_172] : memref<8x8x8xf32, #tpu.memory_space<vmem>>, vector<1x8x8xf32>
    %215 = vector.shape_cast %214 : vector<1x8x8xf32> to vector<8x8xf32>
    %c6_173 = arith.constant 6 : index
    %c0_174 = arith.constant 0 : index
    %c0_175 = arith.constant 0 : index
    %216 = vector.load %arg7[%c6_173, %c0_174, %c0_175] : memref<8x8x1xf32, #tpu.memory_space<vmem>>, vector<1x8x1xf32>
    %217 = vector.shape_cast %216 : vector<1x8x1xf32> to vector<8x1xf32>
    %cst_176 = arith.constant dense<0.000000e+00> : vector<8x256xf32>
    %218 = tpu.matmul %215, %213, %cst_176 {dimension_numbers = #tpu.dot_dimension_numbers<[1], [0], [0], [1], [0, 0, 1, 1], [], []>} : vector<8x8xf32>, vector<8x256xf32>, vector<8x256xf32> -> vector<8x256xf32>
    %219 = vector.broadcast %217 : vector<8x1xf32> to vector<8x256xf32>
    %220 = arith.addf %218, %219 : vector<8x256xf32>
    %cst_177 = arith.constant 0.000000e+00 : f32
    %221 = vector.broadcast %cst_177 : f32 to vector<8x256xf32>
    %222 = arith.maximumf %220, %221 : vector<8x256xf32>
    %c6_178 = arith.constant 6 : index
    %c0_179 = arith.constant 0 : index
    %c0_180 = arith.constant 0 : index
    %223 = vector.load %arg8[%c6_178, %c0_179, %c0_180] : memref<8x1x8xf32, #tpu.memory_space<vmem>>, vector<1x1x8xf32>
    %224 = vector.shape_cast %223 : vector<1x1x8xf32> to vector<1x8xf32>
    %c6_181 = arith.constant 6 : index
    %c0_182 = arith.constant 0 : index
    %c0_183 = arith.constant 0 : index
    %225 = vector.load %arg9[%c6_181, %c0_182, %c0_183] : memref<8x1x1xf32, #tpu.memory_space<vmem>>, vector<1x1x1xf32>
    %226 = vector.shape_cast %225 : vector<1x1x1xf32> to vector<1x1xf32>
    %cst_184 = arith.constant dense<0.000000e+00> : vector<1x256xf32>
    %227 = tpu.matmul %224, %222, %cst_184 {dimension_numbers = #tpu.dot_dimension_numbers<[1], [0], [0], [1], [0, 0, 1, 1], [], []>} : vector<1x8xf32>, vector<8x256xf32>, vector<1x256xf32> -> vector<1x256xf32>
    %228 = vector.broadcast %226 : vector<1x1xf32> to vector<1x256xf32>
    %229 = arith.addf %227, %228 : vector<1x256xf32>
    %c6_185 = arith.constant 6 : index
    %c0_186 = arith.constant 0 : index
    %230 = vector.load %arg10[%c6_185, %c0_186] : memref<8x256xf32, #tpu.memory_space<vmem>>, vector<1x256xf32>
    tpu.vector_store %arg10[%c6_185, %c0_186], %229 {strides = array<i32>} : memref<8x256xf32, #tpu.memory_space<vmem>>, vector<1x256xf32>,
    %c8_i32_187 = arith.constant 8 : i32
    %231 = arith.muli %arg1, %c8_i32_187 : i32
    %c7_i32 = arith.constant 7 : i32
    %232 = arith.addi %231, %c7_i32 : i32
    %233 = arith.index_cast %232 : i32 to index
    %234 = memref.load %arg2[%233] : memref<8xi32, #tpu.memory_space<smem>>
    %235 = arith.index_cast %234 : i32 to index
    %c0_188 = arith.constant 0 : index
    %c0_189 = arith.constant 0 : index
    %236 = vector.load %arg3[%235, %c0_188, %c0_189] : memref<2x10x256xf32, #tpu.memory_space<vmem>>, vector<1x10x256xf32>
    %237 = vector.shape_cast %236 : vector<1x10x256xf32> to vector<10x256xf32>
    %c7 = arith.constant 7 : index
    %c0_190 = arith.constant 0 : index
    %c0_191 = arith.constant 0 : index
    %238 = vector.load %arg4[%c7, %c0_190, %c0_191] : memref<8x8x10xf32, #tpu.memory_space<vmem>>, vector<1x8x10xf32>
    %239 = vector.shape_cast %238 : vector<1x8x10xf32> to vector<8x10xf32>
    %cst_192 = arith.constant dense<0.000000e+00> : vector<8x256xf32>
    %240 = tpu.matmul %239, %237, %cst_192 {dimension_numbers = #tpu.dot_dimension_numbers<[1], [0], [0], [1], [0, 0, 1, 1], [], []>} : vector<8x10xf32>, vector<10x256xf32>, vector<8x256xf32> -> vector<8x256xf32>
    %c7_193 = arith.constant 7 : index
    %c0_194 = arith.constant 0 : index
    %c0_195 = arith.constant 0 : index
    %241 = vector.load %arg5[%c7_193, %c0_194, %c0_195] : memref<8x8x1xf32, #tpu.memory_space<vmem>>, vector<1x8x1xf32>
    %242 = vector.shape_cast %241 : vector<1x8x1xf32> to vector<8x1xf32>
    %243 = vector.broadcast %242 : vector<8x1xf32> to vector<8x256xf32>
    %244 = arith.addf %240, %243 : vector<8x256xf32>
    %cst_196 = arith.constant 0.000000e+00 : f32
    %245 = vector.broadcast %cst_196 : f32 to vector<8x256xf32>
    %246 = arith.maximumf %244, %245 : vector<8x256xf32>
    %c7_197 = arith.constant 7 : index
    %c0_198 = arith.constant 0 : index
    %c0_199 = arith.constant 0 : index
    %247 = vector.load %arg6[%c7_197, %c0_198, %c0_199] : memref<8x8x8xf32, #tpu.memory_space<vmem>>, vector<1x8x8xf32>
    %248 = vector.shape_cast %247 : vector<1x8x8xf32> to vector<8x8xf32>
    %c7_200 = arith.constant 7 : index
    %c0_201 = arith.constant 0 : index
    %c0_202 = arith.constant 0 : index
    %249 = vector.load %arg7[%c7_200, %c0_201, %c0_202] : memref<8x8x1xf32, #tpu.memory_space<vmem>>, vector<1x8x1xf32>
    %250 = vector.shape_cast %249 : vector<1x8x1xf32> to vector<8x1xf32>
    %cst_203 = arith.constant dense<0.000000e+00> : vector<8x256xf32>
    %251 = tpu.matmul %248, %246, %cst_203 {dimension_numbers = #tpu.dot_dimension_numbers<[1], [0], [0], [1], [0, 0, 1, 1], [], []>} : vector<8x8xf32>, vector<8x256xf32>, vector<8x256xf32> -> vector<8x256xf32>
    %252 = vector.broadcast %250 : vector<8x1xf32> to vector<8x256xf32>
    %253 = arith.addf %251, %252 : vector<8x256xf32>
    %cst_204 = arith.constant 0.000000e+00 : f32
    %254 = vector.broadcast %cst_204 : f32 to vector<8x256xf32>
    %255 = arith.maximumf %253, %254 : vector<8x256xf32>
    %c7_205 = arith.constant 7 : index
    %c0_206 = arith.constant 0 : index
    %c0_207 = arith.constant 0 : index
    %256 = vector.load %arg8[%c7_205, %c0_206, %c0_207] : memref<8x1x8xf32, #tpu.memory_space<vmem>>, vector<1x1x8xf32>
    %257 = vector.shape_cast %256 : vector<1x1x8xf32> to vector<1x8xf32>
    %c7_208 = arith.constant 7 : index
    %c0_209 = arith.constant 0 : index
    %c0_210 = arith.constant 0 : index
    %258 = vector.load %arg9[%c7_208, %c0_209, %c0_210] : memref<8x1x1xf32, #tpu.memory_space<vmem>>, vector<1x1x1xf32>
    %259 = vector.shape_cast %258 : vector<1x1x1xf32> to vector<1x1xf32>
    %cst_211 = arith.constant dense<0.000000e+00> : vector<1x256xf32>
    %260 = tpu.matmul %257, %255, %cst_211 {dimension_numbers = #tpu.dot_dimension_numbers<[1], [0], [0], [1], [0, 0, 1, 1], [], []>} : vector<1x8xf32>, vector<8x256xf32>, vector<1x256xf32> -> vector<1x256xf32>
    %261 = vector.broadcast %259 : vector<1x1xf32> to vector<1x256xf32>
    %262 = arith.addf %260, %261 : vector<1x256xf32>
    %c7_212 = arith.constant 7 : index
    %c0_213 = arith.constant 0 : index
    %263 = vector.load %arg10[%c7_212, %c0_213] : memref<8x256xf32, #tpu.memory_space<vmem>>, vector<1x256xf32>
    tpu.vector_store %arg10[%c7_212, %c0_213], %262 {strides = array<i32>} : memref<8x256xf32, #tpu.memory_space<vmem>>, vector<1x256xf32>,
    return
  }
  func.func @transform_0(%arg0: i32, %arg1: i32, %arg2: memref<8xi32, #tpu.memory_space<smem>>) -> (i32, i32, i32) {
    %c0_i32 = arith.constant 0 : i32
    %c0_i32_0 = arith.constant 0 : i32
    %c0_i32_1 = arith.constant 0 : i32
    return %c0_i32, %c0_i32_0, %arg0 : i32, i32, i32
  }
  func.func @transform_1(%arg0: i32, %arg1: i32, %arg2: memref<8xi32, #tpu.memory_space<smem>>) -> (i32, i32, i32) {
    %c0_i32 = arith.constant 0 : i32
    %c0_i32_0 = arith.constant 0 : i32
    %c0_i32_1 = arith.constant 0 : i32
    return %arg1, %c0_i32, %c0_i32_0 : i32, i32, i32
  }
  func.func @transform_2(%arg0: i32, %arg1: i32, %arg2: memref<8xi32, #tpu.memory_space<smem>>) -> (i32, i32, i32) {
    %c0_i32 = arith.constant 0 : i32
    %c0_i32_0 = arith.constant 0 : i32
    %c0_i32_1 = arith.constant 0 : i32
    return %arg1, %c0_i32, %c0_i32_0 : i32, i32, i32
  }
  func.func @transform_3(%arg0: i32, %arg1: i32, %arg2: memref<8xi32, #tpu.memory_space<smem>>) -> (i32, i32, i32) {
    %c0_i32 = arith.constant 0 : i32
    %c0_i32_0 = arith.constant 0 : i32
    %c0_i32_1 = arith.constant 0 : i32
    return %arg1, %c0_i32, %c0_i32_0 : i32, i32, i32
  }
  func.func @transform_4(%arg0: i32, %arg1: i32, %arg2: memref<8xi32, #tpu.memory_space<smem>>) -> (i32, i32, i32) {
    %c0_i32 = arith.constant 0 : i32
    %c0_i32_0 = arith.constant 0 : i32
    %c0_i32_1 = arith.constant 0 : i32
    return %arg1, %c0_i32, %c0_i32_0 : i32, i32, i32
  }
  func.func @transform_5(%arg0: i32, %arg1: i32, %arg2: memref<8xi32, #tpu.memory_space<smem>>) -> (i32, i32, i32) {
    %c0_i32 = arith.constant 0 : i32
    %c0_i32_0 = arith.constant 0 : i32
    %c0_i32_1 = arith.constant 0 : i32
    return %arg1, %c0_i32, %c0_i32_0 : i32, i32, i32
  }
  func.func @transform_6(%arg0: i32, %arg1: i32, %arg2: memref<8xi32, #tpu.memory_space<smem>>) -> (i32, i32, i32) {
    %c0_i32 = arith.constant 0 : i32
    %c0_i32_0 = arith.constant 0 : i32
    %c0_i32_1 = arith.constant 0 : i32
    return %arg1, %c0_i32, %c0_i32_0 : i32, i32, i32
  }
  func.func @transform_7(%arg0: i32, %arg1: i32, %arg2: memref<8xi32, #tpu.memory_space<smem>>) -> (i32, i32) {
    %c0_i32 = arith.constant 0 : i32
    return %arg1, %arg0 : i32, i32
  }
}

</mosaic_0001>

<llo_original>
// kernel: tpu_custom_call.1
$region0: #{tpu_custom_call.1}
  #allocation0 [shape = 'u32[]', space=smem, size = 0x4, offset = 0x4, fixed_abs, tag = 'smem constant byte address 0x4 - core index']
  #allocation1 [shape = 'u32[144,128]{1,0:T(1,128)}', space=vmem, size = 0x12000, scoped, tag = 'internal scratch']
  #allocation2 [shape = 's32[1]{0}', space=sflag, size = 0x4, scoped, tag = 'scoped memory for tpu_custom_call.1']
  #allocation3 [shape = 'u8[512]{0}', space=smem, size = 0x200, scoped, tag = 'prefetched SMEM operand 0']
  %s0 = inlined_call_operand.vmem [shape: s32[8], index: 0, kind: input, shape index: {}]
  %s1 = inlined_call_operand.vmem [shape: f32[2,10,256], index: 1, kind: input, shape index: {}]
  %s2 = inlined_call_operand.vmem [shape: f32[8,8,10], index: 2, kind: input, shape index: {}]
  %s3 = inlined_call_operand.vmem [shape: f32[8,8,1], index: 3, kind: input, shape index: {}]
  %s4 = inlined_call_operand.vmem [shape: f32[8,8,8], index: 4, kind: input, shape index: {}]
  %s5 = inlined_call_operand.vmem [shape: f32[8,8,1], index: 5, kind: input, shape index: {}]
  %s6 = inlined_call_operand.vmem [shape: f32[8,1,8], index: 6, kind: input, shape index: {}]
  %s7 = inlined_call_operand.vmem [shape: f32[8,1,1], index: 7, kind: input, shape index: {}]
  %s8 = inlined_call_operand.hbm [shape: f32[8,256], index: 8, kind: output, shape index: {}]
  %s9 = sld [smem:[#allocation0]]
  $region38: #{tpu_custom_call.1} parent=0
    _
  %s11 = ssub.s32 1, %s9
  %s12 = scalar_select 0, %s11, %s9
  %s13 = sshll.u32 %s0, 4
  %s14 = int_to_ptr.vmem [resolvable:$true] %s13
  %16 = dma.vmem_to_smem %s14, 16, [#allocation3], [#allocation2]
  %17 = dma.done [#allocation2], 16
  %18 = sfence
  $region1: #{tpu_custom_call.1} parent=0
    #allocation4 [shape = 'u8[8192]{0}', space=vmem, size = 0x2000, scoped, tag = 'output window, operand 0, single buffered']
    #allocation5 [shape = 's32[1]{0}', space=sflag, size = 0x4, scoped, tag = 'scoped memory for tpu_custom_call.1']
    %19 = vsyncpa [#allocation5], 0
    // Predicated region
    $region2: #{tpu_custom_call.1} parent=1 // pred_check
      _
    $region3: #{tpu_custom_call.1} parent=1 // pred_check_branch
      %21 = sbr.rel (0) target = $region5
    $region4: #{tpu_custom_call.1} parent=1 // pred_region
      _
    $region5: #{tpu_custom_call.1} parent=1 // pred_fallthru
      _
    // Predicated region
    $region6: #{tpu_custom_call.1} parent=1 // pred_check
      _
    $region7: #{tpu_custom_call.1} parent=1 // pred_check_branch
      %23 = sbr.rel (0) target = $region9
    $region8: #{tpu_custom_call.1} parent=1 // pred_region
      _
    $region9: #{tpu_custom_call.1} parent=1 // pred_fallthru
      _
    // Predicated region
    $region10: #{tpu_custom_call.1} parent=1 // pred_check
      _
    $region11: #{tpu_custom_call.1} parent=1 // pred_check_branch
      %25 = sbr.rel (0) target = $region13
    $region12: #{tpu_custom_call.1} parent=1 // pred_region
      _
    $region13: #{tpu_custom_call.1} parent=1 // pred_fallthru
      _
    // Predicated region
    $region14: #{tpu_custom_call.1} parent=1 // pred_check
      _
    $region15: #{tpu_custom_call.1} parent=1 // pred_check_branch
      %27 = sbr.rel (0) target = $region17
    $region16: #{tpu_custom_call.1} parent=1 // pred_region
      _
    $region17: #{tpu_custom_call.1} parent=1 // pred_fallthru
      _
    // Predicated region
    $region18: #{tpu_custom_call.1} parent=1 // pred_check
      _
    $region19: #{tpu_custom_call.1} parent=1 // pred_check_branch
      %29 = sbr.rel (0) target = $region21
    $region20: #{tpu_custom_call.1} parent=1 // pred_region
      _
    $region21: #{tpu_custom_call.1} parent=1 // pred_fallthru
      _
    // Predicated region
    $region22: #{tpu_custom_call.1} parent=1 // pred_check
      _
    $region23: #{tpu_custom_call.1} parent=1 // pred_check_branch
      %31 = sbr.rel (0) target = $region25
    $region24: #{tpu_custom_call.1} parent=1 // pred_region
      _
    $region25: #{tpu_custom_call.1} parent=1 // pred_fallthru
      _
    // Predicated region
    $region26: #{tpu_custom_call.1} parent=1 // pred_check
      _
    $region27: #{tpu_custom_call.1} parent=1 // pred_check_branch
      %33 = sbr.rel (0) target = $region29
    $region28: #{tpu_custom_call.1} parent=1 // pred_region
      _
    $region29: #{tpu_custom_call.1} parent=1 // pred_fallthru
      _
    %s34 = smul.u32 0, 8
    %s35 = sld [smem:[#allocation3 + %s34]]
    %s36 = smul.u32 %s35, 4
    %s37 = smul.addr %s36, 8
    %s38 = scalar_lea.vmem %s1, %s37
    %v39 = vld [vmem:[%s38] sm:$0xff]
    %v40 = vld [vmem:[%s38 + $0x8] sm:$0xff]
    %v41 = vld [vmem:[%s38 + $0x10] sm:$0x3]
    %v42 = vld [vmem:[%s38 + $0x18] sm:$0x3]
    %v43 = vld [vmem:[%s2] sm:$0xff]
    %v44 = vld [vmem:[%s3] sm:$0xff]
    %46 = vset.pattern.permute.xlu0 0
    %47 = vperm.xlu0 %46, %v44
    %v48 = vpop.permute.xlu0 %47
    %vm50 = vcmask 80896
    %v52 = vsel %vm50, %v43, 0
    %vm54 = vcmask 1041408
    %v56 = vsel %vm54, %v41, 0
    %v59 = vsel %vm54, %v42, 0
    %61 = vmatprep.subr.mxu0 %v40
    %62 = vmatpush1.msra.mxu0 %v39
    %63 = vmatprep.subr.mxu0 %v59
    %64 = vmatpush1.msra.mxu0 %v56
    %65 = vmatprep.subr.mxu0 0.0
    %66 = vmatpush1.msra.mxu0 0.0
    %67 = vmatprep.subr.mxu0 0.0
    %68 = vmatpush1.msra.mxu0 0.0
    %69 = vmatprep.subr.mxu0 0.0
    %70 = vmatpush1.msra.mxu0 0.0
    %71 = vmatprep.subr.mxu0 0.0
    %72 = vmatpush1.msra.mxu0 0.0
    %73 = vmatprep.subr.mxu0 0.0
    %74 = vmatpush1.msra.mxu0 0.0
    %75 = vmatprep.subr.mxu0 0.0
    %76 = vmatpush1.msra.mxu0 0.0
    %77 = vmatprep.subr.mxu0 0.0
    %78 = vmatpush1.msra.mxu0 0.0
    %79 = vmatprep.subr.mxu0 0.0
    %80 = vmatpush1.msra.mxu0 0.0
    %81 = vmatprep.subr.mxu0 0.0
    %82 = vmatpush1.msra.mxu0 0.0
    %83 = vmatprep.subr.mxu0 0.0
    %84 = vmatpush1.msra.mxu0 0.0
    %85 = vmatprep.subr.mxu0 0.0
    %86 = vmatpush1.msra.mxu0 0.0
    %87 = vmatprep.subr.mxu0 0.0
    %88 = vmatpush1.msra.mxu0 0.0
    %89 = vmatprep.subr.mxu0 0.0
    %90 = vmatpush1.msra.mxu0 0.0
    %91 = vmatprep.subr.mxu0 0.0
    %92 = vmatpush1.msra.mxu0 0.0
    %93 = vmatprep.subr.mxu0 0.0
    %94 = vmatpush1.msra.mxu0 0.0
    %95 = vmatprep.subr.mxu0 0.0
    %96 = vmatpush1.msra.mxu0 0.0
    %97 = vmatprep.subr.mxu0 0.0
    %98 = vmatpush1.msra.mxu0 0.0
    %99 = vmatprep.subr.mxu0 0.0
    %100 = vmatpush1.msra.mxu0 0.0
    %101 = vmatprep.subr.mxu0 0.0
    %102 = vmatpush1.msra.mxu0 0.0
    %103 = vmatprep.subr.mxu0 0.0
    %104 = vmatpush1.msra.mxu0 0.0
    %105 = vmatprep.subr.mxu0 0.0
    %106 = vmatpush1.msra.mxu0 0.0
    %107 = vmatprep.subr.mxu0 0.0
    %108 = vmatpush1.msra.mxu0 0.0
    %109 = vmatprep.subr.mxu0 0.0
    %110 = vmatpush1.msra.mxu0 0.0
    %111 = vmatprep.subr.mxu0 0.0
    %112 = vmatpush1.msra.mxu0 0.0
    %113 = vmatprep.subr.mxu0 0.0
    %114 = vmatpush1.msra.mxu0 0.0
    %115 = vmatprep.subr.mxu0 0.0
    %116 = vmatpush1.msra.mxu0 0.0
    %117 = vmatprep.subr.mxu0 0.0
    %118 = vmatpush1.msra.mxu0 0.0
    %119 = vmatprep.subr.mxu0 0.0
    %120 = vmatpush1.msra.mxu0 0.0
    %121 = vmatprep.subr.mxu0 0.0
    %122 = vmatpush1.msra.mxu0 0.0
    %123 = vmatprep.subr.mxu0 0.0
    %124 = vmatpush1.msra.mxu0 0.0
    %125 = vmatprep.mubr.f32.mxu0 0.0
    %126 = vmatmul.mubr.f32.gmra.mrb[0].mxu0 %v52
    %v127 = vpop.f32.mrb[0].mxu0
    %v128 = vadd.f32 %v48, %v127
    %v129 = vpop.f32.mrb[0].mxu0
    %v130 = vadd.f32 %v48, %v129
    %131 = vdwg.mxu0
    %v132 = vmax.f32 %v128, 0.0
    %v133 = vmax.f32 %v130, 0.0
    %v134 = vld [vmem:[%s4] sm:$0xff]
    %v135 = vld [vmem:[%s5] sm:$0xff]
    %137 = vset.pattern.permute.xlu0 0
    %138 = vperm.xlu0 %137, %v135
    %v139 = vpop.permute.xlu0 %138
    %vm141 = vcmask 64512
    %v143 = vsel %vm141, %v134, 0
    %145 = vmatprep.subr.mxu0 %v133
    %146 = vmatpush1.msra.mxu0 %v132
    %147 = vmatprep.subr.mxu0 0.0
    %148 = vmatpush1.msra.mxu0 0.0
    %149 = vmatprep.subr.mxu0 0.0
    %150 = vmatpush1.msra.mxu0 0.0
    %151 = vmatprep.subr.mxu0 0.0
    %152 = vmatpush1.msra.mxu0 0.0
    %153 = vmatprep.subr.mxu0 0.0
    %154 = vmatpush1.msra.mxu0 0.0
    %155 = vmatprep.subr.mxu0 0.0
    %156 = vmatpush1.msra.mxu0 0.0
    %157 = vmatprep.subr.mxu0 0.0
    %158 = vmatpush1.msra.mxu0 0.0
    %159 = vmatprep.subr.mxu0 0.0
    %160 = vmatpush1.msra.mxu0 0.0
    %161 = vmatprep.subr.mxu0 0.0
    %162 = vmatpush1.msra.mxu0 0.0
    %163 = vmatprep.subr.mxu0 0.0
    %164 = vmatpush1.msra.mxu0 0.0
    %165 = vmatprep.subr.mxu0 0.0
    %166 = vmatpush1.msra.mxu0 0.0
    %167 = vmatprep.subr.mxu0 0.0
    %168 = vmatpush1.msra.mxu0 0.0
    %169 = vmatprep.subr.mxu0 0.0
    %170 = vmatpush1.msra.mxu0 0.0
    %171 = vmatprep.subr.mxu0 0.0
    %172 = vmatpush1.msra.mxu0 0.0
    %173 = vmatprep.subr.mxu0 0.0
    %174 = vmatpush1.msra.mxu0 0.0
    %175 = vmatprep.subr.mxu0 0.0
    %176 = vmatpush1.msra.mxu0 0.0
    %177 = vmatprep.subr.mxu0 0.0
    %178 = vmatpush1.msra.mxu0 0.0
    %179 = vmatprep.subr.mxu0 0.0
    %180 = vmatpush1.msra.mxu0 0.0
    %181 = vmatprep.subr.mxu0 0.0
    %182 = vmatpush1.msra.mxu0 0.0
    %183 = vmatprep.subr.mxu0 0.0
    %184 = vmatpush1.msra.mxu0 0.0
    %185 = vmatprep.subr.mxu0 0.0
    %186 = vmatpush1.msra.mxu0 0.0
    %187 = vmatprep.subr.mxu0 0.0
    %188 = vmatpush1.msra.mxu0 0.0
    %189 = vmatprep.subr.mxu0 0.0
    %190 = vmatpush1.msra.mxu0 0.0
    %191 = vmatprep.subr.mxu0 0.0
    %192 = vmatpush1.msra.mxu0 0.0
    %193 = vmatprep.subr.mxu0 0.0
    %194 = vmatpush1.msra.mxu0 0.0
    %195 = vmatprep.subr.mxu0 0.0
    %196 = vmatpush1.msra.mxu0 0.0
    %197 = vmatprep.subr.mxu0 0.0
    %198 = vmatpush1.msra.mxu0 0.0
    %199 = vmatprep.subr.mxu0 0.0
    %200 = vmatpush1.msra.mxu0 0.0
    %201 = vmatprep.subr.mxu0 0.0
    %202 = vmatpush1.msra.mxu0 0.0
    %203 = vmatprep.subr.mxu0 0.0
    %204 = vmatpush1.msra.mxu0 0.0
    %205 = vmatprep.subr.mxu0 0.0
    %206 = vmatpush1.msra.mxu0 0.0
    %207 = vmatprep.subr.mxu0 0.0
    %208 = vmatpush1.msra.mxu0 0.0
    %209 = vmatprep.mubr.f32.mxu0 0.0
    %210 = vmatmul.mubr.f32.gmra.mrb[0].mxu0 %v143
    %v211 = vpop.f32.mrb[0].mxu0
    %v212 = vadd.f32 %v139, %v211
    %v213 = vpop.f32.mrb[0].mxu0
    %v214 = vadd.f32 %v139, %v213
    %215 = vdwg.mxu0
    %v216 = vmax.f32 %v212, 0.0
    %v217 = vmax.f32 %v214, 0.0
    %v218 = vld [vmem:[%s6] sm:$0x1]
    %v219 = vld [vmem:[%s7] sm:$0x1]
    %221 = vset.pattern.permute.xlu0 0
    %222 = vperm.xlu0 %221, %v219
    %v223 = vpop.permute.xlu0 %222
    %v225 = vlaneseq
    %v226 = vshrl.u32 %v225, 7
    %v227 = vsub.s32 0, %v226
    %v228 = vrot.slane %v223, %v227
    %v230 = vsel %vm141, %v218, 0
    %232 = vmatprep.subr.mxu0 %v217
    %233 = vmatpush1.msra.mxu0 %v216
    %234 = vmatprep.subr.mxu0 0.0
    %235 = vmatpush1.msra.mxu0 0.0
    %236 = vmatprep.subr.mxu0 0.0
    %237 = vmatpush1.msra.mxu0 0.0
    %238 = vmatprep.subr.mxu0 0.0
    %239 = vmatpush1.msra.mxu0 0.0
    %240 = vmatprep.subr.mxu0 0.0
    %241 = vmatpush1.msra.mxu0 0.0
    %242 = vmatprep.subr.mxu0 0.0
    %243 = vmatpush1.msra.mxu0 0.0
    %244 = vmatprep.subr.mxu0 0.0
    %245 = vmatpush1.msra.mxu0 0.0
    %246 = vmatprep.subr.mxu0 0.0
    %247 = vmatpush1.msra.mxu0 0.0
    %248 = vmatprep.subr.mxu0 0.0
    %249 = vmatpush1.msra.mxu0 0.0
    %250 = vmatprep.subr.mxu0 0.0
    %251 = vmatpush1.msra.mxu0 0.0
    %252 = vmatprep.subr.mxu0 0.0
    %253 = vmatpush1.msra.mxu0 0.0
    %254 = vmatprep.subr.mxu0 0.0
    %255 = vmatpush1.msra.mxu0 0.0
    %256 = vmatprep.subr.mxu0 0.0
    %257 = vmatpush1.msra.mxu0 0.0
    %258 = vmatprep.subr.mxu0 0.0
    %259 = vmatpush1.msra.mxu0 0.0
    %260 = vmatprep.subr.mxu0 0.0
    %261 = vmatpush1.msra.mxu0 0.0
    %262 = vmatprep.subr.mxu0 0.0
    %263 = vmatpush1.msra.mxu0 0.0
    %264 = vmatprep.subr.mxu0 0.0
    %265 = vmatpush1.msra.mxu0 0.0
    %266 = vmatprep.subr.mxu0 0.0
    %267 = vmatpush1.msra.mxu0 0.0
    %268 = vmatprep.subr.mxu0 0.0
    %269 = vmatpush1.msra.mxu0 0.0
    %270 = vmatprep.subr.mxu0 0.0
    %271 = vmatpush1.msra.mxu0 0.0
    %272 = vmatprep.subr.mxu0 0.0
    %273 = vmatpush1.msra.mxu0 0.0
    %274 = vmatprep.subr.mxu0 0.0
    %275 = vmatpush1.msra.mxu0 0.0
    %276 = vmatprep.subr.mxu0 0.0
    %277 = vmatpush1.msra.mxu0 0.0
    %278 = vmatprep.subr.mxu0 0.0
    %279 = vmatpush1.msra.mxu0 0.0
    %280 = vmatprep.subr.mxu0 0.0
    %281 = vmatpush1.msra.mxu0 0.0
    %282 = vmatprep.subr.mxu0 0.0
    %283 = vmatpush1.msra.mxu0 0.0
    %284 = vmatprep.subr.mxu0 0.0
    %285 = vmatpush1.msra.mxu0 0.0
    %286 = vmatprep.subr.mxu0 0.0
    %287 = vmatpush1.msra.mxu0 0.0
    %288 = vmatprep.subr.mxu0 0.0
    %289 = vmatpush1.msra.mxu0 0.0
    %290 = vmatprep.subr.mxu0 0.0
    %291 = vmatpush1.msra.mxu0 0.0
    %292 = vmatprep.subr.mxu0 0.0
    %293 = vmatpush1.msra.mxu0 0.0
    %294 = vmatprep.subr.mxu0 0.0
    %295 = vmatpush1.msra.mxu0 0.0
    %296 = vmatprep.mubr.f32.mxu0 0.0
    %297 = vmatmul.mubr.f32.gmra.mrb[0].mxu0 %v230
    %v298 = vpop.f32.mrb[0].mxu0
    %v299 = vadd.f32 %v228, %v298
    %v300 = vpop.f32.mrb[0].mxu0
    %v301 = vadd.f32 %v228, %v300
    %302 = vdwg.mxu0
    %v305 = vcombine.low %v299, %v301
    %v307 = vunpack.c.l.s4 1966171168
    %v308 = vunpack.c.0.s8 %v307
    %v309 = vlaneseq
    %v310 = vshrl.u32 %v309, 7
    %v311 = vsub.s32 %v308, %v310
    %v312 = vrot.slane %v305, %v311
    %v314 = vunpack.c.l.s4 1966171168
    %v315 = vunpack.c.0.s8 %v314
    %v316 = vlaneseq
    %v317 = vshrl.u32 %v316, 7
    %v318 = vsub.s32 %v315, %v317
    %v319 = vrot.slane %v312, %v318
    %v321 = vlaneseq
    %vm322 = vcmp.ge.s32.totalorder %v321, 0
    %vm323 = vcmp.lt.s32.totalorder %v321, 256
    %vm324 = vmand %vm322, %vm323
    %325 = vst.msk [vmem:[#allocation4] ss:$8 sm:$0x3] %vm324, %v319
    %326 = vst.msk [vmem:[#allocation4] ss:$8 sm:$0x0] %vm324, %v319
    %s327 = sadd.s32 %s34, 1
    %s328 = sld [smem:[#allocation3 + %s327]]
    %s329 = smul.u32 %s328, 4
    %s330 = smul.addr %s329, 8
    %s331 = scalar_lea.vmem %s1, %s330
    %v332 = vld [vmem:[%s331] sm:$0xff]
    %v333 = vld [vmem:[%s331 + $0x8] sm:$0xff]
    %v334 = vld [vmem:[%s331 + $0x10] sm:$0x3]
    %v335 = vld [vmem:[%s331 + $0x18] sm:$0x3]
    %s336 = scalar_lea.vmem %s2, 8
    %v337 = vld [vmem:[%s336] sm:$0xff]
    %s338 = scalar_lea.vmem %s3, 8
    %v339 = vld [vmem:[%s338] sm:$0xff]
    %341 = vset.pattern.permute.xlu0 0
    %342 = vperm.xlu0 %341, %v339
    %v343 = vpop.permute.xlu0 %342
    %v346 = vsel %vm50, %v337, 0
    %v349 = vsel %vm54, %v334, 0
    %v352 = vsel %vm54, %v335, 0
    %354 = vmatprep.subr.mxu0 %v333
    %355 = vmatpush1.msra.mxu0 %v332
    %356 = vmatprep.subr.mxu0 %v352
    %357 = vmatpush1.msra.mxu0 %v349
    %358 = vmatprep.subr.mxu0 0.0
    %359 = vmatpush1.msra.mxu0 0.0
    %360 = vmatprep.subr.mxu0 0.0
    %361 = vmatpush1.msra.mxu0 0.0
    %362 = vmatprep.subr.mxu0 0.0
    %363 = vmatpush1.msra.mxu0 0.0
    %364 = vmatprep.subr.mxu0 0.0
    %365 = vmatpush1.msra.mxu0 0.0
    %366 = vmatprep.subr.mxu0 0.0
    %367 = vmatpush1.msra.mxu0 0.0
    %368 = vmatprep.subr.mxu0 0.0
    %369 = vmatpush1.msra.mxu0 0.0
    %370 = vmatprep.subr.mxu0 0.0
    %371 = vmatpush1.msra.mxu0 0.0
    %372 = vmatprep.subr.mxu0 0.0
    %373 = vmatpush1.msra.mxu0 0.0
    %374 = vmatprep.subr.mxu0 0.0
    %375 = vmatpush1.msra.mxu0 0.0
    %376 = vmatprep.subr.mxu0 0.0
    %377 = vmatpush1.msra.mxu0 0.0
    %378 = vmatprep.subr.mxu0 0.0
    %379 = vmatpush1.msra.mxu0 0.0
    %380 = vmatprep.subr.mxu0 0.0
    %381 = vmatpush1.msra.mxu0 0.0
    %382 = vmatprep.subr.mxu0 0.0
    %383 = vmatpush1.msra.mxu0 0.0
    %384 = vmatprep.subr.mxu0 0.0
    %385 = vmatpush1.msra.mxu0 0.0
    %386 = vmatprep.subr.mxu0 0.0
    %387 = vmatpush1.msra.mxu0 0.0
    %388 = vmatprep.subr.mxu0 0.0
    %389 = vmatpush1.msra.mxu0 0.0
    %390 = vmatprep.subr.mxu0 0.0
    %391 = vmatpush1.msra.mxu0 0.0
    %392 = vmatprep.subr.mxu0 0.0
    %393 = vmatpush1.msra.mxu0 0.0
    %394 = vmatprep.subr.mxu0 0.0
    %395 = vmatpush1.msra.mxu0 0.0
    %396 = vmatprep.subr.mxu0 0.0
    %397 = vmatpush1.msra.mxu0 0.0
    %398 = vmatprep.subr.mxu0 0.0
    %399 = vmatpush1.msra.mxu0 0.0
    %400 = vmatprep.subr.mxu0 0.0
    %401 = vmatpush1.msra.mxu0 0.0
    %402 = vmatprep.subr.mxu0 0.0
    %403 = vmatpush1.msra.mxu0 0.0
    %404 = vmatprep.subr.mxu0 0.0
    %405 = vmatpush1.msra.mxu0 0.0
    %406 = vmatprep.subr.mxu0 0.0
    %407 = vmatpush1.msra.mxu0 0.0
    %408 = vmatprep.subr.mxu0 0.0
    %409 = vmatpush1.msra.mxu0 0.0
    %410 = vmatprep.subr.mxu0 0.0
    %411 = vmatpush1.msra.mxu0 0.0
    %412 = vmatprep.subr.mxu0 0.0
    %413 = vmatpush1.msra.mxu0 0.0
    %414 = vmatprep.subr.mxu0 0.0
    %415 = vmatpush1.msra.mxu0 0.0
    %416 = vmatprep.subr.mxu0 0.0
    %417 = vmatpush1.msra.mxu0 0.0
    %418 = vmatprep.mubr.f32.mxu0 0.0
    %419 = vmatmul.mubr.f32.gmra.mrb[0].mxu0 %v346
    %v420 = vpop.f32.mrb[0].mxu0
    %v421 = vadd.f32 %v343, %v420
    %v422 = vpop.f32.mrb[0].mxu0
    %v423 = vadd.f32 %v343, %v422
    %424 = vdwg.mxu0
    %v425 = vmax.f32 %v421, 0.0
    %v426 = vmax.f32 %v423, 0.0
    %s427 = scalar_lea.vmem %s4, 8
    %v428 = vld [vmem:[%s427] sm:$0xff]
    %s429 = scalar_lea.vmem %s5, 8
    %v430 = vld [vmem:[%s429] sm:$0xff]
    %432 = vset.pattern.permute.xlu0 0
    %433 = vperm.xlu0 %432, %v430
    %v434 = vpop.permute.xlu0 %433
    %v437 = vsel %vm141, %v428, 0
    %439 = vmatprep.subr.mxu0 %v426
    %440 = vmatpush1.msra.mxu0 %v425
    %441 = vmatprep.subr.mxu0 0.0
    %442 = vmatpush1.msra.mxu0 0.0
    %443 = vmatprep.subr.mxu0 0.0
    %444 = vmatpush1.msra.mxu0 0.0
    %445 = vmatprep.subr.mxu0 0.0
    %446 = vmatpush1.msra.mxu0 0.0
    %447 = vmatprep.subr.mxu0 0.0
    %448 = vmatpush1.msra.mxu0 0.0
    %449 = vmatprep.subr.mxu0 0.0
    %450 = vmatpush1.msra.mxu0 0.0
    %451 = vmatprep.subr.mxu0 0.0
    %452 = vmatpush1.msra.mxu0 0.0
    %453 = vmatprep.subr.mxu0 0.0
    %454 = vmatpush1.msra.mxu0 0.0
    %455 = vmatprep.subr.mxu0 0.0
    %456 = vmatpush1.msra.mxu0 0.0
    %457 = vmatprep.subr.mxu0 0.0
    %458 = vmatpush1.msra.mxu0 0.0
    %459 = vmatprep.subr.mxu0 0.0
    %460 = vmatpush1.msra.mxu0 0.0
    %461 = vmatprep.subr.mxu0 0.0
    %462 = vmatpush1.msra.mxu0 0.0
    %463 = vmatprep.subr.mxu0 0.0
    %464 = vmatpush1.msra.mxu0 0.0
    %465 = vmatprep.subr.mxu0 0.0
    %466 = vmatpush1.msra.mxu0 0.0
    %467 = vmatprep.subr.mxu0 0.0
    %468 = vmatpush1.msra.mxu0 0.0
    %469 = vmatprep.subr.mxu0 0.0
    %470 = vmatpush1.msra.mxu0 0.0
    %471 = vmatprep.subr.mxu0 0.0
    %472 = vmatpush1.msra.mxu0 0.0
    %473 = vmatprep.subr.mxu0 0.0
    %474 = vmatpush1.msra.mxu0 0.0
    %475 = vmatprep.subr.mxu0 0.0
    %476 = vmatpush1.msra.mxu0 0.0
    %477 = vmatprep.subr.mxu0 0.0
    %478 = vmatpush1.msra.mxu0 0.0
    %479 = vmatprep.subr.mxu0 0.0
    %480 = vmatpush1.msra.mxu0 0.0
    %481 = vmatprep.subr.mxu0 0.0
    %482 = vmatpush1.msra.mxu0 0.0
    %483 = vmatprep.subr.mxu0 0.0
    %484 = vmatpush1.msra.mxu0 0.0
    %485 = vmatprep.subr.mxu0 0.0
    %486 = vmatpush1.msra.mxu0 0.0
    %487 = vmatprep.subr.mxu0 0.0
    %488 = vmatpush1.msra.mxu0 0.0
    %489 = vmatprep.subr.mxu0 0.0
    %490 = vmatpush1.msra.mxu0 0.0
    %491 = vmatprep.subr.mxu0 0.0
    %492 = vmatpush1.msra.mxu0 0.0
    %493 = vmatprep.subr.mxu0 0.0
    %494 = vmatpush1.msra.mxu0 0.0
    %495 = vmatprep.subr.mxu0 0.0
    %496 = vmatpush1.msra.mxu0 0.0
    %497 = vmatprep.subr.mxu0 0.0
    %498 = vmatpush1.msra.mxu0 0.0
    %499 = vmatprep.subr.mxu0 0.0
    %500 = vmatpush1.msra.mxu0 0.0
    %501 = vmatprep.subr.mxu0 0.0
    %502 = vmatpush1.msra.mxu0 0.0
    %503 = vmatprep.mubr.f32.mxu0 0.0
    %504 = vmatmul.mubr.f32.gmra.mrb[0].mxu0 %v437
    %v505 = vpop.f32.mrb[0].mxu0
    %v506 = vadd.f32 %v434, %v505
    %v507 = vpop.f32.mrb[0].mxu0
    %v508 = vadd.f32 %v434, %v507
    %509 = vdwg.mxu0
    %v510 = vmax.f32 %v506, 0.0
    %v511 = vmax.f32 %v508, 0.0
    %s512 = scalar_lea.vmem %s6, 1
    %v513 = vld [vmem:[%s512] sm:$0x1]
    %s514 = scalar_lea.vmem %s7, 1
    %v515 = vld [vmem:[%s514] sm:$0x1]
    %517 = vset.pattern.permute.xlu0 0
    %518 = vperm.xlu0 %517, %v515
    %v519 = vpop.permute.xlu0 %518
    %v521 = vlaneseq
    %v522 = vshrl.u32 %v521, 7
    %v523 = vsub.s32 0, %v522
    %v524 = vrot.slane %v519, %v523
    %v526 = vsel %vm141, %v513, 0
    %528 = vmatprep.subr.mxu0 %v511
    %529 = vmatpush1.msra.mxu0 %v510
    %530 = vmatprep.subr.mxu0 0.0
    %531 = vmatpush1.msra.mxu0 0.0
    %532 = vmatprep.subr.mxu0 0.0
    %533 = vmatpush1.msra.mxu0 0.0
    %534 = vmatprep.subr.mxu0 0.0
    %535 = vmatpush1.msra.mxu0 0.0
    %536 = vmatprep.subr.mxu0 0.0
    %537 = vmatpush1.msra.mxu0 0.0
    %538 = vmatprep.subr.mxu0 0.0
    %539 = vmatpush1.msra.mxu0 0.0
    %540 = vmatprep.subr.mxu0 0.0
    %541 = vmatpush1.msra.mxu0 0.0
    %542 = vmatprep.subr.mxu0 0.0
    %543 = vmatpush1.msra.mxu0 0.0
    %544 = vmatprep.subr.mxu0 0.0
    %545 = vmatpush1.msra.mxu0 0.0
    %546 = vmatprep.subr.mxu0 0.0
    %547 = vmatpush1.msra.mxu0 0.0
    %548 = vmatprep.subr.mxu0 0.0
    %549 = vmatpush1.msra.mxu0 0.0
    %550 = vmatprep.subr.mxu0 0.0
    %551 = vmatpush1.msra.mxu0 0.0
    %552 = vmatprep.subr.mxu0 0.0
    %553 = vmatpush1.msra.mxu0 0.0
    %554 = vmatprep.subr.mxu0 0.0
    %555 = vmatpush1.msra.mxu0 0.0
    %556 = vmatprep.subr.mxu0 0.0
    %557 = vmatpush1.msra.mxu0 0.0
    %558 = vmatprep.subr.mxu0 0.0
    %559 = vmatpush1.msra.mxu0 0.0
    %560 = vmatprep.subr.mxu0 0.0
    %561 = vmatpush1.msra.mxu0 0.0
    %562 = vmatprep.subr.mxu0 0.0
    %563 = vmatpush1.msra.mxu0 0.0
    %564 = vmatprep.subr.mxu0 0.0
    %565 = vmatpush1.msra.mxu0 0.0
    %566 = vmatprep.subr.mxu0 0.0
    %567 = vmatpush1.msra.mxu0 0.0
    %568 = vmatprep.subr.mxu0 0.0
    %569 = vmatpush1.msra.mxu0 0.0
    %570 = vmatprep.subr.mxu0 0.0
    %571 = vmatpush1.msra.mxu0 0.0
    %572 = vmatprep.subr.mxu0 0.0
    %573 = vmatpush1.msra.mxu0 0.0
    %574 = vmatprep.subr.mxu0 0.0
    %575 = vmatpush1.msra.mxu0 0.0
    %576 = vmatprep.subr.mxu0 0.0
    %577 = vmatpush1.msra.mxu0 0.0
    %578 = vmatprep.subr.mxu0 0.0
    %579 = vmatpush1.msra.mxu0 0.0
    %580 = vmatprep.subr.mxu0 0.0
    %581 = vmatpush1.msra.mxu0 0.0
    %582 = vmatprep.subr.mxu0 0.0
    %583 = vmatpush1.msra.mxu0 0.0
    %584 = vmatprep.subr.mxu0 0.0
    %585 = vmatpush1.msra.mxu0 0.0
    %586 = vmatprep.subr.mxu0 0.0
    %587 = vmatpush1.msra.mxu0 0.0
    %588 = vmatprep.subr.mxu0 0.0
    %589 = vmatpush1.msra.mxu0 0.0
    %590 = vmatprep.subr.mxu0 0.0
    %591 = vmatpush1.msra.mxu0 0.0
    %592 = vmatprep.mubr.f32.mxu0 0.0
    %593 = vmatmul.mubr.f32.gmra.mrb[0].mxu0 %v526
    %v594 = vpop.f32.mrb[0].mxu0
    %v595 = vadd.f32 %v524, %v594
    %v596 = vpop.f32.mrb[0].mxu0
    %v597 = vadd.f32 %v524, %v596
    %598 = vdwg.mxu0
    %v601 = vcombine.low %v595, %v597
    %v603 = vunpack.c.l.s4 1966171168
    %v604 = vunpack.c.0.s8 %v603
    %v605 = vlaneseq
    %v606 = vshrl.u32 %v605, 7
    %v607 = vsub.s32 %v604, %v606
    %v608 = vrot.slane %v601, %v607
    %v610 = vunpack.c.l.s4 1966171168
    %v611 = vunpack.c.0.s8 %v610
    %v612 = vlaneseq
    %v613 = vshrl.u32 %v612, 7
    %v614 = vsub.s32 %v611, %v613
    %v615 = vrot.slane %v608, %v614
    %s617 = scalar_lea.vmem [#allocation4], 1
    %618 = vst.msk [vmem:[%s617] ss:$8 sm:$0x3] %vm324, %v615
    %619 = vst.msk [vmem:[%s617] ss:$8 sm:$0x0] %vm324, %v615
    %s620 = sadd.s32 %s34, 2
    %s621 = sld [smem:[#allocation3 + %s620]]
    %s622 = smul.u32 %s621, 4
    %s623 = smul.addr %s622, 8
    %s624 = scalar_lea.vmem %s1, %s623
    %v625 = vld [vmem:[%s624] sm:$0xff]
    %v626 = vld [vmem:[%s624 + $0x8] sm:$0xff]
    %v627 = vld [vmem:[%s624 + $0x10] sm:$0x3]
    %v628 = vld [vmem:[%s624 + $0x18] sm:$0x3]
    %s629 = scalar_lea.vmem %s2, 16
    %v630 = vld [vmem:[%s629] sm:$0xff]
    %s631 = scalar_lea.vmem %s3, 16
    %v632 = vld [vmem:[%s631] sm:$0xff]
    %634 = vset.pattern.permute.xlu0 0
    %635 = vperm.xlu0 %634, %v632
    %v636 = vpop.permute.xlu0 %635
    %v639 = vsel %vm50, %v630, 0
    %v642 = vsel %vm54, %v627, 0
    %v645 = vsel %vm54, %v628, 0
    %647 = vmatprep.subr.mxu0 %v626
    %648 = vmatpush1.msra.mxu0 %v625
    %649 = vmatprep.subr.mxu0 %v645
    %650 = vmatpush1.msra.mxu0 %v642
    %651 = vmatprep.subr.mxu0 0.0
    %652 = vmatpush1.msra.mxu0 0.0
    %653 = vmatprep.subr.mxu0 0.0
    %654 = vmatpush1.msra.mxu0 0.0
    %655 = vmatprep.subr.mxu0 0.0
    %656 = vmatpush1.msra.mxu0 0.0
    %657 = vmatprep.subr.mxu0 0.0
    %658 = vmatpush1.msra.mxu0 0.0
    %659 = vmatprep.subr.mxu0 0.0
    %660 = vmatpush1.msra.mxu0 0.0
    %661 = vmatprep.subr.mxu0 0.0
    %662 = vmatpush1.msra.mxu0 0.0
    %663 = vmatprep.subr.mxu0 0.0
    %664 = vmatpush1.msra.mxu0 0.0
    %665 = vmatprep.subr.mxu0 0.0
    %666 = vmatpush1.msra.mxu0 0.0
    %667 = vmatprep.subr.mxu0 0.0
    %668 = vmatpush1.msra.mxu0 0.0
    %669 = vmatprep.subr.mxu0 0.0
    %670 = vmatpush1.msra.mxu0 0.0
    %671 = vmatprep.subr.mxu0 0.0
    %672 = vmatpush1.msra.mxu0 0.0
    %673 = vmatprep.subr.mxu0 0.0
    %674 = vmatpush1.msra.mxu0 0.0
    %675 = vmatprep.subr.mxu0 0.0
    %676 = vmatpush1.msra.mxu0 0.0
    %677 = vmatprep.subr.mxu0 0.0
    %678 = vmatpush1.msra.mxu0 0.0
    %679 = vmatprep.subr.mxu0 0.0
    %680 = vmatpush1.msra.mxu0 0.0
    %681 = vmatprep.subr.mxu0 0.0
    %682 = vmatpush1.msra.mxu0 0.0
    %683 = vmatprep.subr.mxu0 0.0
    %684 = vmatpush1.msra.mxu0 0.0
    %685 = vmatprep.subr.mxu0 0.0
    %686 = vmatpush1.msra.mxu0 0.0
    %687 = vmatprep.subr.mxu0 0.0
    %688 = vmatpush1.msra.mxu0 0.0
    %689 = vmatprep.subr.mxu0 0.0
    %690 = vmatpush1.msra.mxu0 0.0
    %691 = vmatprep.subr.mxu0 0.0
    %692 = vmatpush1.msra.mxu0 0.0
    %693 = vmatprep.subr.mxu0 0.0
    %694 = vmatpush1.msra.mxu0 0.0
    %695 = vmatprep.subr.mxu0 0.0
    %696 = vmatpush1.msra.mxu0 0.0
    %697 = vmatprep.subr.mxu0 0.0
    %698 = vmatpush1.msra.mxu0 0.0
    %699 = vmatprep.subr.mxu0 0.0
    %700 = vmatpush1.msra.mxu0 0.0
    %701 = vmatprep.subr.mxu0 0.0
    %702 = vmatpush1.msra.mxu0 0.0
    %703 = vmatprep.subr.mxu0 0.0
    %704 = vmatpush1.msra.mxu0 0.0
    %705 = vmatprep.subr.mxu0 0.0
    %706 = vmatpush1.msra.mxu0 0.0
    %707 = vmatprep.subr.mxu0 0.0
    %708 = vmatpush1.msra.mxu0 0.0
    %709 = vmatprep.subr.mxu0 0.0
    %710 = vmatpush1.msra.mxu0 0.0
    %711 = vmatprep.mubr.f32.mxu0 0.0
    %712 = vmatmul.mubr.f32.gmra.mrb[0].mxu0 %v639
    %v713 = vpop.f32.mrb[0].mxu0
    %v714 = vadd.f32 %v636, %v713
    %v715 = vpop.f32.mrb[0].mxu0
    %v716 = vadd.f32 %v636, %v715
    %717 = vdwg.mxu0
    %v718 = vmax.f32 %v714, 0.0
    %v719 = vmax.f32 %v716, 0.0
    %s720 = scalar_lea.vmem %s4, 16
    %v721 = vld [vmem:[%s720] sm:$0xff]
    %s722 = scalar_lea.vmem %s5, 16
    %v723 = vld [vmem:[%s722] sm:$0xff]
    %725 = vset.pattern.permute.xlu0 0
    %726 = vperm.xlu0 %725, %v723
    %v727 = vpop.permute.xlu0 %726
    %v730 = vsel %vm141, %v721, 0
    %732 = vmatprep.subr.mxu0 %v719
    %733 = vmatpush1.msra.mxu0 %v718
    %734 = vmatprep.subr.mxu0 0.0
    %735 = vmatpush1.msra.mxu0 0.0
    %736 = vmatprep.subr.mxu0 0.0
    %737 = vmatpush1.msra.mxu0 0.0
    %738 = vmatprep.subr.mxu0 0.0
    %739 = vmatpush1.msra.mxu0 0.0
    %740 = vmatprep.subr.mxu0 0.0
    %741 = vmatpush1.msra.mxu0 0.0
    %742 = vmatprep.subr.mxu0 0.0
    %743 = vmatpush1.msra.mxu0 0.0
    %744 = vmatprep.subr.mxu0 0.0
    %745 = vmatpush1.msra.mxu0 0.0
    %746 = vmatprep.subr.mxu0 0.0
    %747 = vmatpush1.msra.mxu0 0.0
    %748 = vmatprep.subr.mxu0 0.0
    %749 = vmatpush1.msra.mxu0 0.0
    %750 = vmatprep.subr.mxu0 0.0
    %751 = vmatpush1.msra.mxu0 0.0
    %752 = vmatprep.subr.mxu0 0.0
    %753 = vmatpush1.msra.mxu0 0.0
    %754 = vmatprep.subr.mxu0 0.0
    %755 = vmatpush1.msra.mxu0 0.0
    %756 = vmatprep.subr.mxu0 0.0
    %757 = vmatpush1.msra.mxu0 0.0
    %758 = vmatprep.subr.mxu0 0.0
    %759 = vmatpush1.msra.mxu0 0.0
    %760 = vmatprep.subr.mxu0 0.0
    %761 = vmatpush1.msra.mxu0 0.0
    %762 = vmatprep.subr.mxu0 0.0
    %763 = vmatpush1.msra.mxu0 0.0
    %764 = vmatprep.subr.mxu0 0.0
    %765 = vmatpush1.msra.mxu0 0.0
    %766 = vmatprep.subr.mxu0 0.0
    %767 = vmatpush1.msra.mxu0 0.0
    %768 = vmatprep.subr.mxu0 0.0
    %769 = vmatpush1.msra.mxu0 0.0
    %770 = vmatprep.subr.mxu0 0.0
    %771 = vmatpush1.msra.mxu0 0.0
    %772 = vmatprep.subr.mxu0 0.0
    %773 = vmatpush1.msra.mxu0 0.0
    %774 = vmatprep.subr.mxu0 0.0
    %775 = vmatpush1.msra.mxu0 0.0
    %776 = vmatprep.subr.mxu0 0.0
    %777 = vmatpush1.msra.mxu0 0.0
    %778 = vmatprep.subr.mxu0 0.0
    %779 = vmatpush1.msra.mxu0 0.0
    %780 = vmatprep.subr.mxu0 0.0
    %781 = vmatpush1.msra.mxu0 0.0
    %782 = vmatprep.subr.mxu0 0.0
    %783 = vmatpush1.msra.mxu0 0.0
    %784 = vmatprep.subr.mxu0 0.0
    %785 = vmatpush1.msra.mxu0 0.0
    %786 = vmatprep.subr.mxu0 0.0
    %787 = vmatpush1.msra.mxu0 0.0
    %788 = vmatprep.subr.mxu0 0.0
    %789 = vmatpush1.msra.mxu0 0.0
    %790 = vmatprep.subr.mxu0 0.0
    %791 = vmatpush1.msra.mxu0 0.0
    %792 = vmatprep.subr.mxu0 0.0
    %793 = vmatpush1.msra.mxu0 0.0
    %794 = vmatprep.subr.mxu0 0.0
    %795 = vmatpush1.msra.mxu0 0.0
    %796 = vmatprep.mubr.f32.mxu0 0.0
    %797 = vmatmul.mubr.f32.gmra.mrb[0].mxu0 %v730
    %v798 = vpop.f32.mrb[0].mxu0
    %v799 = vadd.f32 %v727, %v798
    %v800 = vpop.f32.mrb[0].mxu0
    %v801 = vadd.f32 %v727, %v800
    %802 = vdwg.mxu0
    %v803 = vmax.f32 %v799, 0.0
    %v804 = vmax.f32 %v801, 0.0
    %s805 = scalar_lea.vmem %s6, 2
    %v806 = vld [vmem:[%s805] sm:$0x1]
    %s807 = scalar_lea.vmem %s7, 2
    %v808 = vld [vmem:[%s807] sm:$0x1]
    %810 = vset.pattern.permute.xlu0 0
    %811 = vperm.xlu0 %810, %v808
    %v812 = vpop.permute.xlu0 %811
    %v814 = vlaneseq
    %v815 = vshrl.u32 %v814, 7
    %v816 = vsub.s32 0, %v815
    %v817 = vrot.slane %v812, %v816
    %v819 = vsel %vm141, %v806, 0
    %821 = vmatprep.subr.mxu0 %v804
    %822 = vmatpush1.msra.mxu0 %v803
    %823 = vmatprep.subr.mxu0 0.0
    %824 = vmatpush1.msra.mxu0 0.0
    %825 = vmatprep.subr.mxu0 0.0
    %826 = vmatpush1.msra.mxu0 0.0
    %827 = vmatprep.subr.mxu0 0.0
    %828 = vmatpush1.msra.mxu0 0.0
    %829 = vmatprep.subr.mxu0 0.0
    %830 = vmatpush1.msra.mxu0 0.0
    %831 = vmatprep.subr.mxu0 0.0
    %832 = vmatpush1.msra.mxu0 0.0
    %833 = vmatprep.subr.mxu0 0.0
    %834 = vmatpush1.msra.mxu0 0.0
    %835 = vmatprep.subr.mxu0 0.0
    %836 = vmatpush1.msra.mxu0 0.0
    %837 = vmatprep.subr.mxu0 0.0
    %838 = vmatpush1.msra.mxu0 0.0
    %839 = vmatprep.subr.mxu0 0.0
    %840 = vmatpush1.msra.mxu0 0.0
    %841 = vmatprep.subr.mxu0 0.0
    %842 = vmatpush1.msra.mxu0 0.0
    %843 = vmatprep.subr.mxu0 0.0
    %844 = vmatpush1.msra.mxu0 0.0
    %845 = vmatprep.subr.mxu0 0.0
    %846 = vmatpush1.msra.mxu0 0.0
    %847 = vmatprep.subr.mxu0 0.0
    %848 = vmatpush1.msra.mxu0 0.0
    %849 = vmatprep.subr.mxu0 0.0
    %850 = vmatpush1.msra.mxu0 0.0
    %851 = vmatprep.subr.mxu0 0.0
    %852 = vmatpush1.msra.mxu0 0.0
    %853 = vmatprep.subr.mxu0 0.0
    %854 = vmatpush1.msra.mxu0 0.0
    %855 = vmatprep.subr.mxu0 0.0
    %856 = vmatpush1.msra.mxu0 0.0
    %857 = vmatprep.subr.mxu0 0.0
    %858 = vmatpush1.msra.mxu0 0.0
    %859 = vmatprep.subr.mxu0 0.0
    %860 = vmatpush1.msra.mxu0 0.0
    %861 = vmatprep.subr.mxu0 0.0
    %862 = vmatpush1.msra.mxu0 0.0
    %863 = vmatprep.subr.mxu0 0.0
    %864 = vmatpush1.msra.mxu0 0.0
    %865 = vmatprep.subr.mxu0 0.0
    %866 = vmatpush1.msra.mxu0 0.0
    %867 = vmatprep.subr.mxu0 0.0
    %868 = vmatpush1.msra.mxu0 0.0
    %869 = vmatprep.subr.mxu0 0.0
    %870 = vmatpush1.msra.mxu0 0.0
    %871 = vmatprep.subr.mxu0 0.0
    %872 = vmatpush1.msra.mxu0 0.0
    %873 = vmatprep.subr.mxu0 0.0
    %874 = vmatpush1.msra.mxu0 0.0
    %875 = vmatprep.subr.mxu0 0.0
    %876 = vmatpush1.msra.mxu0 0.0
    %877 = vmatprep.subr.mxu0 0.0
    %878 = vmatpush1.msra.mxu0 0.0
    %879 = vmatprep.subr.mxu0 0.0
    %880 = vmatpush1.msra.mxu0 0.0
    %881 = vmatprep.subr.mxu0 0.0
    %882 = vmatpush1.msra.mxu0 0.0
    %883 = vmatprep.subr.mxu0 0.0
    %884 = vmatpush1.msra.mxu0 0.0
    %885 = vmatprep.mubr.f32.mxu0 0.0
    %886 = vmatmul.mubr.f32.gmra.mrb[0].mxu0 %v819
    %v887 = vpop.f32.mrb[0].mxu0
    %v888 = vadd.f32 %v817, %v887
    %v889 = vpop.f32.mrb[0].mxu0
    %v890 = vadd.f32 %v817, %v889
    %891 = vdwg.mxu0
    %v894 = vcombine.low %v888, %v890
    %v896 = vunpack.c.l.s4 1966171168
    %v897 = vunpack.c.0.s8 %v896
    %v898 = vlaneseq
    %v899 = vshrl.u32 %v898, 7
    %v900 = vsub.s32 %v897, %v899
    %v901 = vrot.slane %v894, %v900
    %v903 = vunpack.c.l.s4 1966171168
    %v904 = vunpack.c.0.s8 %v903
    %v905 = vlaneseq
    %v906 = vshrl.u32 %v905, 7
    %v907 = vsub.s32 %v904, %v906
    %v908 = vrot.slane %v901, %v907
    %s910 = scalar_lea.vmem [#allocation4], 2
    %911 = vst.msk [vmem:[%s910] ss:$8 sm:$0x3] %vm324, %v908
    %912 = vst.msk [vmem:[%s910] ss:$8 sm:$0x0] %vm324, %v908
    %s913 = sadd.s32 %s34, 3
    %s914 = sld [smem:[#allocation3 + %s913]]
    %s915 = smul.u32 %s914, 4
    %s916 = smul.addr %s915, 8
    %s917 = scalar_lea.vmem %s1, %s916
    %v918 = vld [vmem:[%s917] sm:$0xff]
    %v919 = vld [vmem:[%s917 + $0x8] sm:$0xff]
    %v920 = vld [vmem:[%s917 + $0x10] sm:$0x3]
    %v921 = vld [vmem:[%s917 + $0x18] sm:$0x3]
    %s922 = scalar_lea.vmem %s2, 24
    %v923 = vld [vmem:[%s922] sm:$0xff]
    %s924 = scalar_lea.vmem %s3, 24
    %v925 = vld [vmem:[%s924] sm:$0xff]
    %927 = vset.pattern.permute.xlu0 0
    %928 = vperm.xlu0 %927, %v925
    %v929 = vpop.permute.xlu0 %928
    %v932 = vsel %vm50, %v923, 0
    %v935 = vsel %vm54, %v920, 0
    %v938 = vsel %vm54, %v921, 0
    %940 = vmatprep.subr.mxu0 %v919
    %941 = vmatpush1.msra.mxu0 %v918
    %942 = vmatprep.subr.mxu0 %v938
    %943 = vmatpush1.msra.mxu0 %v935
    %944 = vmatprep.subr.mxu0 0.0
    %945 = vmatpush1.msra.mxu0 0.0
    %946 = vmatprep.subr.mxu0 0.0
    %947 = vmatpush1.msra.mxu0 0.0
    %948 = vmatprep.subr.mxu0 0.0
    %949 = vmatpush1.msra.mxu0 0.0
    %950 = vmatprep.subr.mxu0 0.0
    %951 = vmatpush1.msra.mxu0 0.0
    %952 = vmatprep.subr.mxu0 0.0
    %953 = vmatpush1.msra.mxu0 0.0
    %954 = vmatprep.subr.mxu0 0.0
    %955 = vmatpush1.msra.mxu0 0.0
    %956 = vmatprep.subr.mxu0 0.0
    %957 = vmatpush1.msra.mxu0 0.0
    %958 = vmatprep.subr.mxu0 0.0
    %959 = vmatpush1.msra.mxu0 0.0
    %960 = vmatprep.subr.mxu0 0.0
    %961 = vmatpush1.msra.mxu0 0.0
    %962 = vmatprep.subr.mxu0 0.0
    %963 = vmatpush1.msra.mxu0 0.0
    %964 = vmatprep.subr.mxu0 0.0
    %965 = vmatpush1.msra.mxu0 0.0
    %966 = vmatprep.subr.mxu0 0.0
    %967 = vmatpush1.msra.mxu0 0.0
    %968 = vmatprep.subr.mxu0 0.0
    %969 = vmatpush1.msra.mxu0 0.0
    %970 = vmatprep.subr.mxu0 0.0
    %971 = vmatpush1.msra.mxu0 0.0
    %972 = vmatprep.subr.mxu0 0.0
    %973 = vmatpush1.msra.mxu0 0.0
    %974 = vmatprep.subr.mxu0 0.0
    %975 = vmatpush1.msra.mxu0 0.0
    %976 = vmatprep.subr.mxu0 0.0
    %977 = vmatpush1.msra.mxu0 0.0
    %978 = vmatprep.subr.mxu0 0.0
    %979 = vmatpush1.msra.mxu0 0.0
    %980 = vmatprep.subr.mxu0 0.0
    %981 = vmatpush1.msra.mxu0 0.0
    %982 = vmatprep.subr.mxu0 0.0
    %983 = vmatpush1.msra.mxu0 0.0
    %984 = vmatprep.subr.mxu0 0.0
    %985 = vmatpush1.msra.mxu0 0.0
    %986 = vmatprep.subr.mxu0 0.0
    %987 = vmatpush1.msra.mxu0 0.0
    %988 = vmatprep.subr.mxu0 0.0
    %989 = vmatpush1.msra.mxu0 0.0
    %990 = vmatprep.subr.mxu0 0.0
    %991 = vmatpush1.msra.mxu0 0.0
    %992 = vmatprep.subr.mxu0 0.0
    %993 = vmatpush1.msra.mxu0 0.0
    %994 = vmatprep.subr.mxu0 0.0
    %995 = vmatpush1.msra.mxu0 0.0
    %996 = vmatprep.subr.mxu0 0.0
    %997 = vmatpush1.msra.mxu0 0.0
    %998 = vmatprep.subr.mxu0 0.0
    %999 = vmatpush1.msra.mxu0 0.0
    %1000 = vmatprep.subr.mxu0 0.0
    %1001 = vmatpush1.msra.mxu0 0.0
    %1002 = vmatprep.subr.mxu0 0.0
    %1003 = vmatpush1.msra.mxu0 0.0
    %1004 = vmatprep.mubr.f32.mxu0 0.0
    %1005 = vmatmul.mubr.f32.gmra.mrb[0].mxu0 %v932
    %v1006 = vpop.f32.mrb[0].mxu0
    %v1007 = vadd.f32 %v929, %v1006
    %v1008 = vpop.f32.mrb[0].mxu0
    %v1009 = vadd.f32 %v929, %v1008
    %1010 = vdwg.mxu0
    %v1011 = vmax.f32 %v1007, 0.0
    %v1012 = vmax.f32 %v1009, 0.0
    %s1013 = scalar_lea.vmem %s4, 24
    %v1014 = vld [vmem:[%s1013] sm:$0xff]
    %s1015 = scalar_lea.vmem %s5, 24
    %v1016 = vld [vmem:[%s1015] sm:$0xff]
    %1018 = vset.pattern.permute.xlu0 0
    %1019 = vperm.xlu0 %1018, %v1016
    %v1020 = vpop.permute.xlu0 %1019
    %v1023 = vsel %vm141, %v1014, 0
    %1025 = vmatprep.subr.mxu0 %v1012
    %1026 = vmatpush1.msra.mxu0 %v1011
    %1027 = vmatprep.subr.mxu0 0.0
    %1028 = vmatpush1.msra.mxu0 0.0
    %1029 = vmatprep.subr.mxu0 0.0
    %1030 = vmatpush1.msra.mxu0 0.0
    %1031 = vmatprep.subr.mxu0 0.0
    %1032 = vmatpush1.msra.mxu0 0.0
    %1033 = vmatprep.subr.mxu0 0.0
    %1034 = vmatpush1.msra.mxu0 0.0
    %1035 = vmatprep.subr.mxu0 0.0
    %1036 = vmatpush1.msra.mxu0 0.0
    %1037 = vmatprep.subr.mxu0 0.0
    %1038 = vmatpush1.msra.mxu0 0.0
    %1039 = vmatprep.subr.mxu0 0.0
    %1040 = vmatpush1.msra.mxu0 0.0
    %1041 = vmatprep.subr.mxu0 0.0
    %1042 = vmatpush1.msra.mxu0 0.0
    %1043 = vmatprep.subr.mxu0 0.0
    %1044 = vmatpush1.msra.mxu0 0.0
    %1045 = vmatprep.subr.mxu0 0.0
    %1046 = vmatpush1.msra.mxu0 0.0
    %1047 = vmatprep.subr.mxu0 0.0
    %1048 = vmatpush1.msra.mxu0 0.0
    %1049 = vmatprep.subr.mxu0 0.0
    %1050 = vmatpush1.msra.mxu0 0.0
    %1051 = vmatprep.subr.mxu0 0.0
    %1052 = vmatpush1.msra.mxu0 0.0
    %1053 = vmatprep.subr.mxu0 0.0
    %1054 = vmatpush1.msra.mxu0 0.0
    %1055 = vmatprep.subr.mxu0 0.0
    %1056 = vmatpush1.msra.mxu0 0.0
    %1057 = vmatprep.subr.mxu0 0.0
    %1058 = vmatpush1.msra.mxu0 0.0
    %1059 = vmatprep.subr.mxu0 0.0
    %1060 = vmatpush1.msra.mxu0 0.0
    %1061 = vmatprep.subr.mxu0 0.0
    %1062 = vmatpush1.msra.mxu0 0.0
    %1063 = vmatprep.subr.mxu0 0.0
    %1064 = vmatpush1.msra.mxu0 0.0
    %1065 = vmatprep.subr.mxu0 0.0
    %1066 = vmatpush1.msra.mxu0 0.0
    %1067 = vmatprep.subr.mxu0 0.0
    %1068 = vmatpush1.msra.mxu0 0.0
    %1069 = vmatprep.subr.mxu0 0.0
    %1070 = vmatpush1.msra.mxu0 0.0
    %1071 = vmatprep.subr.mxu0 0.0
    %1072 = vmatpush1.msra.mxu0 0.0
    %1073 = vmatprep.subr.mxu0 0.0
    %1074 = vmatpush1.msra.mxu0 0.0
    %1075 = vmatprep.subr.mxu0 0.0
    %1076 = vmatpush1.msra.mxu0 0.0
    %1077 = vmatprep.subr.mxu0 0.0
    %1078 = vmatpush1.msra.mxu0 0.0
    %1079 = vmatprep.subr.mxu0 0.0
    %1080 = vmatpush1.msra.mxu0 0.0
    %1081 = vmatprep.subr.mxu0 0.0
    %1082 = vmatpush1.msra.mxu0 0.0
    %1083 = vmatprep.subr.mxu0 0.0
    %1084 = vmatpush1.msra.mxu0 0.0
    %1085 = vmatprep.subr.mxu0 0.0
    %1086 = vmatpush1.msra.mxu0 0.0
    %1087 = vmatprep.subr.mxu0 0.0
    %1088 = vmatpush1.msra.mxu0 0.0
    %1089 = vmatprep.mubr.f32.mxu0 0.0
    %1090 = vmatmul.mubr.f32.gmra.mrb[0].mxu0 %v1023
    %v1091 = vpop.f32.mrb[0].mxu0
    %v1092 = vadd.f32 %v1020, %v1091
    %v1093 = vpop.f32.mrb[0].mxu0
    %v1094 = vadd.f32 %v1020, %v1093
    %1095 = vdwg.mxu0
    %v1096 = vmax.f32 %v1092, 0.0
    %v1097 = vmax.f32 %v1094, 0.0
    %s1098 = scalar_lea.vmem %s6, 3
    %v1099 = vld [vmem:[%s1098] sm:$0x1]
    %s1100 = scalar_lea.vmem %s7, 3
    %v1101 = vld [vmem:[%s1100] sm:$0x1]
    %1103 = vset.pattern.permute.xlu0 0
    %1104 = vperm.xlu0 %1103, %v1101
    %v1105 = vpop.permute.xlu0 %1104
    %v1107 = vlaneseq
    %v1108 = vshrl.u32 %v1107, 7
    %v1109 = vsub.s32 0, %v1108
    %v1110 = vrot.slane %v1105, %v1109
    %v1112 = vsel %vm141, %v1099, 0
    %1114 = vmatprep.subr.mxu0 %v1097
    %1115 = vmatpush1.msra.mxu0 %v1096
    %1116 = vmatprep.subr.mxu0 0.0
    %1117 = vmatpush1.msra.mxu0 0.0
    %1118 = vmatprep.subr.mxu0 0.0
    %1119 = vmatpush1.msra.mxu0 0.0
    %1120 = vmatprep.subr.mxu0 0.0
    %1121 = vmatpush1.msra.mxu0 0.0
    %1122 = vmatprep.subr.mxu0 0.0
    %1123 = vmatpush1.msra.mxu0 0.0
    %1124 = vmatprep.subr.mxu0 0.0
    %1125 = vmatpush1.msra.mxu0 0.0
    %1126 = vmatprep.subr.mxu0 0.0
    %1127 = vmatpush1.msra.mxu0 0.0
    %1128 = vmatprep.subr.mxu0 0.0
    %1129 = vmatpush1.msra.mxu0 0.0
    %1130 = vmatprep.subr.mxu0 0.0
    %1131 = vmatpush1.msra.mxu0 0.0
    %1132 = vmatprep.subr.mxu0 0.0
    %1133 = vmatpush1.msra.mxu0 0.0
    %1134 = vmatprep.subr.mxu0 0.0
    %1135 = vmatpush1.msra.mxu0 0.0
    %1136 = vmatprep.subr.mxu0 0.0
    %1137 = vmatpush1.msra.mxu0 0.0
    %1138 = vmatprep.subr.mxu0 0.0
    %1139 = vmatpush1.msra.mxu0 0.0
    %1140 = vmatprep.subr.mxu0 0.0
    %1141 = vmatpush1.msra.mxu0 0.0
    %1142 = vmatprep.subr.mxu0 0.0
    %1143 = vmatpush1.msra.mxu0 0.0
    %1144 = vmatprep.subr.mxu0 0.0
    %1145 = vmatpush1.msra.mxu0 0.0
    %1146 = vmatprep.subr.mxu0 0.0
    %1147 = vmatpush1.msra.mxu0 0.0
    %1148 = vmatprep.subr.mxu0 0.0
    %1149 = vmatpush1.msra.mxu0 0.0
    %1150 = vmatprep.subr.mxu0 0.0
    %1151 = vmatpush1.msra.mxu0 0.0
    %1152 = vmatprep.subr.mxu0 0.0
    %1153 = vmatpush1.msra.mxu0 0.0
    %1154 = vmatprep.subr.mxu0 0.0
    %1155 = vmatpush1.msra.mxu0 0.0
    %1156 = vmatprep.subr.mxu0 0.0
    %1157 = vmatpush1.msra.mxu0 0.0
    %1158 = vmatprep.subr.mxu0 0.0
    %1159 = vmatpush1.msra.mxu0 0.0
    %1160 = vmatprep.subr.mxu0 0.0
    %1161 = vmatpush1.msra.mxu0 0.0
    %1162 = vmatprep.subr.mxu0 0.0
    %1163 = vmatpush1.msra.mxu0 0.0
    %1164 = vmatprep.subr.mxu0 0.0
    %1165 = vmatpush1.msra.mxu0 0.0
    %1166 = vmatprep.subr.mxu0 0.0
    %1167 = vmatpush1.msra.mxu0 0.0
    %1168 = vmatprep.subr.mxu0 0.0
    %1169 = vmatpush1.msra.mxu0 0.0
    %1170 = vmatprep.subr.mxu0 0.0
    %1171 = vmatpush1.msra.mxu0 0.0
    %1172 = vmatprep.subr.mxu0 0.0
    %1173 = vmatpush1.msra.mxu0 0.0
    %1174 = vmatprep.subr.mxu0 0.0
    %1175 = vmatpush1.msra.mxu0 0.0
    %1176 = vmatprep.subr.mxu0 0.0
    %1177 = vmatpush1.msra.mxu0 0.0
    %1178 = vmatprep.mubr.f32.mxu0 0.0
    %1179 = vmatmul.mubr.f32.gmra.mrb[0].mxu0 %v1112
    %v1180 = vpop.f32.mrb[0].mxu0
    %v1181 = vadd.f32 %v1110, %v1180
    %v1182 = vpop.f32.mrb[0].mxu0
    %v1183 = vadd.f32 %v1110, %v1182
    %1184 = vdwg.mxu0
    %v1187 = vcombine.low %v1181, %v1183
    %v1189 = vunpack.c.l.s4 1966171168
    %v1190 = vunpack.c.0.s8 %v1189
    %v1191 = vlaneseq
    %v1192 = vshrl.u32 %v1191, 7
    %v1193 = vsub.s32 %v1190, %v1192
    %v1194 = vrot.slane %v1187, %v1193
    %v1196 = vunpack.c.l.s4 1966171168
    %v1197 = vunpack.c.0.s8 %v1196
    %v1198 = vlaneseq
    %v1199 = vshrl.u32 %v1198, 7
    %v1200 = vsub.s32 %v1197, %v1199
    %v1201 = vrot.slane %v1194, %v1200
    %s1203 = scalar_lea.vmem [#allocation4], 3
    %1204 = vst.msk [vmem:[%s1203] ss:$8 sm:$0x3] %vm324, %v1201
    %1205 = vst.msk [vmem:[%s1203] ss:$8 sm:$0x0] %vm324, %v1201
    %s1206 = sadd.s32 %s34, 4
    %s1207 = sld [smem:[#allocation3 + %s1206]]
    %s1208 = smul.u32 %s1207, 4
    %s1209 = smul.addr %s1208, 8
    %s1210 = scalar_lea.vmem %s1, %s1209
    %v1211 = vld [vmem:[%s1210] sm:$0xff]
    %v1212 = vld [vmem:[%s1210 + $0x8] sm:$0xff]
    %v1213 = vld [vmem:[%s1210 + $0x10] sm:$0x3]
    %v1214 = vld [vmem:[%s1210 + $0x18] sm:$0x3]
    %s1215 = scalar_lea.vmem %s2, 32
    %v1216 = vld [vmem:[%s1215] sm:$0xff]
    %s1217 = scalar_lea.vmem %s3, 32
    %v1218 = vld [vmem:[%s1217] sm:$0xff]
    %1220 = vset.pattern.permute.xlu0 0
    %1221 = vperm.xlu0 %1220, %v1218
    %v1222 = vpop.permute.xlu0 %1221
    %v1225 = vsel %vm50, %v1216, 0
    %v1228 = vsel %vm54, %v1213, 0
    %v1231 = vsel %vm54, %v1214, 0
    %1233 = vmatprep.subr.mxu0 %v1212
    %1234 = vmatpush1.msra.mxu0 %v1211
    %1235 = vmatprep.subr.mxu0 %v1231
    %1236 = vmatpush1.msra.mxu0 %v1228
    %1237 = vmatprep.subr.mxu0 0.0
    %1238 = vmatpush1.msra.mxu0 0.0
    %1239 = vmatprep.subr.mxu0 0.0
    %1240 = vmatpush1.msra.mxu0 0.0
    %1241 = vmatprep.subr.mxu0 0.0
    %1242 = vmatpush1.msra.mxu0 0.0
    %1243 = vmatprep.subr.mxu0 0.0
    %1244 = vmatpush1.msra.mxu0 0.0
    %1245 = vmatprep.subr.mxu0 0.0
    %1246 = vmatpush1.msra.mxu0 0.0
    %1247 = vmatprep.subr.mxu0 0.0
    %1248 = vmatpush1.msra.mxu0 0.0
    %1249 = vmatprep.subr.mxu0 0.0
    %1250 = vmatpush1.msra.mxu0 0.0
    %1251 = vmatprep.subr.mxu0 0.0
    %1252 = vmatpush1.msra.mxu0 0.0
    %1253 = vmatprep.subr.mxu0 0.0
    %1254 = vmatpush1.msra.mxu0 0.0
    %1255 = vmatprep.subr.mxu0 0.0
    %1256 = vmatpush1.msra.mxu0 0.0
    %1257 = vmatprep.subr.mxu0 0.0
    %1258 = vmatpush1.msra.mxu0 0.0
    %1259 = vmatprep.subr.mxu0 0.0
    %1260 = vmatpush1.msra.mxu0 0.0
    %1261 = vmatprep.subr.mxu0 0.0
    %1262 = vmatpush1.msra.mxu0 0.0
    %1263 = vmatprep.subr.mxu0 0.0
    %1264 = vmatpush1.msra.mxu0 0.0
    %1265 = vmatprep.subr.mxu0 0.0
    %1266 = vmatpush1.msra.mxu0 0.0
    %1267 = vmatprep.subr.mxu0 0.0
    %1268 = vmatpush1.msra.mxu0 0.0
    %1269 = vmatprep.subr.mxu0 0.0
    %1270 = vmatpush1.msra.mxu0 0.0
    %1271 = vmatprep.subr.mxu0 0.0
    %1272 = vmatpush1.msra.mxu0 0.0
    %1273 = vmatprep.subr.mxu0 0.0
    %1274 = vmatpush1.msra.mxu0 0.0
    %1275 = vmatprep.subr.mxu0 0.0
    %1276 = vmatpush1.msra.mxu0 0.0
    %1277 = vmatprep.subr.mxu0 0.0
    %1278 = vmatpush1.msra.mxu0 0.0
    %1279 = vmatprep.subr.mxu0 0.0
    %1280 = vmatpush1.msra.mxu0 0.0
    %1281 = vmatprep.subr.mxu0 0.0
    %1282 = vmatpush1.msra.mxu0 0.0
    %1283 = vmatprep.subr.mxu0 0.0
    %1284 = vmatpush1.msra.mxu0 0.0
    %1285 = vmatprep.subr.mxu0 0.0
    %1286 = vmatpush1.msra.mxu0 0.0
    %1287 = vmatprep.subr.mxu0 0.0
    %1288 = vmatpush1.msra.mxu0 0.0
    %1289 = vmatprep.subr.mxu0 0.0
    %1290 = vmatpush1.msra.mxu0 0.0
    %1291 = vmatprep.subr.mxu0 0.0
    %1292 = vmatpush1.msra.mxu0 0.0
    %1293 = vmatprep.subr.mxu0 0.0
    %1294 = vmatpush1.msra.mxu0 0.0
    %1295 = vmatprep.subr.mxu0 0.0
    %1296 = vmatpush1.msra.mxu0 0.0
    %1297 = vmatprep.mubr.f32.mxu0 0.0
    %1298 = vmatmul.mubr.f32.gmra.mrb[0].mxu0 %v1225
    %v1299 = vpop.f32.mrb[0].mxu0
    %v1300 = vadd.f32 %v1222, %v1299
    %v1301 = vpop.f32.mrb[0].mxu0
    %v1302 = vadd.f32 %v1222, %v1301
    %1303 = vdwg.mxu0
    %v1304 = vmax.f32 %v1300, 0.0
    %v1305 = vmax.f32 %v1302, 0.0
    %s1306 = scalar_lea.vmem %s4, 32
    %v1307 = vld [vmem:[%s1306] sm:$0xff]
    %s1308 = scalar_lea.vmem %s5, 32
    %v1309 = vld [vmem:[%s1308] sm:$0xff]
    %1311 = vset.pattern.permute.xlu0 0
    %1312 = vperm.xlu0 %1311, %v1309
    %v1313 = vpop.permute.xlu0 %1312
    %v1316 = vsel %vm141, %v1307, 0
    %1318 = vmatprep.subr.mxu0 %v1305
    %1319 = vmatpush1.msra.mxu0 %v1304
    %1320 = vmatprep.subr.mxu0 0.0
    %1321 = vmatpush1.msra.mxu0 0.0
    %1322 = vmatprep.subr.mxu0 0.0
    %1323 = vmatpush1.msra.mxu0 0.0
    %1324 = vmatprep.subr.mxu0 0.0
    %1325 = vmatpush1.msra.mxu0 0.0
    %1326 = vmatprep.subr.mxu0 0.0
    %1327 = vmatpush1.msra.mxu0 0.0
    %1328 = vmatprep.subr.mxu0 0.0
    %1329 = vmatpush1.msra.mxu0 0.0
    %1330 = vmatprep.subr.mxu0 0.0
    %1331 = vmatpush1.msra.mxu0 0.0
    %1332 = vmatprep.subr.mxu0 0.0
    %1333 = vmatpush1.msra.mxu0 0.0
    %1334 = vmatprep.subr.mxu0 0.0
    %1335 = vmatpush1.msra.mxu0 0.0
    %1336 = vmatprep.subr.mxu0 0.0
    %1337 = vmatpush1.msra.mxu0 0.0
    %1338 = vmatprep.subr.mxu0 0.0
    %1339 = vmatpush1.msra.mxu0 0.0
    %1340 = vmatprep.subr.mxu0 0.0
    %1341 = vmatpush1.msra.mxu0 0.0
    %1342 = vmatprep.subr.mxu0 0.0
    %1343 = vmatpush1.msra.mxu0 0.0
    %1344 = vmatprep.subr.mxu0 0.0
    %1345 = vmatpush1.msra.mxu0 0.0
    %1346 = vmatprep.subr.mxu0 0.0
    %1347 = vmatpush1.msra.mxu0 0.0
    %1348 = vmatprep.subr.mxu0 0.0
    %1349 = vmatpush1.msra.mxu0 0.0
    %1350 = vmatprep.subr.mxu0 0.0
    %1351 = vmatpush1.msra.mxu0 0.0
    %1352 = vmatprep.subr.mxu0 0.0
    %1353 = vmatpush1.msra.mxu0 0.0
    %1354 = vmatprep.subr.mxu0 0.0
    %1355 = vmatpush1.msra.mxu0 0.0
    %1356 = vmatprep.subr.mxu0 0.0
    %1357 = vmatpush1.msra.mxu0 0.0
    %1358 = vmatprep.subr.mxu0 0.0
    %1359 = vmatpush1.msra.mxu0 0.0
    %1360 = vmatprep.subr.mxu0 0.0
    %1361 = vmatpush1.msra.mxu0 0.0
    %1362 = vmatprep.subr.mxu0 0.0
    %1363 = vmatpush1.msra.mxu0 0.0
    %1364 = vmatprep.subr.mxu0 0.0
    %1365 = vmatpush1.msra.mxu0 0.0
    %1366 = vmatprep.subr.mxu0 0.0
    %1367 = vmatpush1.msra.mxu0 0.0
    %1368 = vmatprep.subr.mxu0 0.0
    %1369 = vmatpush1.msra.mxu0 0.0
    %1370 = vmatprep.subr.mxu0 0.0
    %1371 = vmatpush1.msra.mxu0 0.0
    %1372 = vmatprep.subr.mxu0 0.0
    %1373 = vmatpush1.msra.mxu0 0.0
    %1374 = vmatprep.subr.mxu0 0.0
    %1375 = vmatpush1.msra.mxu0 0.0
    %1376 = vmatprep.subr.mxu0 0.0
    %1377 = vmatpush1.msra.mxu0 0.0
    %1378 = vmatprep.subr.mxu0 0.0
    %1379 = vmatpush1.msra.mxu0 0.0
    %1380 = vmatprep.subr.mxu0 0.0
    %1381 = vmatpush1.msra.mxu0 0.0
    %1382 = vmatprep.mubr.f32.mxu0 0.0
    %1383 = vmatmul.mubr.f32.gmra.mrb[0].mxu0 %v1316
    %v1384 = vpop.f32.mrb[0].mxu0
    %v1385 = vadd.f32 %v1313, %v1384
    %v1386 = vpop.f32.mrb[0].mxu0
    %v1387 = vadd.f32 %v1313, %v1386
    %1388 = vdwg.mxu0
    %v1389 = vmax.f32 %v1385, 0.0
    %v1390 = vmax.f32 %v1387, 0.0
    %s1391 = scalar_lea.vmem %s6, 4
    %v1392 = vld [vmem:[%s1391] sm:$0x1]
    %s1393 = scalar_lea.vmem %s7, 4
    %v1394 = vld [vmem:[%s1393] sm:$0x1]
    %1396 = vset.pattern.permute.xlu0 0
    %1397 = vperm.xlu0 %1396, %v1394
    %v1398 = vpop.permute.xlu0 %1397
    %v1400 = vlaneseq
    %v1401 = vshrl.u32 %v1400, 7
    %v1402 = vsub.s32 0, %v1401
    %v1403 = vrot.slane %v1398, %v1402
    %v1405 = vsel %vm141, %v1392, 0
    %1407 = vmatprep.subr.mxu0 %v1390
    %1408 = vmatpush1.msra.mxu0 %v1389
    %1409 = vmatprep.subr.mxu0 0.0
    %1410 = vmatpush1.msra.mxu0 0.0
    %1411 = vmatprep.subr.mxu0 0.0
    %1412 = vmatpush1.msra.mxu0 0.0
    %1413 = vmatprep.subr.mxu0 0.0
    %1414 = vmatpush1.msra.mxu0 0.0
    %1415 = vmatprep.subr.mxu0 0.0
    %1416 = vmatpush1.msra.mxu0 0.0
    %1417 = vmatprep.subr.mxu0 0.0
    %1418 = vmatpush1.msra.mxu0 0.0
    %1419 = vmatprep.subr.mxu0 0.0
    %1420 = vmatpush1.msra.mxu0 0.0
    %1421 = vmatprep.subr.mxu0 0.0
    %1422 = vmatpush1.msra.mxu0 0.0
    %1423 = vmatprep.subr.mxu0 0.0
    %1424 = vmatpush1.msra.mxu0 0.0
    %1425 = vmatprep.subr.mxu0 0.0
    %1426 = vmatpush1.msra.mxu0 0.0
    %1427 = vmatprep.subr.mxu0 0.0
    %1428 = vmatpush1.msra.mxu0 0.0
    %1429 = vmatprep.subr.mxu0 0.0
    %1430 = vmatpush1.msra.mxu0 0.0
    %1431 = vmatprep.subr.mxu0 0.0
    %1432 = vmatpush1.msra.mxu0 0.0
    %1433 = vmatprep.subr.mxu0 0.0
    %1434 = vmatpush1.msra.mxu0 0.0
    %1435 = vmatprep.subr.mxu0 0.0
    %1436 = vmatpush1.msra.mxu0 0.0
    %1437 = vmatprep.subr.mxu0 0.0
    %1438 = vmatpush1.msra.mxu0 0.0
    %1439 = vmatprep.subr.mxu0 0.0
    %1440 = vmatpush1.msra.mxu0 0.0
    %1441 = vmatprep.subr.mxu0 0.0
    %1442 = vmatpush1.msra.mxu0 0.0
    %1443 = vmatprep.subr.mxu0 0.0
    %1444 = vmatpush1.msra.mxu0 0.0
    %1445 = vmatprep.subr.mxu0 0.0
    %1446 = vmatpush1.msra.mxu0 0.0
    %1447 = vmatprep.subr.mxu0 0.0
    %1448 = vmatpush1.msra.mxu0 0.0
    %1449 = vmatprep.subr.mxu0 0.0
    %1450 = vmatpush1.msra.mxu0 0.0
    %1451 = vmatprep.subr.mxu0 0.0
    %1452 = vmatpush1.msra.mxu0 0.0
    %1453 = vmatprep.subr.mxu0 0.0
    %1454 = vmatpush1.msra.mxu0 0.0
    %1455 = vmatprep.subr.mxu0 0.0
    %1456 = vmatpush1.msra.mxu0 0.0
    %1457 = vmatprep.subr.mxu0 0.0
    %1458 = vmatpush1.msra.mxu0 0.0
    %1459 = vmatprep.subr.mxu0 0.0
    %1460 = vmatpush1.msra.mxu0 0.0
    %1461 = vmatprep.subr.mxu0 0.0
    %1462 = vmatpush1.msra.mxu0 0.0
    %1463 = vmatprep.subr.mxu0 0.0
    %1464 = vmatpush1.msra.mxu0 0.0
    %1465 = vmatprep.subr.mxu0 0.0
    %1466 = vmatpush1.msra.mxu0 0.0
    %1467 = vmatprep.subr.mxu0 0.0
    %1468 = vmatpush1.msra.mxu0 0.0
    %1469 = vmatprep.subr.mxu0 0.0
    %1470 = vmatpush1.msra.mxu0 0.0
    %1471 = vmatprep.mubr.f32.mxu0 0.0
    %1472 = vmatmul.mubr.f32.gmra.mrb[0].mxu0 %v1405
    %v1473 = vpop.f32.mrb[0].mxu0
    %v1474 = vadd.f32 %v1403, %v1473
    %v1475 = vpop.f32.mrb[0].mxu0
    %v1476 = vadd.f32 %v1403, %v1475
    %1477 = vdwg.mxu0
    %v1480 = vcombine.low %v1474, %v1476
    %v1482 = vunpack.c.l.s4 1966171168
    %v1483 = vunpack.c.0.s8 %v1482
    %v1484 = vlaneseq
    %v1485 = vshrl.u32 %v1484, 7
    %v1486 = vsub.s32 %v1483, %v1485
    %v1487 = vrot.slane %v1480, %v1486
    %v1489 = vunpack.c.l.s4 1966171168
    %v1490 = vunpack.c.0.s8 %v1489
    %v1491 = vlaneseq
    %v1492 = vshrl.u32 %v1491, 7
    %v1493 = vsub.s32 %v1490, %v1492
    %v1494 = vrot.slane %v1487, %v1493
    %s1496 = scalar_lea.vmem [#allocation4], 4
    %1497 = vst.msk [vmem:[%s1496] ss:$8 sm:$0x3] %vm324, %v1494
    %1498 = vst.msk [vmem:[%s1496] ss:$8 sm:$0x0] %vm324, %v1494
    %s1499 = sadd.s32 %s34, 5
    %s1500 = sld [smem:[#allocation3 + %s1499]]
    %s1501 = smul.u32 %s1500, 4
    %s1502 = smul.addr %s1501, 8
    %s1503 = scalar_lea.vmem %s1, %s1502
    %v1504 = vld [vmem:[%s1503] sm:$0xff]
    %v1505 = vld [vmem:[%s1503 + $0x8] sm:$0xff]
    %v1506 = vld [vmem:[%s1503 + $0x10] sm:$0x3]
    %v1507 = vld [vmem:[%s1503 + $0x18] sm:$0x3]
    %s1508 = scalar_lea.vmem %s2, 40
    %v1509 = vld [vmem:[%s1508] sm:$0xff]
    %s1510 = scalar_lea.vmem %s3, 40
    %v1511 = vld [vmem:[%s1510] sm:$0xff]
    %1513 = vset.pattern.permute.xlu0 0
    %1514 = vperm.xlu0 %1513, %v1511
    %v1515 = vpop.permute.xlu0 %1514
    %v1518 = vsel %vm50, %v1509, 0
    %v1521 = vsel %vm54, %v1506, 0
    %v1524 = vsel %vm54, %v1507, 0
    %1526 = vmatprep.subr.mxu0 %v1505
    %1527 = vmatpush1.msra.mxu0 %v1504
    %1528 = vmatprep.subr.mxu0 %v1524
    %1529 = vmatpush1.msra.mxu0 %v1521
    %1530 = vmatprep.subr.mxu0 0.0
    %1531 = vmatpush1.msra.mxu0 0.0
    %1532 = vmatprep.subr.mxu0 0.0
    %1533 = vmatpush1.msra.mxu0 0.0
    %1534 = vmatprep.subr.mxu0 0.0
    %1535 = vmatpush1.msra.mxu0 0.0
    %1536 = vmatprep.subr.mxu0 0.0
    %1537 = vmatpush1.msra.mxu0 0.0
    %1538 = vmatprep.subr.mxu0 0.0
    %1539 = vmatpush1.msra.mxu0 0.0
    %1540 = vmatprep.subr.mxu0 0.0
    %1541 = vmatpush1.msra.mxu0 0.0
    %1542 = vmatprep.subr.mxu0 0.0
    %1543 = vmatpush1.msra.mxu0 0.0
    %1544 = vmatprep.subr.mxu0 0.0
    %1545 = vmatpush1.msra.mxu0 0.0
    %1546 = vmatprep.subr.mxu0 0.0
    %1547 = vmatpush1.msra.mxu0 0.0
    %1548 = vmatprep.subr.mxu0 0.0
    %1549 = vmatpush1.msra.mxu0 0.0
    %1550 = vmatprep.subr.mxu0 0.0
    %1551 = vmatpush1.msra.mxu0 0.0
    %1552 = vmatprep.subr.mxu0 0.0
    %1553 = vmatpush1.msra.mxu0 0.0
    %1554 = vmatprep.subr.mxu0 0.0
    %1555 = vmatpush1.msra.mxu0 0.0
    %1556 = vmatprep.subr.mxu0 0.0
    %1557 = vmatpush1.msra.mxu0 0.0
    %1558 = vmatprep.subr.mxu0 0.0
    %1559 = vmatpush1.msra.mxu0 0.0
    %1560 = vmatprep.subr.mxu0 0.0
    %1561 = vmatpush1.msra.mxu0 0.0
    %1562 = vmatprep.subr.mxu0 0.0
    %1563 = vmatpush1.msra.mxu0 0.0
    %1564 = vmatprep.subr.mxu0 0.0
    %1565 = vmatpush1.msra.mxu0 0.0
    %1566 = vmatprep.subr.mxu0 0.0
    %1567 = vmatpush1.msra.mxu0 0.0
    %1568 = vmatprep.subr.mxu0 0.0
    %1569 = vmatpush1.msra.mxu0 0.0
    %1570 = vmatprep.subr.mxu0 0.0
    %1571 = vmatpush1.msra.mxu0 0.0
    %1572 = vmatprep.subr.mxu0 0.0
    %1573 = vmatpush1.msra.mxu0 0.0
    %1574 = vmatprep.subr.mxu0 0.0
    %1575 = vmatpush1.msra.mxu0 0.0
    %1576 = vmatprep.subr.mxu0 0.0
    %1577 = vmatpush1.msra.mxu0 0.0
    %1578 = vmatprep.subr.mxu0 0.0
    %1579 = vmatpush1.msra.mxu0 0.0
    %1580 = vmatprep.subr.mxu0 0.0
    %1581 = vmatpush1.msra.mxu0 0.0
    %1582 = vmatprep.subr.mxu0 0.0
    %1583 = vmatpush1.msra.mxu0 0.0
    %1584 = vmatprep.subr.mxu0 0.0
    %1585 = vmatpush1.msra.mxu0 0.0
    %1586 = vmatprep.subr.mxu0 0.0
    %1587 = vmatpush1.msra.mxu0 0.0
    %1588 = vmatprep.subr.mxu0 0.0
    %1589 = vmatpush1.msra.mxu0 0.0
    %1590 = vmatprep.mubr.f32.mxu0 0.0
    %1591 = vmatmul.mubr.f32.gmra.mrb[0].mxu0 %v1518
    %v1592 = vpop.f32.mrb[0].mxu0
    %v1593 = vadd.f32 %v1515, %v1592
    %v1594 = vpop.f32.mrb[0].mxu0
    %v1595 = vadd.f32 %v1515, %v1594
    %1596 = vdwg.mxu0
    %v1597 = vmax.f32 %v1593, 0.0
    %v1598 = vmax.f32 %v1595, 0.0
    %s1599 = scalar_lea.vmem %s4, 40
    %v1600 = vld [vmem:[%s1599] sm:$0xff]
    %s1601 = scalar_lea.vmem %s5, 40
    %v1602 = vld [vmem:[%s1601] sm:$0xff]
    %1604 = vset.pattern.permute.xlu0 0
    %1605 = vperm.xlu0 %1604, %v1602
    %v1606 = vpop.permute.xlu0 %1605
    %v1609 = vsel %vm141, %v1600, 0
    %1611 = vmatprep.subr.mxu0 %v1598
    %1612 = vmatpush1.msra.mxu0 %v1597
    %1613 = vmatprep.subr.mxu0 0.0
    %1614 = vmatpush1.msra.mxu0 0.0
    %1615 = vmatprep.subr.mxu0 0.0
    %1616 = vmatpush1.msra.mxu0 0.0
    %1617 = vmatprep.subr.mxu0 0.0
    %1618 = vmatpush1.msra.mxu0 0.0
    %1619 = vmatprep.subr.mxu0 0.0
    %1620 = vmatpush1.msra.mxu0 0.0
    %1621 = vmatprep.subr.mxu0 0.0
    %1622 = vmatpush1.msra.mxu0 0.0
    %1623 = vmatprep.subr.mxu0 0.0
    %1624 = vmatpush1.msra.mxu0 0.0
    %1625 = vmatprep.subr.mxu0 0.0
    %1626 = vmatpush1.msra.mxu0 0.0
    %1627 = vmatprep.subr.mxu0 0.0
    %1628 = vmatpush1.msra.mxu0 0.0
    %1629 = vmatprep.subr.mxu0 0.0
    %1630 = vmatpush1.msra.mxu0 0.0
    %1631 = vmatprep.subr.mxu0 0.0
    %1632 = vmatpush1.msra.mxu0 0.0
    %1633 = vmatprep.subr.mxu0 0.0
    %1634 = vmatpush1.msra.mxu0 0.0
    %1635 = vmatprep.subr.mxu0 0.0
    %1636 = vmatpush1.msra.mxu0 0.0
    %1637 = vmatprep.subr.mxu0 0.0
    %1638 = vmatpush1.msra.mxu0 0.0
    %1639 = vmatprep.subr.mxu0 0.0
    %1640 = vmatpush1.msra.mxu0 0.0
    %1641 = vmatprep.subr.mxu0 0.0
    %1642 = vmatpush1.msra.mxu0 0.0
    %1643 = vmatprep.subr.mxu0 0.0
    %1644 = vmatpush1.msra.mxu0 0.0
    %1645 = vmatprep.subr.mxu0 0.0
    %1646 = vmatpush1.msra.mxu0 0.0
    %1647 = vmatprep.subr.mxu0 0.0
    %1648 = vmatpush1.msra.mxu0 0.0
    %1649 = vmatprep.subr.mxu0 0.0
    %1650 = vmatpush1.msra.mxu0 0.0
    %1651 = vmatprep.subr.mxu0 0.0
    %1652 = vmatpush1.msra.mxu0 0.0
    %1653 = vmatprep.subr.mxu0 0.0
    %1654 = vmatpush1.msra.mxu0 0.0
    %1655 = vmatprep.subr.mxu0 0.0
    %1656 = vmatpush1.msra.mxu0 0.0
    %1657 = vmatprep.subr.mxu0 0.0
    %1658 = vmatpush1.msra.mxu0 0.0
    %1659 = vmatprep.subr.mxu0 0.0
    %1660 = vmatpush1.msra.mxu0 0.0
    %1661 = vmatprep.subr.mxu0 0.0
    %1662 = vmatpush1.msra.mxu0 0.0
    %1663 = vmatprep.subr.mxu0 0.0
    %1664 = vmatpush1.msra.mxu0 0.0
    %1665 = vmatprep.subr.mxu0 0.0
    %1666 = vmatpush1.msra.mxu0 0.0
    %1667 = vmatprep.subr.mxu0 0.0
    %1668 = vmatpush1.msra.mxu0 0.0
    %1669 = vmatprep.subr.mxu0 0.0
    %1670 = vmatpush1.msra.mxu0 0.0
    %1671 = vmatprep.subr.mxu0 0.0
    %1672 = vmatpush1.msra.mxu0 0.0
    %1673 = vmatprep.subr.mxu0 0.0
    %1674 = vmatpush1.msra.mxu0 0.0
    %1675 = vmatprep.mubr.f32.mxu0 0.0
    %1676 = vmatmul.mubr.f32.gmra.mrb[0].mxu0 %v1609
    %v1677 = vpop.f32.mrb[0].mxu0
    %v1678 = vadd.f32 %v1606, %v1677
    %v1679 = vpop.f32.mrb[0].mxu0
    %v1680 = vadd.f32 %v1606, %v1679
    %1681 = vdwg.mxu0
    %v1682 = vmax.f32 %v1678, 0.0
    %v1683 = vmax.f32 %v1680, 0.0
    %s1684 = scalar_lea.vmem %s6, 5
    %v1685 = vld [vmem:[%s1684] sm:$0x1]
    %s1686 = scalar_lea.vmem %s7, 5
    %v1687 = vld [vmem:[%s1686] sm:$0x1]
    %1689 = vset.pattern.permute.xlu0 0
    %1690 = vperm.xlu0 %1689, %v1687
    %v1691 = vpop.permute.xlu0 %1690
    %v1693 = vlaneseq
    %v1694 = vshrl.u32 %v1693, 7
    %v1695 = vsub.s32 0, %v1694
    %v1696 = vrot.slane %v1691, %v1695
    %v1698 = vsel %vm141, %v1685, 0
    %1700 = vmatprep.subr.mxu0 %v1683
    %1701 = vmatpush1.msra.mxu0 %v1682
    %1702 = vmatprep.subr.mxu0 0.0
    %1703 = vmatpush1.msra.mxu0 0.0
    %1704 = vmatprep.subr.mxu0 0.0
    %1705 = vmatpush1.msra.mxu0 0.0
    %1706 = vmatprep.subr.mxu0 0.0
    %1707 = vmatpush1.msra.mxu0 0.0
    %1708 = vmatprep.subr.mxu0 0.0
    %1709 = vmatpush1.msra.mxu0 0.0
    %1710 = vmatprep.subr.mxu0 0.0
    %1711 = vmatpush1.msra.mxu0 0.0
    %1712 = vmatprep.subr.mxu0 0.0
    %1713 = vmatpush1.msra.mxu0 0.0
    %1714 = vmatprep.subr.mxu0 0.0
    %1715 = vmatpush1.msra.mxu0 0.0
    %1716 = vmatprep.subr.mxu0 0.0
    %1717 = vmatpush1.msra.mxu0 0.0
    %1718 = vmatprep.subr.mxu0 0.0
    %1719 = vmatpush1.msra.mxu0 0.0
    %1720 = vmatprep.subr.mxu0 0.0
    %1721 = vmatpush1.msra.mxu0 0.0
    %1722 = vmatprep.subr.mxu0 0.0
    %1723 = vmatpush1.msra.mxu0 0.0
    %1724 = vmatprep.subr.mxu0 0.0
    %1725 = vmatpush1.msra.mxu0 0.0
    %1726 = vmatprep.subr.mxu0 0.0
    %1727 = vmatpush1.msra.mxu0 0.0
    %1728 = vmatprep.subr.mxu0 0.0
    %1729 = vmatpush1.msra.mxu0 0.0
    %1730 = vmatprep.subr.mxu0 0.0
    %1731 = vmatpush1.msra.mxu0 0.0
    %1732 = vmatprep.subr.mxu0 0.0
    %1733 = vmatpush1.msra.mxu0 0.0
    %1734 = vmatprep.subr.mxu0 0.0
    %1735 = vmatpush1.msra.mxu0 0.0
    %1736 = vmatprep.subr.mxu0 0.0
    %1737 = vmatpush1.msra.mxu0 0.0
    %1738 = vmatprep.subr.mxu0 0.0
    %1739 = vmatpush1.msra.mxu0 0.0
    %1740 = vmatprep.subr.mxu0 0.0
    %1741 = vmatpush1.msra.mxu0 0.0
    %1742 = vmatprep.subr.mxu0 0.0
    %1743 = vmatpush1.msra.mxu0 0.0
    %1744 = vmatprep.subr.mxu0 0.0
    %1745 = vmatpush1.msra.mxu0 0.0
    %1746 = vmatprep.subr.mxu0 0.0
    %1747 = vmatpush1.msra.mxu0 0.0
    %1748 = vmatprep.subr.mxu0 0.0
    %1749 = vmatpush1.msra.mxu0 0.0
    %1750 = vmatprep.subr.mxu0 0.0
    %1751 = vmatpush1.msra.mxu0 0.0
    %1752 = vmatprep.subr.mxu0 0.0
    %1753 = vmatpush1.msra.mxu0 0.0
    %1754 = vmatprep.subr.mxu0 0.0
    %1755 = vmatpush1.msra.mxu0 0.0
    %1756 = vmatprep.subr.mxu0 0.0
    %1757 = vmatpush1.msra.mxu0 0.0
    %1758 = vmatprep.subr.mxu0 0.0
    %1759 = vmatpush1.msra.mxu0 0.0
    %1760 = vmatprep.subr.mxu0 0.0
    %1761 = vmatpush1.msra.mxu0 0.0
    %1762 = vmatprep.subr.mxu0 0.0
    %1763 = vmatpush1.msra.mxu0 0.0
    %1764 = vmatprep.mubr.f32.mxu0 0.0
    %1765 = vmatmul.mubr.f32.gmra.mrb[0].mxu0 %v1698
    %v1766 = vpop.f32.mrb[0].mxu0
    %v1767 = vadd.f32 %v1696, %v1766
    %v1768 = vpop.f32.mrb[0].mxu0
    %v1769 = vadd.f32 %v1696, %v1768
    %1770 = vdwg.mxu0
    %v1773 = vcombine.low %v1767, %v1769
    %v1775 = vunpack.c.l.s4 1966171168
    %v1776 = vunpack.c.0.s8 %v1775
    %v1777 = vlaneseq
    %v1778 = vshrl.u32 %v1777, 7
    %v1779 = vsub.s32 %v1776, %v1778
    %v1780 = vrot.slane %v1773, %v1779
    %v1782 = vunpack.c.l.s4 1966171168
    %v1783 = vunpack.c.0.s8 %v1782
    %v1784 = vlaneseq
    %v1785 = vshrl.u32 %v1784, 7
    %v1786 = vsub.s32 %v1783, %v1785
    %v1787 = vrot.slane %v1780, %v1786
    %s1789 = scalar_lea.vmem [#allocation4], 5
    %1790 = vst.msk [vmem:[%s1789] ss:$8 sm:$0x3] %vm324, %v1787
    %1791 = vst.msk [vmem:[%s1789] ss:$8 sm:$0x0] %vm324, %v1787
    %s1792 = sadd.s32 %s34, 6
    %s1793 = sld [smem:[#allocation3 + %s1792]]
    %s1794 = smul.u32 %s1793, 4
    %s1795 = smul.addr %s1794, 8
    %s1796 = scalar_lea.vmem %s1, %s1795
    %v1797 = vld [vmem:[%s1796] sm:$0xff]
    %v1798 = vld [vmem:[%s1796 + $0x8] sm:$0xff]
    %v1799 = vld [vmem:[%s1796 + $0x10] sm:$0x3]
    %v1800 = vld [vmem:[%s1796 + $0x18] sm:$0x3]
    %s1801 = scalar_lea.vmem %s2, 48
    %v1802 = vld [vmem:[%s1801] sm:$0xff]
    %s1803 = scalar_lea.vmem %s3, 48
    %v1804 = vld [vmem:[%s1803] sm:$0xff]
    %1806 = vset.pattern.permute.xlu0 0
    %1807 = vperm.xlu0 %1806, %v1804
    %v1808 = vpop.permute.xlu0 %1807
    %v1811 = vsel %vm50, %v1802, 0
    %v1814 = vsel %vm54, %v1799, 0
    %v1817 = vsel %vm54, %v1800, 0
    %1819 = vmatprep.subr.mxu0 %v1798
    %1820 = vmatpush1.msra.mxu0 %v1797
    %1821 = vmatprep.subr.mxu0 %v1817
    %1822 = vmatpush1.msra.mxu0 %v1814
    %1823 = vmatprep.subr.mxu0 0.0
    %1824 = vmatpush1.msra.mxu0 0.0
    %1825 = vmatprep.subr.mxu0 0.0
    %1826 = vmatpush1.msra.mxu0 0.0
    %1827 = vmatprep.subr.mxu0 0.0
    %1828 = vmatpush1.msra.mxu0 0.0
    %1829 = vmatprep.subr.mxu0 0.0
    %1830 = vmatpush1.msra.mxu0 0.0
    %1831 = vmatprep.subr.mxu0 0.0
    %1832 = vmatpush1.msra.mxu0 0.0
    %1833 = vmatprep.subr.mxu0 0.0
    %1834 = vmatpush1.msra.mxu0 0.0
    %1835 = vmatprep.subr.mxu0 0.0
    %1836 = vmatpush1.msra.mxu0 0.0
    %1837 = vmatprep.subr.mxu0 0.0
    %1838 = vmatpush1.msra.mxu0 0.0
    %1839 = vmatprep.subr.mxu0 0.0
    %1840 = vmatpush1.msra.mxu0 0.0
    %1841 = vmatprep.subr.mxu0 0.0
    %1842 = vmatpush1.msra.mxu0 0.0
    %1843 = vmatprep.subr.mxu0 0.0
    %1844 = vmatpush1.msra.mxu0 0.0
    %1845 = vmatprep.subr.mxu0 0.0
    %1846 = vmatpush1.msra.mxu0 0.0
    %1847 = vmatprep.subr.mxu0 0.0
    %1848 = vmatpush1.msra.mxu0 0.0
    %1849 = vmatprep.subr.mxu0 0.0
    %1850 = vmatpush1.msra.mxu0 0.0
    %1851 = vmatprep.subr.mxu0 0.0
    %1852 = vmatpush1.msra.mxu0 0.0
    %1853 = vmatprep.subr.mxu0 0.0
    %1854 = vmatpush1.msra.mxu0 0.0
    %1855 = vmatprep.subr.mxu0 0.0
    %1856 = vmatpush1.msra.mxu0 0.0
    %1857 = vmatprep.subr.mxu0 0.0
    %1858 = vmatpush1.msra.mxu0 0.0
    %1859 = vmatprep.subr.mxu0 0.0
    %1860 = vmatpush1.msra.mxu0 0.0
    %1861 = vmatprep.subr.mxu0 0.0
    %1862 = vmatpush1.msra.mxu0 0.0
    %1863 = vmatprep.subr.mxu0 0.0
    %1864 = vmatpush1.msra.mxu0 0.0
    %1865 = vmatprep.subr.mxu0 0.0
    %1866 = vmatpush1.msra.mxu0 0.0
    %1867 = vmatprep.subr.mxu0 0.0
    %1868 = vmatpush1.msra.mxu0 0.0
    %1869 = vmatprep.subr.mxu0 0.0
    %1870 = vmatpush1.msra.mxu0 0.0
    %1871 = vmatprep.subr.mxu0 0.0
    %1872 = vmatpush1.msra.mxu0 0.0
    %1873 = vmatprep.subr.mxu0 0.0
    %1874 = vmatpush1.msra.mxu0 0.0
    %1875 = vmatprep.subr.mxu0 0.0
    %1876 = vmatpush1.msra.mxu0 0.0
    %1877 = vmatprep.subr.mxu0 0.0
    %1878 = vmatpush1.msra.mxu0 0.0
    %1879 = vmatprep.subr.mxu0 0.0
    %1880 = vmatpush1.msra.mxu0 0.0
    %1881 = vmatprep.subr.mxu0 0.0
    %1882 = vmatpush1.msra.mxu0 0.0
    %1883 = vmatprep.mubr.f32.mxu0 0.0
    %1884 = vmatmul.mubr.f32.gmra.mrb[0].mxu0 %v1811
    %v1885 = vpop.f32.mrb[0].mxu0
    %v1886 = vadd.f32 %v1808, %v1885
    %v1887 = vpop.f32.mrb[0].mxu0
    %v1888 = vadd.f32 %v1808, %v1887
    %1889 = vdwg.mxu0
    %v1890 = vmax.f32 %v1886, 0.0
    %v1891 = vmax.f32 %v1888, 0.0
    %s1892 = scalar_lea.vmem %s4, 48
    %v1893 = vld [vmem:[%s1892] sm:$0xff]
    %s1894 = scalar_lea.vmem %s5, 48
    %v1895 = vld [vmem:[%s1894] sm:$0xff]
    %1897 = vset.pattern.permute.xlu0 0
    %1898 = vperm.xlu0 %1897, %v1895
    %v1899 = vpop.permute.xlu0 %1898
    %v1902 = vsel %vm141, %v1893, 0
    %1904 = vmatprep.subr.mxu0 %v1891
    %1905 = vmatpush1.msra.mxu0 %v1890
    %1906 = vmatprep.subr.mxu0 0.0
    %1907 = vmatpush1.msra.mxu0 0.0
    %1908 = vmatprep.subr.mxu0 0.0
    %1909 = vmatpush1.msra.mxu0 0.0
    %1910 = vmatprep.subr.mxu0 0.0
    %1911 = vmatpush1.msra.mxu0 0.0
    %1912 = vmatprep.subr.mxu0 0.0
    %1913 = vmatpush1.msra.mxu0 0.0
    %1914 = vmatprep.subr.mxu0 0.0
    %1915 = vmatpush1.msra.mxu0 0.0
    %1916 = vmatprep.subr.mxu0 0.0
    %1917 = vmatpush1.msra.mxu0 0.0
    %1918 = vmatprep.subr.mxu0 0.0
    %1919 = vmatpush1.msra.mxu0 0.0
    %1920 = vmatprep.subr.mxu0 0.0
    %1921 = vmatpush1.msra.mxu0 0.0
    %1922 = vmatprep.subr.mxu0 0.0
    %1923 = vmatpush1.msra.mxu0 0.0
    %1924 = vmatprep.subr.mxu0 0.0
    %1925 = vmatpush1.msra.mxu0 0.0
    %1926 = vmatprep.subr.mxu0 0.0
    %1927 = vmatpush1.msra.mxu0 0.0
    %1928 = vmatprep.subr.mxu0 0.0
    %1929 = vmatpush1.msra.mxu0 0.0
    %1930 = vmatprep.subr.mxu0 0.0
    %1931 = vmatpush1.msra.mxu0 0.0
    %1932 = vmatprep.subr.mxu0 0.0
    %1933 = vmatpush1.msra.mxu0 0.0
    %1934 = vmatprep.subr.mxu0 0.0
    %1935 = vmatpush1.msra.mxu0 0.0
    %1936 = vmatprep.subr.mxu0 0.0
    %1937 = vmatpush1.msra.mxu0 0.0
    %1938 = vmatprep.subr.mxu0 0.0
    %1939 = vmatpush1.msra.mxu0 0.0
    %1940 = vmatprep.subr.mxu0 0.0
    %1941 = vmatpush1.msra.mxu0 0.0
    %1942 = vmatprep.subr.mxu0 0.0
    %1943 = vmatpush1.msra.mxu0 0.0
    %1944 = vmatprep.subr.mxu0 0.0
    %1945 = vmatpush1.msra.mxu0 0.0
    %1946 = vmatprep.subr.mxu0 0.0
    %1947 = vmatpush1.msra.mxu0 0.0
    %1948 = vmatprep.subr.mxu0 0.0
    %1949 = vmatpush1.msra.mxu0 0.0
    %1950 = vmatprep.subr.mxu0 0.0
    %1951 = vmatpush1.msra.mxu0 0.0
    %1952 = vmatprep.subr.mxu0 0.0
    %1953 = vmatpush1.msra.mxu0 0.0
    %1954 = vmatprep.subr.mxu0 0.0
    %1955 = vmatpush1.msra.mxu0 0.0
    %1956 = vmatprep.subr.mxu0 0.0
    %1957 = vmatpush1.msra.mxu0 0.0
    %1958 = vmatprep.subr.mxu0 0.0
    %1959 = vmatpush1.msra.mxu0 0.0
    %1960 = vmatprep.subr.mxu0 0.0
    %1961 = vmatpush1.msra.mxu0 0.0
    %1962 = vmatprep.subr.mxu0 0.0
    %1963 = vmatpush1.msra.mxu0 0.0
    %1964 = vmatprep.subr.mxu0 0.0
    %1965 = vmatpush1.msra.mxu0 0.0
    %1966 = vmatprep.subr.mxu0 0.0
    %1967 = vmatpush1.msra.mxu0 0.0
    %1968 = vmatprep.mubr.f32.mxu0 0.0
    %1969 = vmatmul.mubr.f32.gmra.mrb[0].mxu0 %v1902
    %v1970 = vpop.f32.mrb[0].mxu0
    %v1971 = vadd.f32 %v1899, %v1970
    %v1972 = vpop.f32.mrb[0].mxu0
    %v1973 = vadd.f32 %v1899, %v1972
    %1974 = vdwg.mxu0
    %v1975 = vmax.f32 %v1971, 0.0
    %v1976 = vmax.f32 %v1973, 0.0
    %s1977 = scalar_lea.vmem %s6, 6
    %v1978 = vld [vmem:[%s1977] sm:$0x1]
    %s1979 = scalar_lea.vmem %s7, 6
    %v1980 = vld [vmem:[%s1979] sm:$0x1]
    %1982 = vset.pattern.permute.xlu0 0
    %1983 = vperm.xlu0 %1982, %v1980
    %v1984 = vpop.permute.xlu0 %1983
    %v1986 = vlaneseq
    %v1987 = vshrl.u32 %v1986, 7
    %v1988 = vsub.s32 0, %v1987
    %v1989 = vrot.slane %v1984, %v1988
    %v1991 = vsel %vm141, %v1978, 0
    %1993 = vmatprep.subr.mxu0 %v1976
    %1994 = vmatpush1.msra.mxu0 %v1975
    %1995 = vmatprep.subr.mxu0 0.0
    %1996 = vmatpush1.msra.mxu0 0.0
    %1997 = vmatprep.subr.mxu0 0.0
    %1998 = vmatpush1.msra.mxu0 0.0
    %1999 = vmatprep.subr.mxu0 0.0
    %2000 = vmatpush1.msra.mxu0 0.0
    %2001 = vmatprep.subr.mxu0 0.0
    %2002 = vmatpush1.msra.mxu0 0.0
    %2003 = vmatprep.subr.mxu0 0.0
    %2004 = vmatpush1.msra.mxu0 0.0
    %2005 = vmatprep.subr.mxu0 0.0
    %2006 = vmatpush1.msra.mxu0 0.0
    %2007 = vmatprep.subr.mxu0 0.0
    %2008 = vmatpush1.msra.mxu0 0.0
    %2009 = vmatprep.subr.mxu0 0.0
    %2010 = vmatpush1.msra.mxu0 0.0
    %2011 = vmatprep.subr.mxu0 0.0
    %2012 = vmatpush1.msra.mxu0 0.0
    %2013 = vmatprep.subr.mxu0 0.0
    %2014 = vmatpush1.msra.mxu0 0.0
    %2015 = vmatprep.subr.mxu0 0.0
    %2016 = vmatpush1.msra.mxu0 0.0
    %2017 = vmatprep.subr.mxu0 0.0
    %2018 = vmatpush1.msra.mxu0 0.0
    %2019 = vmatprep.subr.mxu0 0.0
    %2020 = vmatpush1.msra.mxu0 0.0
    %2021 = vmatprep.subr.mxu0 0.0
    %2022 = vmatpush1.msra.mxu0 0.0
    %2023 = vmatprep.subr.mxu0 0.0
    %2024 = vmatpush1.msra.mxu0 0.0
    %2025 = vmatprep.subr.mxu0 0.0
    %2026 = vmatpush1.msra.mxu0 0.0
    %2027 = vmatprep.subr.mxu0 0.0
    %2028 = vmatpush1.msra.mxu0 0.0
    %2029 = vmatprep.subr.mxu0 0.0
    %2030 = vmatpush1.msra.mxu0 0.0
    %2031 = vmatprep.subr.mxu0 0.0
    %2032 = vmatpush1.msra.mxu0 0.0
    %2033 = vmatprep.subr.mxu0 0.0
    %2034 = vmatpush1.msra.mxu0 0.0
    %2035 = vmatprep.subr.mxu0 0.0
    %2036 = vmatpush1.msra.mxu0 0.0
    %2037 = vmatprep.subr.mxu0 0.0
    %2038 = vmatpush1.msra.mxu0 0.0
    %2039 = vmatprep.subr.mxu0 0.0
    %2040 = vmatpush1.msra.mxu0 0.0
    %2041 = vmatprep.subr.mxu0 0.0
    %2042 = vmatpush1.msra.mxu0 0.0
    %2043 = vmatprep.subr.mxu0 0.0
    %2044 = vmatpush1.msra.mxu0 0.0
    %2045 = vmatprep.subr.mxu0 0.0
    %2046 = vmatpush1.msra.mxu0 0.0
    %2047 = vmatprep.subr.mxu0 0.0
    %2048 = vmatpush1.msra.mxu0 0.0
    %2049 = vmatprep.subr.mxu0 0.0
    %2050 = vmatpush1.msra.mxu0 0.0
    %2051 = vmatprep.subr.mxu0 0.0
    %2052 = vmatpush1.msra.mxu0 0.0
    %2053 = vmatprep.subr.mxu0 0.0
    %2054 = vmatpush1.msra.mxu0 0.0
    %2055 = vmatprep.subr.mxu0 0.0
    %2056 = vmatpush1.msra.mxu0 0.0
    %2057 = vmatprep.mubr.f32.mxu0 0.0
    %2058 = vmatmul.mubr.f32.gmra.mrb[0].mxu0 %v1991
    %v2059 = vpop.f32.mrb[0].mxu0
    %v2060 = vadd.f32 %v1989, %v2059
    %v2061 = vpop.f32.mrb[0].mxu0
    %v2062 = vadd.f32 %v1989, %v2061
    %2063 = vdwg.mxu0
    %v2066 = vcombine.low %v2060, %v2062
    %v2068 = vunpack.c.l.s4 1966171168
    %v2069 = vunpack.c.0.s8 %v2068
    %v2070 = vlaneseq
    %v2071 = vshrl.u32 %v2070, 7
    %v2072 = vsub.s32 %v2069, %v2071
    %v2073 = vrot.slane %v2066, %v2072
    %v2075 = vunpack.c.l.s4 1966171168
    %v2076 = vunpack.c.0.s8 %v2075
    %v2077 = vlaneseq
    %v2078 = vshrl.u32 %v2077, 7
    %v2079 = vsub.s32 %v2076, %v2078
    %v2080 = vrot.slane %v2073, %v2079
    %s2082 = scalar_lea.vmem [#allocation4], 6
    %2083 = vst.msk [vmem:[%s2082] ss:$8 sm:$0x3] %vm324, %v2080
    %2084 = vst.msk [vmem:[%s2082] ss:$8 sm:$0x0] %vm324, %v2080
    %s2085 = sadd.s32 %s34, 7
    %s2086 = sld [smem:[#allocation3 + %s2085]]
    %s2087 = smul.u32 %s2086, 4
    %s2088 = smul.addr %s2087, 8
    %s2089 = scalar_lea.vmem %s1, %s2088
    %v2090 = vld [vmem:[%s2089] sm:$0xff]
    %v2091 = vld [vmem:[%s2089 + $0x8] sm:$0xff]
    %v2092 = vld [vmem:[%s2089 + $0x10] sm:$0x3]
    %v2093 = vld [vmem:[%s2089 + $0x18] sm:$0x3]
    %s2094 = scalar_lea.vmem %s2, 56
    %v2095 = vld [vmem:[%s2094] sm:$0xff]
    %s2096 = scalar_lea.vmem %s3, 56
    %v2097 = vld [vmem:[%s2096] sm:$0xff]
    %2099 = vset.pattern.permute.xlu0 0
    %2100 = vperm.xlu0 %2099, %v2097
    %v2101 = vpop.permute.xlu0 %2100
    %v2104 = vsel %vm50, %v2095, 0
    %v2107 = vsel %vm54, %v2092, 0
    %v2110 = vsel %vm54, %v2093, 0
    %2112 = vmatprep.subr.mxu0 %v2091
    %2113 = vmatpush1.msra.mxu0 %v2090
    %2114 = vmatprep.subr.mxu0 %v2110
    %2115 = vmatpush1.msra.mxu0 %v2107
    %2116 = vmatprep.subr.mxu0 0.0
    %2117 = vmatpush1.msra.mxu0 0.0
    %2118 = vmatprep.subr.mxu0 0.0
    %2119 = vmatpush1.msra.mxu0 0.0
    %2120 = vmatprep.subr.mxu0 0.0
    %2121 = vmatpush1.msra.mxu0 0.0
    %2122 = vmatprep.subr.mxu0 0.0
    %2123 = vmatpush1.msra.mxu0 0.0
    %2124 = vmatprep.subr.mxu0 0.0
    %2125 = vmatpush1.msra.mxu0 0.0
    %2126 = vmatprep.subr.mxu0 0.0
    %2127 = vmatpush1.msra.mxu0 0.0
    %2128 = vmatprep.subr.mxu0 0.0
    %2129 = vmatpush1.msra.mxu0 0.0
    %2130 = vmatprep.subr.mxu0 0.0
    %2131 = vmatpush1.msra.mxu0 0.0
    %2132 = vmatprep.subr.mxu0 0.0
    %2133 = vmatpush1.msra.mxu0 0.0
    %2134 = vmatprep.subr.mxu0 0.0
    %2135 = vmatpush1.msra.mxu0 0.0
    %2136 = vmatprep.subr.mxu0 0.0
    %2137 = vmatpush1.msra.mxu0 0.0
    %2138 = vmatprep.subr.mxu0 0.0
    %2139 = vmatpush1.msra.mxu0 0.0
    %2140 = vmatprep.subr.mxu0 0.0
    %2141 = vmatpush1.msra.mxu0 0.0
    %2142 = vmatprep.subr.mxu0 0.0
    %2143 = vmatpush1.msra.mxu0 0.0
    %2144 = vmatprep.subr.mxu0 0.0
    %2145 = vmatpush1.msra.mxu0 0.0
    %2146 = vmatprep.subr.mxu0 0.0
    %2147 = vmatpush1.msra.mxu0 0.0
    %2148 = vmatprep.subr.mxu0 0.0
    %2149 = vmatpush1.msra.mxu0 0.0
    %2150 = vmatprep.subr.mxu0 0.0
    %2151 = vmatpush1.msra.mxu0 0.0
    %2152 = vmatprep.subr.mxu0 0.0
    %2153 = vmatpush1.msra.mxu0 0.0
    %2154 = vmatprep.subr.mxu0 0.0
    %2155 = vmatpush1.msra.mxu0 0.0
    %2156 = vmatprep.subr.mxu0 0.0
    %2157 = vmatpush1.msra.mxu0 0.0
    %2158 = vmatprep.subr.mxu0 0.0
    %2159 = vmatpush1.msra.mxu0 0.0
    %2160 = vmatprep.subr.mxu0 0.0
    %2161 = vmatpush1.msra.mxu0 0.0
    %2162 = vmatprep.subr.mxu0 0.0
    %2163 = vmatpush1.msra.mxu0 0.0
    %2164 = vmatprep.subr.mxu0 0.0
    %2165 = vmatpush1.msra.mxu0 0.0
    %2166 = vmatprep.subr.mxu0 0.0
    %2167 = vmatpush1.msra.mxu0 0.0
    %2168 = vmatprep.subr.mxu0 0.0
    %2169 = vmatpush1.msra.mxu0 0.0
    %2170 = vmatprep.subr.mxu0 0.0
    %2171 = vmatpush1.msra.mxu0 0.0
    %2172 = vmatprep.subr.mxu0 0.0
    %2173 = vmatpush1.msra.mxu0 0.0
    %2174 = vmatprep.subr.mxu0 0.0
    %2175 = vmatpush1.msra.mxu0 0.0
    %2176 = vmatprep.mubr.f32.mxu0 0.0
    %2177 = vmatmul.mubr.f32.gmra.mrb[0].mxu0 %v2104
    %v2178 = vpop.f32.mrb[0].mxu0
    %v2179 = vadd.f32 %v2101, %v2178
    %v2180 = vpop.f32.mrb[0].mxu0
    %v2181 = vadd.f32 %v2101, %v2180
    %2182 = vdwg.mxu0
    %v2183 = vmax.f32 %v2179, 0.0
    %v2184 = vmax.f32 %v2181, 0.0
    %s2185 = scalar_lea.vmem %s4, 56
    %v2186 = vld [vmem:[%s2185] sm:$0xff]
    %s2187 = scalar_lea.vmem %s5, 56
    %v2188 = vld [vmem:[%s2187] sm:$0xff]
    %2190 = vset.pattern.permute.xlu0 0
    %2191 = vperm.xlu0 %2190, %v2188
    %v2192 = vpop.permute.xlu0 %2191
    %v2195 = vsel %vm141, %v2186, 0
    %2197 = vmatprep.subr.mxu0 %v2184
    %2198 = vmatpush1.msra.mxu0 %v2183
    %2199 = vmatprep.subr.mxu0 0.0
    %2200 = vmatpush1.msra.mxu0 0.0
    %2201 = vmatprep.subr.mxu0 0.0
    %2202 = vmatpush1.msra.mxu0 0.0
    %2203 = vmatprep.subr.mxu0 0.0
    %2204 = vmatpush1.msra.mxu0 0.0
    %2205 = vmatprep.subr.mxu0 0.0
    %2206 = vmatpush1.msra.mxu0 0.0
    %2207 = vmatprep.subr.mxu0 0.0
    %2208 = vmatpush1.msra.mxu0 0.0
    %2209 = vmatprep.subr.mxu0 0.0
    %2210 = vmatpush1.msra.mxu0 0.0
    %2211 = vmatprep.subr.mxu0 0.0
    %2212 = vmatpush1.msra.mxu0 0.0
    %2213 = vmatprep.subr.mxu0 0.0
    %2214 = vmatpush1.msra.mxu0 0.0
    %2215 = vmatprep.subr.mxu0 0.0
    %2216 = vmatpush1.msra.mxu0 0.0
    %2217 = vmatprep.subr.mxu0 0.0
    %2218 = vmatpush1.msra.mxu0 0.0
    %2219 = vmatprep.subr.mxu0 0.0
    %2220 = vmatpush1.msra.mxu0 0.0
    %2221 = vmatprep.subr.mxu0 0.0
    %2222 = vmatpush1.msra.mxu0 0.0
    %2223 = vmatprep.subr.mxu0 0.0
    %2224 = vmatpush1.msra.mxu0 0.0
    %2225 = vmatprep.subr.mxu0 0.0
    %2226 = vmatpush1.msra.mxu0 0.0
    %2227 = vmatprep.subr.mxu0 0.0
    %2228 = vmatpush1.msra.mxu0 0.0
    %2229 = vmatprep.subr.mxu0 0.0
    %2230 = vmatpush1.msra.mxu0 0.0
    %2231 = vmatprep.subr.mxu0 0.0
    %2232 = vmatpush1.msra.mxu0 0.0
    %2233 = vmatprep.subr.mxu0 0.0
    %2234 = vmatpush1.msra.mxu0 0.0
    %2235 = vmatprep.subr.mxu0 0.0
    %2236 = vmatpush1.msra.mxu0 0.0
    %2237 = vmatprep.subr.mxu0 0.0
    %2238 = vmatpush1.msra.mxu0 0.0
    %2239 = vmatprep.subr.mxu0 0.0
    %2240 = vmatpush1.msra.mxu0 0.0
    %2241 = vmatprep.subr.mxu0 0.0
    %2242 = vmatpush1.msra.mxu0 0.0
    %2243 = vmatprep.subr.mxu0 0.0
    %2244 = vmatpush1.msra.mxu0 0.0
    %2245 = vmatprep.subr.mxu0 0.0
    %2246 = vmatpush1.msra.mxu0 0.0
    %2247 = vmatprep.subr.mxu0 0.0
    %2248 = vmatpush1.msra.mxu0 0.0
    %2249 = vmatprep.subr.mxu0 0.0
    %2250 = vmatpush1.msra.mxu0 0.0
    %2251 = vmatprep.subr.mxu0 0.0
    %2252 = vmatpush1.msra.mxu0 0.0
    %2253 = vmatprep.subr.mxu0 0.0
    %2254 = vmatpush1.msra.mxu0 0.0
    %2255 = vmatprep.subr.mxu0 0.0
    %2256 = vmatpush1.msra.mxu0 0.0
    %2257 = vmatprep.subr.mxu0 0.0
    %2258 = vmatpush1.msra.mxu0 0.0
    %2259 = vmatprep.subr.mxu0 0.0
    %2260 = vmatpush1.msra.mxu0 0.0
    %2261 = vmatprep.mubr.f32.mxu0 0.0
    %2262 = vmatmul.mubr.f32.gmra.mrb[0].mxu0 %v2195
    %v2263 = vpop.f32.mrb[0].mxu0
    %v2264 = vadd.f32 %v2192, %v2263
    %v2265 = vpop.f32.mrb[0].mxu0
    %v2266 = vadd.f32 %v2192, %v2265
    %2267 = vdwg.mxu0
    %v2268 = vmax.f32 %v2264, 0.0
    %v2269 = vmax.f32 %v2266, 0.0
    %s2270 = scalar_lea.vmem %s6, 7
    %v2271 = vld [vmem:[%s2270] sm:$0x1]
    %s2272 = scalar_lea.vmem %s7, 7
    %v2273 = vld [vmem:[%s2272] sm:$0x1]
    %2275 = vset.pattern.permute.xlu0 0
    %2276 = vperm.xlu0 %2275, %v2273
    %v2277 = vpop.permute.xlu0 %2276
    %v2279 = vlaneseq
    %v2280 = vshrl.u32 %v2279, 7
    %v2281 = vsub.s32 0, %v2280
    %v2282 = vrot.slane %v2277, %v2281
    %v2284 = vsel %vm141, %v2271, 0
    %2286 = vmatprep.subr.mxu0 %v2269
    %2287 = vmatpush1.msra.mxu0 %v2268
    %2288 = vmatprep.subr.mxu0 0.0
    %2289 = vmatpush1.msra.mxu0 0.0
    %2290 = vmatprep.subr.mxu0 0.0
    %2291 = vmatpush1.msra.mxu0 0.0
    %2292 = vmatprep.subr.mxu0 0.0
    %2293 = vmatpush1.msra.mxu0 0.0
    %2294 = vmatprep.subr.mxu0 0.0
    %2295 = vmatpush1.msra.mxu0 0.0
    %2296 = vmatprep.subr.mxu0 0.0
    %2297 = vmatpush1.msra.mxu0 0.0
    %2298 = vmatprep.subr.mxu0 0.0
    %2299 = vmatpush1.msra.mxu0 0.0
    %2300 = vmatprep.subr.mxu0 0.0
    %2301 = vmatpush1.msra.mxu0 0.0
    %2302 = vmatprep.subr.mxu0 0.0
    %2303 = vmatpush1.msra.mxu0 0.0
    %2304 = vmatprep.subr.mxu0 0.0
    %2305 = vmatpush1.msra.mxu0 0.0
    %2306 = vmatprep.subr.mxu0 0.0
    %2307 = vmatpush1.msra.mxu0 0.0
    %2308 = vmatprep.subr.mxu0 0.0
    %2309 = vmatpush1.msra.mxu0 0.0
    %2310 = vmatprep.subr.mxu0 0.0
    %2311 = vmatpush1.msra.mxu0 0.0
    %2312 = vmatprep.subr.mxu0 0.0
    %2313 = vmatpush1.msra.mxu0 0.0
    %2314 = vmatprep.subr.mxu0 0.0
    %2315 = vmatpush1.msra.mxu0 0.0
    %2316 = vmatprep.subr.mxu0 0.0
    %2317 = vmatpush1.msra.mxu0 0.0
    %2318 = vmatprep.subr.mxu0 0.0
    %2319 = vmatpush1.msra.mxu0 0.0
    %2320 = vmatprep.subr.mxu0 0.0
    %2321 = vmatpush1.msra.mxu0 0.0
    %2322 = vmatprep.subr.mxu0 0.0
    %2323 = vmatpush1.msra.mxu0 0.0
    %2324 = vmatprep.subr.mxu0 0.0
    %2325 = vmatpush1.msra.mxu0 0.0
    %2326 = vmatprep.subr.mxu0 0.0
    %2327 = vmatpush1.msra.mxu0 0.0
    %2328 = vmatprep.subr.mxu0 0.0
    %2329 = vmatpush1.msra.mxu0 0.0
    %2330 = vmatprep.subr.mxu0 0.0
    %2331 = vmatpush1.msra.mxu0 0.0
    %2332 = vmatprep.subr.mxu0 0.0
    %2333 = vmatpush1.msra.mxu0 0.0
    %2334 = vmatprep.subr.mxu0 0.0
    %2335 = vmatpush1.msra.mxu0 0.0
    %2336 = vmatprep.subr.mxu0 0.0
    %2337 = vmatpush1.msra.mxu0 0.0
    %2338 = vmatprep.subr.mxu0 0.0
    %2339 = vmatpush1.msra.mxu0 0.0
    %2340 = vmatprep.subr.mxu0 0.0
    %2341 = vmatpush1.msra.mxu0 0.0
    %2342 = vmatprep.subr.mxu0 0.0
    %2343 = vmatpush1.msra.mxu0 0.0
    %2344 = vmatprep.subr.mxu0 0.0
    %2345 = vmatpush1.msra.mxu0 0.0
    %2346 = vmatprep.subr.mxu0 0.0
    %2347 = vmatpush1.msra.mxu0 0.0
    %2348 = vmatprep.subr.mxu0 0.0
    %2349 = vmatpush1.msra.mxu0 0.0
    %2350 = vmatprep.mubr.f32.mxu0 0.0
    %2351 = vmatmul.mubr.f32.gmra.mrb[0].mxu0 %v2284
    %v2352 = vpop.f32.mrb[0].mxu0
    %v2353 = vadd.f32 %v2282, %v2352
    %v2354 = vpop.f32.mrb[0].mxu0
    %v2355 = vadd.f32 %v2282, %v2354
    %2356 = vdwg.mxu0
    %v2359 = vcombine.low %v2353, %v2355
    %v2361 = vunpack.c.l.s4 1966171168
    %v2362 = vunpack.c.0.s8 %v2361
    %v2363 = vlaneseq
    %v2364 = vshrl.u32 %v2363, 7
    %v2365 = vsub.s32 %v2362, %v2364
    %v2366 = vrot.slane %v2359, %v2365
    %v2368 = vunpack.c.l.s4 1966171168
    %v2369 = vunpack.c.0.s8 %v2368
    %v2370 = vlaneseq
    %v2371 = vshrl.u32 %v2370, 7
    %v2372 = vsub.s32 %v2369, %v2371
    %v2373 = vrot.slane %v2366, %v2372
    %s2375 = scalar_lea.vmem [#allocation4], 7
    %2376 = vst.msk [vmem:[%s2375] ss:$8 sm:$0x3] %vm324, %v2373
    %2377 = vst.msk [vmem:[%s2375] ss:$8 sm:$0x0] %vm324, %v2373
    // Predicated region
    $region30: #{tpu_custom_call.1} parent=1 // pred_check
      _
    $region31: #{tpu_custom_call.1} parent=1 // pred_check_branch
      %2379 = sbr.rel (0) target = $region33
    $region32: #{tpu_custom_call.1} parent=1 // pred_region
      %s2381 = ssub.s32 256, 256
      %2382 = vsyncadd [#allocation5], %s2381
      %s2384 = sshll.u32 [#allocation4], 4
      %s2385 = int_to_ptr.vmem [resolvable:$true] %s2384
      %2387 = dma.vmem_to_hbm [thread:$0]  %s2385, 256, %s8, [#allocation5]
    $region33: #{tpu_custom_call.1} parent=1 // pred_fallthru
      _
    // Predicated region
    $region34: #{tpu_custom_call.1} parent=1 // pred_check
      _
    $region35: #{tpu_custom_call.1} parent=1 // pred_check_branch
      %2389 = sbr.rel (0) target = $region37
    $region36: #{tpu_custom_call.1} parent=1 // pred_region
      %2390 = dma.done [#allocation5], 256
    $region37: #{tpu_custom_call.1} parent=1 // pred_fallthru
      _
    %2391 = vsyncpa [#allocation5], 1

</llo_original>
